<compile_context>
chip_gen: v7x
topology: tpu7x:2x2x1
jax: 0.10.0
libtpu: 0.0.40
codegen_flags: <defaults>
</compile_context>

<pallas_src>
import numpy as np

import jax
import jax.numpy as jnp
from jax.experimental import pallas as pl
from jax.experimental.pallas import tpu as pltpu


# ----------------------------------------------------------------- fused kernel

def make_fused_kernel(residual_flags, n_ff, tap_shifts, b_blk, hw,
                      num_heads, num_actions, fdim, out_w):
    """conv stack -> global max pool -> MLP -> GRUCell -> heads -> softmax, fully fused."""
    n_conv = len(residual_flags)
    n_logits = num_heads * num_actions

    def kernel(*refs):
        x_ref, h0_ref, masks_ref = refs[0], refs[1], refs[2]
        pos = 3
        conv_refs = refs[pos:pos + 2 * n_conv]; pos += 2 * n_conv
        ff_refs = refs[pos:pos + 2 * n_ff]; pos += 2 * n_ff
        w_ih_ref, w_hh_ref, b_ih_ref, b_hh_ref = refs[pos:pos + 4]; pos += 4
        w_head_ref, b_head_ref = refs[pos:pos + 2]; pos += 2
        out_ref = refs[pos]

        f32 = jnp.float32
        bf16 = jnp.bfloat16
        masks = masks_ref[...]                                # (9, N) 0/1 tap validity
        mask_rows = [masks[t:t + 1, :] for t in range(9)]     # hoisted out of the layer loop

        # ---- conv stack: channels-first (C, N) activations, lane-dense rows ----
        act = x_ref[...]                                      # (Cin0, N) f32
        for li in range(n_conv):
            w = conv_refs[2 * li][...]                        # (Cout, 9*Cin)  bf16
            b = conv_refs[2 * li + 1][...]                    # (Cout, 1)      f32
            taps = []
            for t, shift in enumerate(tap_shifts):            # in-kernel im2col via XLU rolls
                if shift == 0:                                # center tap: mask is all ones
                    taps.append(act)
                else:
                    taps.append(mask_rows[t] * pltpu.roll(act, shift, axis=1))
            patches = jnp.concatenate(taps, axis=0)           # (9*Cin, N) f32
            # bf16 operands into the MXU, f32 accumulation; elementwise stays f32 (v5e VPU).
            y = jnp.dot(w, patches.astype(bf16), preferred_element_type=f32)  # (Cout, N)
            y = jnp.maximum(y + b, 0.0)
            if residual_flags[li]:
                y = y + act
            act = y

        # ---- adaptive_max_pool2d(x, (1, 1)): lane-axis max per batch element.
        # No full-slab transpose: only the tiny (C, b_blk) result is transposed.
        pooled_cb = jnp.concatenate(
            [jnp.max(act[:, bb * hw:(bb + 1) * hw], axis=1, keepdims=True)
             for bb in range(b_blk)], axis=1)                 # (C, b_blk)
        pooled = pooled_cb.T                                  # (b_blk, C)

        # ---- feedforward blocks: Linear + ReLU ----
        z = pooled
        for fi in range(n_ff):
            wf = ff_refs[2 * fi][...]
            bf = ff_refs[2 * fi + 1][...]
            z = jnp.maximum(jnp.dot(z, wf, preferred_element_type=f32) + bf, 0.0)

        # ---- nn.GRUCell, gate order (r, z, n); six gate matmuls fused into two ----
        h0 = h0_ref[...]
        gi = jnp.dot(z, w_ih_ref[...], preferred_element_type=f32) + b_ih_ref[...]
        gh = jnp.dot(h0, w_hh_ref[...], preferred_element_type=f32) + b_hh_ref[...]
        r = jax.nn.sigmoid(gi[:, :fdim] + gh[:, :fdim])
        u = jax.nn.sigmoid(gi[:, fdim:2 * fdim] + gh[:, fdim:2 * fdim])
        n = jnp.tanh(gi[:, 2 * fdim:] + r * gh[:, 2 * fdim:])
        h_new = (1.0 - u) * n + u * h0

        # ---- value + policy heads in one fused matmul, EXACT per-head softmax ----
        ho = jnp.dot(h_new, w_head_ref[...], preferred_element_type=f32) + b_head_ref[...]
        values = ho[:, :num_heads]
        logits = ho[:, num_heads:num_heads + n_logits]
        head_probs = []
        for hh in range(num_heads):                           # matches PyTorch view + softmax
            lg = logits[:, hh * num_actions:(hh + 1) * num_actions]
            m = jnp.max(lg, axis=-1, keepdims=True)
            e = jnp.exp(lg - m)
            head_probs.append(e / jnp.sum(e, axis=-1, keepdims=True))
        probs = head_probs[0] if num_heads == 1 else jnp.concatenate(head_probs, axis=1)

        # ---- one lane-dense (b_blk, out_w) output slab: [ h | values | probs | 0-pad ].
        # HBM writeback is a single dense 128-lane-multiple block per grid step.
        out_ref[...] = jnp.zeros_like(out_ref)
        out_ref[:, 0:fdim] = h_new.astype(out_ref.dtype)
        out_ref[:, fdim:fdim + num_heads] = values.astype(out_ref.dtype)
        out_ref[:, fdim + num_heads:fdim + num_heads + n_logits] = probs.astype(out_ref.dtype)

    return kernel


# ------------------------------------------------------------------ wrapper

def _tap_masks_and_shifts(b_blk, H, W):
    """Lane-axis shifts + validity masks for the 9 taps of a 3x3 'same' conv."""
    hw = H * W
    n = b_blk * hw
    idx = np.arange(n)
    xs = idx % W
    ys = (idx // W) % H
    masks, shifts = [], []
    for ky in range(3):
        for kx in range(3):
            dy, dx = ky - 1, kx - 1
            k = dy * W + dx                       # tap[i] = act[i + k] when spatially valid
            shifts.append(int((-k) % n))          # jnp.roll / pltpu.roll convention
            valid = ((xs + dx >= 0) & (xs + dx < W) &
                     (ys + dy >= 0) & (ys + dy < H))
            masks.append(valid)
    return jnp.asarray(np.stack(masks), dtype=jnp.float32), tuple(shifts)


def gru_agent_forward(params, x_nchw, h=None, batch_block=None):
    # TODO(synk): accept a channels-first (C, B*H*W) slab straight from the rollout
    # producer so this wrapper-side NCHW transpose (a full HBM read+write) disappears.
    B, c_in, H, W = x_nchw.shape
    hw = H * W
    fdim = params["feedforward_dim"]
    num_actions = params["num_actions"]
    num_heads = params["num_heads"]
    if h is None:                                  # nn.GRUCell default hidden state
        h = jnp.zeros((B, fdim), jnp.float32)

    if batch_block is None:
        batch_block = B
        # v7x has 2 TensorCores and the pipeline needs >=2 grid steps to hide the
        # input-slab DMA, so split large batches into multiple-of-8 blocks.  The bf16
        # patches slab keeps even 64-element blocks far below the scoped VMEM limit
        # (and inside v7x's 64 MiB physical VMEM).
        if B % 16 == 0:
            batch_block = B // 2
            while batch_block > 64 and (batch_block // 2) % 8 == 0:
                batch_block //= 2
    assert B % batch_block == 0
    n_blocks = B // batch_block
    n_blk = batch_block * hw

    # channels-first input slab (C, B*H*W); pad C up to a multiple of 8 for alignment
    x_cn = jnp.transpose(x_nchw.astype(jnp.float32), (1, 0, 2, 3)).reshape(c_in, B * hw)
    c_pad = (-c_in) % 8
    if c_pad:
        x_cn = jnp.pad(x_cn, ((0, c_pad), (0, 0)))
    c0 = c_in + c_pad

    # conv weights packed (Cout, 9*Cin) and cast to bf16 (MXU-native on v5e/v6e/v7x)
    conv_inputs, residual_flags = [], []
    for li, (w, b, residual) in enumerate(params["convs"]):
        cin, cout = w.shape[2], w.shape[3]
        if li == 0 and c_pad:
            w = jnp.pad(w, ((0, 0), (0, 0), (0, c_pad), (0, 0)))
            cin += c_pad
        conv_inputs += [jnp.transpose(w.reshape(9 * cin, cout)).astype(jnp.bfloat16),
                        b.reshape(cout, 1)]
        residual_flags.append(bool(residual))

    ff_inputs = []
    for (w, b) in params["ff"]:
        ff_inputs += [w, b.reshape(1, -1)]

    # GRU gate weights packed 2-D so the six gate matmuls fuse into two
    w_ih, w_hh, b_ih, b_hh = params["gru"]
    gru_inputs = [jnp.transpose(w_ih, (1, 0, 2)).reshape(fdim, 3 * fdim),
                  jnp.transpose(w_hh, (1, 0, 2)).reshape(fdim, 3 * fdim),
                  b_ih.reshape(1, 3 * fdim), b_hh.reshape(1, 3 * fdim)]

    # value + policy heads fused into one matmul
    w_v, b_v, w_p, b_p = params["heads"]
    head_inputs = [jnp.concatenate([w_v, w_p], axis=1),
                   jnp.concatenate([b_v, b_p]).reshape(1, -1)]

    tap_masks, tap_shifts = _tap_masks_and_shifts(batch_block, H, W)

    inputs = [x_cn, h.astype(jnp.float32), tap_masks]
    inputs += conv_inputs + ff_inputs + gru_inputs + head_inputs

    # TODO(synk): mark these grid-invariant weight/mask inputs single-buffered
    # (pipeline_mode=pl.Buffered(1)) once that path is exercised; default
    # double-buffering only costs a little VMEM bookkeeping at these sizes.
    def _bcast(shape):
        nd = len(shape)
        return pl.BlockSpec(tuple(shape), lambda i, _nd=nd: (0,) * _nd)

    in_specs = [pl.BlockSpec((c0, n_blk), lambda i: (0, i)),
                pl.BlockSpec((batch_block, fdim), lambda i: (i, 0)),
                _bcast(tap_masks.shape)]
    in_specs += [_bcast(a.shape) for a in inputs[3:]]

    # single lane-dense output slab: [ h (fdim) | values (heads) | probs (heads*A) | pad ]
    payload = fdim + num_heads + num_heads * num_actions
    out_w = ((payload + 127) // 128) * 128
    out_shape = jax.ShapeDtypeStruct((B, out_w), jnp.float32)
    out_specs = pl.BlockSpec((batch_block, out_w), lambda i: (i, 0))

    kernel = make_fused_kernel(tuple(residual_flags), len(params["ff"]), tap_shifts,
                               batch_block, hw, num_heads, num_actions, fdim, out_w)
    out = pl.pallas_call(
        kernel,
        out_shape=out_shape,
        grid=(n_blocks,),
        in_specs=in_specs,
        out_specs=out_specs,
        compiler_params=pltpu.CompilerParams(
            dimension_semantics=("parallel",),       # batch blocks shard across TCs (v7x)
            vmem_limit_bytes=48 * 1024 * 1024),      # explicit scoped limit (v5e default 16 MiB)
    )(*inputs)

    h_new = out[:, :fdim]
    values = out[:, fdim:fdim + num_heads]
    probs = out[:, fdim + num_heads:payload]
    if num_heads > 1:
        probs = probs.reshape(B, num_heads, num_actions)   # matches PyTorch view + softmax
    return probs, values, h_new


# --------------------------------------------------------- params / reference

def init_params(key, in_channels, num_initial_convs, num_residual_convs,
                num_feedforward, feedforward_dim, num_actions,
                conv_channels=16, num_heads=1):
    keys = iter(jax.random.split(key, 64))

    def nrm(shape, scale=0.1):
        return (scale * jax.random.normal(next(keys), shape)).astype(jnp.float32)

    convs = []
    cin = in_channels
    for _ in range(num_initial_convs):
        convs.append((nrm((3, 3, cin, conv_channels)), nrm((conv_channels,)), False))
        cin = conv_channels
    for _ in range(num_residual_convs):
        convs.append((nrm((3, 3, conv_channels, conv_channels)),
                      nrm((conv_channels,)), True))

    ff = []
    din = conv_channels
    for _ in range(num_feedforward):
        ff.append((nrm((din, feedforward_dim)), nrm((feedforward_dim,))))
        din = feedforward_dim

    F = feedforward_dim
    gru = (nrm((3, F, F)), nrm((3, F, F)), nrm((3, 1, F)), nrm((3, 1, F)))
    heads = (nrm((F, num_heads)), nrm((num_heads,)),
             nrm((F, num_actions * num_heads)), nrm((num_actions * num_heads,)))
    return dict(convs=convs, ff=ff, gru=gru, heads=heads,
                feedforward_dim=feedforward_dim,
                num_actions=num_actions, num_heads=num_heads)


def reference_forward(params, x_nchw, h=None):
    """Pure-JAX reference matching the PyTorch module semantics (num_heads == 1 demo)."""
    x = jnp.transpose(x_nchw, (0, 2, 3, 1)).astype(jnp.float32)
    for (w, b, residual) in params["convs"]:
        y = jax.lax.conv_general_dilated(
            x, w, window_strides=(1, 1), padding="SAME",
            dimension_numbers=("NHWC", "HWIO", "NHWC"))
        y = jnp.maximum(y + b, 0.0)
        if residual:
            y = y + x
        x = y
    z = jnp.max(x, axis=(1, 2))
    for (w, b) in params["ff"]:
        z = jnp.maximum(z @ w + b, 0.0)
    if h is None:
        h = jnp.zeros((x.shape[0], params["feedforward_dim"]), jnp.float32)
    w_ih, w_hh, b_ih, b_hh = params["gru"]
    gi = [z @ w_ih[g] + b_ih[g] for g in range(3)]
    gh = [h @ w_hh[g] + b_hh[g] for g in range(3)]
    r = jax.nn.sigmoid(gi[0] + gh[0])
    zz = jax.nn.sigmoid(gi[1] + gh[1])
    n = jnp.tanh(gi[2] + r * gh[2])
    h_new = (1.0 - zz) * n + zz * h
    w_v, b_v, w_p, b_p = params["heads"]
    values = h_new @ w_v + b_v
    probs = jax.nn.softmax(h_new @ w_p + b_p, axis=-1)
    return probs, values, h_new


# ------------------------------------------------------------------ main

if __name__ == "__main__":
    key = jax.random.PRNGKey(0)
    k_x, k_h, k_p = jax.random.split(key, 3)

    B, C, H, W = 2, 4, 16, 16
    feedforward_dim, num_actions, num_heads = 32, 4, 1

    x = jax.random.normal(k_x, (B, C, H, W), jnp.float32)       # NCHW like PyTorch
    h0 = jax.random.normal(k_h, (B, feedforward_dim), jnp.float32)
    params = init_params(k_p, in_channels=C, num_initial_convs=2,
                         num_residual_convs=2, num_feedforward=2,
                         feedforward_dim=feedforward_dim, num_actions=num_actions,
                         conv_channels=16, num_heads=num_heads)

    probs, values, h_new = gru_agent_forward(params, x, h0)
    jax.block_until_ready((probs, values, h_new))

    probs_r, values_r, h_r = reference_forward(params, x, h0)

    assert probs.shape == (B, num_actions)
    assert values.shape == (B, num_heads)
    assert h_new.shape == (B, feedforward_dim)
    # exact in-kernel softmax -> rows sum to 1 up to float rounding
    assert bool(jnp.allclose(jnp.sum(probs, axis=-1), 1.0, atol=1e-4))
    # bf16 MXU feeds in the conv stack -> compare against the pure-f32 reference loosely
    assert bool(jnp.allclose(probs, probs_r, atol=3e-2, rtol=3e-2))
    assert bool(jnp.allclose(values, values_r, atol=3e-2, rtol=3e-2))
    assert bool(jnp.allclose(h_new, h_r, atol=3e-2, rtol=3e-2))

    print("KERNEL_OK")
</pallas_src>

<mosaic_0001>
module attributes {stable_mosaic.version = 11 : i64} {
  func.func @kernel(%arg0: i32, %arg1: memref<8x512xf32, #tpu.memory_space<vmem>>, %arg2: memref<2x32xf32, #tpu.memory_space<vmem>>, %arg3: memref<9x512xf32, #tpu.memory_space<vmem>>, %arg4: memref<16x72xbf16, #tpu.memory_space<vmem>>, %arg5: memref<16x1xf32, #tpu.memory_space<vmem>>, %arg6: memref<16x144xbf16, #tpu.memory_space<vmem>>, %arg7: memref<16x1xf32, #tpu.memory_space<vmem>>, %arg8: memref<16x144xbf16, #tpu.memory_space<vmem>>, %arg9: memref<16x1xf32, #tpu.memory_space<vmem>>, %arg10: memref<16x144xbf16, #tpu.memory_space<vmem>>, %arg11: memref<16x1xf32, #tpu.memory_space<vmem>>, %arg12: memref<16x32xf32, #tpu.memory_space<vmem>>, %arg13: memref<1x32xf32, #tpu.memory_space<vmem>>, %arg14: memref<32x32xf32, #tpu.memory_space<vmem>>, %arg15: memref<1x32xf32, #tpu.memory_space<vmem>>, %arg16: memref<32x96xf32, #tpu.memory_space<vmem>>, %arg17: memref<32x96xf32, #tpu.memory_space<vmem>>, %arg18: memref<1x96xf32, #tpu.memory_space<vmem>>, %arg19: memref<1x96xf32, #tpu.memory_space<vmem>>, %arg20: memref<32x5xf32, #tpu.memory_space<vmem>>, %arg21: memref<1x5xf32, #tpu.memory_space<vmem>>, %arg22: memref<2x128xf32, #tpu.memory_space<vmem>>) attributes {dimension_semantics = [#tpu.dimension_semantics<parallel>], iteration_bounds = array<i64: 1>, scalar_prefetch = 0 : i64, scratch_operands = 0 : i64, tpu.core_type = #tpu.core_type<tc>, window_params = [{transform_indices = @transform_0, window_bounds = array<i64: 8, 512>}, {transform_indices = @transform_1, window_bounds = array<i64: 2, 32>}, {pipeline_mode = #tpu.pipeline_mode<synchronous>, transform_indices = @transform_2, window_bounds = array<i64: 9, 512>}, {pipeline_mode = #tpu.pipeline_mode<synchronous>, transform_indices = @transform_3, window_bounds = array<i64: 16, 72>}, {pipeline_mode = #tpu.pipeline_mode<synchronous>, transform_indices = @transform_4, window_bounds = array<i64: 16, 1>}, {pipeline_mode = #tpu.pipeline_mode<synchronous>, transform_indices = @transform_5, window_bounds = array<i64: 16, 144>}, {pipeline_mode = #tpu.pipeline_mode<synchronous>, transform_indices = @transform_6, window_bounds = array<i64: 16, 1>}, {pipeline_mode = #tpu.pipeline_mode<synchronous>, transform_indices = @transform_7, window_bounds = array<i64: 16, 144>}, {pipeline_mode = #tpu.pipeline_mode<synchronous>, transform_indices = @transform_8, window_bounds = array<i64: 16, 1>}, {pipeline_mode = #tpu.pipeline_mode<synchronous>, transform_indices = @transform_9, window_bounds = array<i64: 16, 144>}, {pipeline_mode = #tpu.pipeline_mode<synchronous>, transform_indices = @transform_10, window_bounds = array<i64: 16, 1>}, {pipeline_mode = #tpu.pipeline_mode<synchronous>, transform_indices = @transform_11, window_bounds = array<i64: 16, 32>}, {pipeline_mode = #tpu.pipeline_mode<synchronous>, transform_indices = @transform_12, window_bounds = array<i64: 1, 32>}, {pipeline_mode = #tpu.pipeline_mode<synchronous>, transform_indices = @transform_13, window_bounds = array<i64: 32, 32>}, {pipeline_mode = #tpu.pipeline_mode<synchronous>, transform_indices = @transform_14, window_bounds = array<i64: 1, 32>}, {pipeline_mode = #tpu.pipeline_mode<synchronous>, transform_indices = @transform_15, window_bounds = array<i64: 32, 96>}, {pipeline_mode = #tpu.pipeline_mode<synchronous>, transform_indices = @transform_16, window_bounds = array<i64: 32, 96>}, {pipeline_mode = #tpu.pipeline_mode<synchronous>, transform_indices = @transform_17, window_bounds = array<i64: 1, 96>}, {pipeline_mode = #tpu.pipeline_mode<synchronous>, transform_indices = @transform_18, window_bounds = array<i64: 1, 96>}, {pipeline_mode = #tpu.pipeline_mode<synchronous>, transform_indices = @transform_19, window_bounds = array<i64: 32, 5>}, {pipeline_mode = #tpu.pipeline_mode<synchronous>, transform_indices = @transform_20, window_bounds = array<i64: 1, 5>}, {transform_indices = @transform_21, window_bounds = array<i64: 2, 128>}]} {
    %c0 = arith.constant 0 : index
    %c0_0 = arith.constant 0 : index
    %0 = vector.load %arg3[%c0, %c0_0] : memref<9x512xf32, #tpu.memory_space<vmem>>, vector<9x512xf32>
    %1 = vector.extract_strided_slice %0 {offsets = [0, 0], sizes = [1, 512], strides = [1, 1]} : vector<9x512xf32> to vector<1x512xf32>
    %2 = vector.extract_strided_slice %0 {offsets = [1, 0], sizes = [1, 512], strides = [1, 1]} : vector<9x512xf32> to vector<1x512xf32>
    %3 = vector.extract_strided_slice %0 {offsets = [2, 0], sizes = [1, 512], strides = [1, 1]} : vector<9x512xf32> to vector<1x512xf32>
    %4 = vector.extract_strided_slice %0 {offsets = [3, 0], sizes = [1, 512], strides = [1, 1]} : vector<9x512xf32> to vector<1x512xf32>
    %5 = vector.extract_strided_slice %0 {offsets = [5, 0], sizes = [1, 512], strides = [1, 1]} : vector<9x512xf32> to vector<1x512xf32>
    %6 = vector.extract_strided_slice %0 {offsets = [6, 0], sizes = [1, 512], strides = [1, 1]} : vector<9x512xf32> to vector<1x512xf32>
    %7 = vector.extract_strided_slice %0 {offsets = [7, 0], sizes = [1, 512], strides = [1, 1]} : vector<9x512xf32> to vector<1x512xf32>
    %8 = vector.extract_strided_slice %0 {offsets = [8, 0], sizes = [1, 512], strides = [1, 1]} : vector<9x512xf32> to vector<1x512xf32>
    %c0_1 = arith.constant 0 : index
    %c0_2 = arith.constant 0 : index
    %9 = vector.load %arg1[%c0_1, %c0_2] : memref<8x512xf32, #tpu.memory_space<vmem>>, vector<8x512xf32>
    %c0_3 = arith.constant 0 : index
    %c0_4 = arith.constant 0 : index
    %10 = vector.load %arg4[%c0_3, %c0_4] : memref<16x72xbf16, #tpu.memory_space<vmem>>, vector<16x72xbf16>
    %c0_5 = arith.constant 0 : index
    %c0_6 = arith.constant 0 : index
    %11 = vector.load %arg5[%c0_5, %c0_6] : memref<16x1xf32, #tpu.memory_space<vmem>>, vector<16x1xf32>
    %c17_i32 = arith.constant 17 : i32
    %12 = tpu.dynamic_rotate %9 by %c17_i32 dim 1 : vector<8x512xf32>, i32 -> vector<8x512xf32>
    %13 = vector.broadcast %1 : vector<1x512xf32> to vector<8x512xf32>
    %14 = arith.mulf %13, %12 : vector<8x512xf32>
    %c16_i32 = arith.constant 16 : i32
    %15 = tpu.dynamic_rotate %9 by %c16_i32 dim 1 : vector<8x512xf32>, i32 -> vector<8x512xf32>
    %16 = vector.broadcast %2 : vector<1x512xf32> to vector<8x512xf32>
    %17 = arith.mulf %16, %15 : vector<8x512xf32>
    %c15_i32 = arith.constant 15 : i32
    %18 = tpu.dynamic_rotate %9 by %c15_i32 dim 1 : vector<8x512xf32>, i32 -> vector<8x512xf32>
    %19 = vector.broadcast %3 : vector<1x512xf32> to vector<8x512xf32>
    %20 = arith.mulf %19, %18 : vector<8x512xf32>
    %c1_i32 = arith.constant 1 : i32
    %21 = tpu.dynamic_rotate %9 by %c1_i32 dim 1 : vector<8x512xf32>, i32 -> vector<8x512xf32>
    %22 = vector.broadcast %4 : vector<1x512xf32> to vector<8x512xf32>
    %23 = arith.mulf %22, %21 : vector<8x512xf32>
    %c511_i32 = arith.constant 511 : i32
    %24 = tpu.dynamic_rotate %9 by %c511_i32 dim 1 : vector<8x512xf32>, i32 -> vector<8x512xf32>
    %25 = vector.broadcast %5 : vector<1x512xf32> to vector<8x512xf32>
    %26 = arith.mulf %25, %24 : vector<8x512xf32>
    %c497_i32 = arith.constant 497 : i32
    %27 = tpu.dynamic_rotate %9 by %c497_i32 dim 1 : vector<8x512xf32>, i32 -> vector<8x512xf32>
    %28 = vector.broadcast %6 : vector<1x512xf32> to vector<8x512xf32>
    %29 = arith.mulf %28, %27 : vector<8x512xf32>
    %c496_i32 = arith.constant 496 : i32
    %30 = tpu.dynamic_rotate %9 by %c496_i32 dim 1 : vector<8x512xf32>, i32 -> vector<8x512xf32>
    %31 = vector.broadcast %7 : vector<1x512xf32> to vector<8x512xf32>
    %32 = arith.mulf %31, %30 : vector<8x512xf32>
    %c495_i32 = arith.constant 495 : i32
    %33 = tpu.dynamic_rotate %9 by %c495_i32 dim 1 : vector<8x512xf32>, i32 -> vector<8x512xf32>
    %34 = vector.broadcast %8 : vector<1x512xf32> to vector<8x512xf32>
    %35 = arith.mulf %34, %33 : vector<8x512xf32>
    %36 = tpu.concatenate %14, %17, %20, %23, %9, %26, %29, %32, %35 in 0 : vector<8x512xf32>, vector<8x512xf32>, vector<8x512xf32>, vector<8x512xf32>, vector<8x512xf32>, vector<8x512xf32>, vector<8x512xf32>, vector<8x512xf32>, vector<8x512xf32> -> vector<72x512xf32>
    %37 = arith.truncf %36 : vector<72x512xf32> to vector<72x512xbf16>
    %cst = arith.constant dense<0.000000e+00> : vector<16x512xf32>
    %38 = tpu.matmul %10, %37, %cst {dimension_numbers = #tpu.dot_dimension_numbers<[1], [0], [0], [1], [0, 0, 1, 1], [], []>} : vector<16x72xbf16>, vector<72x512xbf16>, vector<16x512xf32> -> vector<16x512xf32>
    %39 = vector.broadcast %11 : vector<16x1xf32> to vector<16x512xf32>
    %40 = arith.addf %38, %39 : vector<16x512xf32>
    %cst_7 = arith.constant 0.000000e+00 : f32
    %41 = vector.broadcast %cst_7 : f32 to vector<16x512xf32>
    %42 = arith.maximumf %40, %41 : vector<16x512xf32>
    %c0_8 = arith.constant 0 : index
    %c0_9 = arith.constant 0 : index
    %43 = vector.load %arg6[%c0_8, %c0_9] : memref<16x144xbf16, #tpu.memory_space<vmem>>, vector<16x144xbf16>
    %c0_10 = arith.constant 0 : index
    %c0_11 = arith.constant 0 : index
    %44 = vector.load %arg7[%c0_10, %c0_11] : memref<16x1xf32, #tpu.memory_space<vmem>>, vector<16x1xf32>
    %c17_i32_12 = arith.constant 17 : i32
    %45 = tpu.dynamic_rotate %42 by %c17_i32_12 dim 1 : vector<16x512xf32>, i32 -> vector<16x512xf32>
    %46 = vector.broadcast %1 : vector<1x512xf32> to vector<16x512xf32>
    %47 = arith.mulf %46, %45 : vector<16x512xf32>
    %c16_i32_13 = arith.constant 16 : i32
    %48 = tpu.dynamic_rotate %42 by %c16_i32_13 dim 1 : vector<16x512xf32>, i32 -> vector<16x512xf32>
    %49 = vector.broadcast %2 : vector<1x512xf32> to vector<16x512xf32>
    %50 = arith.mulf %49, %48 : vector<16x512xf32>
    %c15_i32_14 = arith.constant 15 : i32
    %51 = tpu.dynamic_rotate %42 by %c15_i32_14 dim 1 : vector<16x512xf32>, i32 -> vector<16x512xf32>
    %52 = vector.broadcast %3 : vector<1x512xf32> to vector<16x512xf32>
    %53 = arith.mulf %52, %51 : vector<16x512xf32>
    %c1_i32_15 = arith.constant 1 : i32
    %54 = tpu.dynamic_rotate %42 by %c1_i32_15 dim 1 : vector<16x512xf32>, i32 -> vector<16x512xf32>
    %55 = vector.broadcast %4 : vector<1x512xf32> to vector<16x512xf32>
    %56 = arith.mulf %55, %54 : vector<16x512xf32>
    %c511_i32_16 = arith.constant 511 : i32
    %57 = tpu.dynamic_rotate %42 by %c511_i32_16 dim 1 : vector<16x512xf32>, i32 -> vector<16x512xf32>
    %58 = vector.broadcast %5 : vector<1x512xf32> to vector<16x512xf32>
    %59 = arith.mulf %58, %57 : vector<16x512xf32>
    %c497_i32_17 = arith.constant 497 : i32
    %60 = tpu.dynamic_rotate %42 by %c497_i32_17 dim 1 : vector<16x512xf32>, i32 -> vector<16x512xf32>
    %61 = vector.broadcast %6 : vector<1x512xf32> to vector<16x512xf32>
    %62 = arith.mulf %61, %60 : vector<16x512xf32>
    %c496_i32_18 = arith.constant 496 : i32
    %63 = tpu.dynamic_rotate %42 by %c496_i32_18 dim 1 : vector<16x512xf32>, i32 -> vector<16x512xf32>
    %64 = vector.broadcast %7 : vector<1x512xf32> to vector<16x512xf32>
    %65 = arith.mulf %64, %63 : vector<16x512xf32>
    %c495_i32_19 = arith.constant 495 : i32
    %66 = tpu.dynamic_rotate %42 by %c495_i32_19 dim 1 : vector<16x512xf32>, i32 -> vector<16x512xf32>
    %67 = vector.broadcast %8 : vector<1x512xf32> to vector<16x512xf32>
    %68 = arith.mulf %67, %66 : vector<16x512xf32>
    %69 = tpu.concatenate %47, %50, %53, %56, %42, %59, %62, %65, %68 in 0 : vector<16x512xf32>, vector<16x512xf32>, vector<16x512xf32>, vector<16x512xf32>, vector<16x512xf32>, vector<16x512xf32>, vector<16x512xf32>, vector<16x512xf32>, vector<16x512xf32> -> vector<144x512xf32>
    %70 = arith.truncf %69 : vector<144x512xf32> to vector<144x512xbf16>
    %cst_20 = arith.constant dense<0.000000e+00> : vector<16x512xf32>
    %71 = tpu.matmul %43, %70, %cst_20 {dimension_numbers = #tpu.dot_dimension_numbers<[1], [0], [0], [1], [0, 0, 1, 1], [], []>} : vector<16x144xbf16>, vector<144x512xbf16>, vector<16x512xf32> -> vector<16x512xf32>
    %72 = vector.broadcast %44 : vector<16x1xf32> to vector<16x512xf32>
    %73 = arith.addf %71, %72 : vector<16x512xf32>
    %cst_21 = arith.constant 0.000000e+00 : f32
    %74 = vector.broadcast %cst_21 : f32 to vector<16x512xf32>
    %75 = arith.maximumf %73, %74 : vector<16x512xf32>
    %c0_22 = arith.constant 0 : index
    %c0_23 = arith.constant 0 : index
    %76 = vector.load %arg8[%c0_22, %c0_23] : memref<16x144xbf16, #tpu.memory_space<vmem>>, vector<16x144xbf16>
    %c0_24 = arith.constant 0 : index
    %c0_25 = arith.constant 0 : index
    %77 = vector.load %arg9[%c0_24, %c0_25] : memref<16x1xf32, #tpu.memory_space<vmem>>, vector<16x1xf32>
    %c17_i32_26 = arith.constant 17 : i32
    %78 = tpu.dynamic_rotate %75 by %c17_i32_26 dim 1 : vector<16x512xf32>, i32 -> vector<16x512xf32>
    %79 = vector.broadcast %1 : vector<1x512xf32> to vector<16x512xf32>
    %80 = arith.mulf %79, %78 : vector<16x512xf32>
    %c16_i32_27 = arith.constant 16 : i32
    %81 = tpu.dynamic_rotate %75 by %c16_i32_27 dim 1 : vector<16x512xf32>, i32 -> vector<16x512xf32>
    %82 = vector.broadcast %2 : vector<1x512xf32> to vector<16x512xf32>
    %83 = arith.mulf %82, %81 : vector<16x512xf32>
    %c15_i32_28 = arith.constant 15 : i32
    %84 = tpu.dynamic_rotate %75 by %c15_i32_28 dim 1 : vector<16x512xf32>, i32 -> vector<16x512xf32>
    %85 = vector.broadcast %3 : vector<1x512xf32> to vector<16x512xf32>
    %86 = arith.mulf %85, %84 : vector<16x512xf32>
    %c1_i32_29 = arith.constant 1 : i32
    %87 = tpu.dynamic_rotate %75 by %c1_i32_29 dim 1 : vector<16x512xf32>, i32 -> vector<16x512xf32>
    %88 = vector.broadcast %4 : vector<1x512xf32> to vector<16x512xf32>
    %89 = arith.mulf %88, %87 : vector<16x512xf32>
    %c511_i32_30 = arith.constant 511 : i32
    %90 = tpu.dynamic_rotate %75 by %c511_i32_30 dim 1 : vector<16x512xf32>, i32 -> vector<16x512xf32>
    %91 = vector.broadcast %5 : vector<1x512xf32> to vector<16x512xf32>
    %92 = arith.mulf %91, %90 : vector<16x512xf32>
    %c497_i32_31 = arith.constant 497 : i32
    %93 = tpu.dynamic_rotate %75 by %c497_i32_31 dim 1 : vector<16x512xf32>, i32 -> vector<16x512xf32>
    %94 = vector.broadcast %6 : vector<1x512xf32> to vector<16x512xf32>
    %95 = arith.mulf %94, %93 : vector<16x512xf32>
    %c496_i32_32 = arith.constant 496 : i32
    %96 = tpu.dynamic_rotate %75 by %c496_i32_32 dim 1 : vector<16x512xf32>, i32 -> vector<16x512xf32>
    %97 = vector.broadcast %7 : vector<1x512xf32> to vector<16x512xf32>
    %98 = arith.mulf %97, %96 : vector<16x512xf32>
    %c495_i32_33 = arith.constant 495 : i32
    %99 = tpu.dynamic_rotate %75 by %c495_i32_33 dim 1 : vector<16x512xf32>, i32 -> vector<16x512xf32>
    %100 = vector.broadcast %8 : vector<1x512xf32> to vector<16x512xf32>
    %101 = arith.mulf %100, %99 : vector<16x512xf32>
    %102 = tpu.concatenate %80, %83, %86, %89, %75, %92, %95, %98, %101 in 0 : vector<16x512xf32>, vector<16x512xf32>, vector<16x512xf32>, vector<16x512xf32>, vector<16x512xf32>, vector<16x512xf32>, vector<16x512xf32>, vector<16x512xf32>, vector<16x512xf32> -> vector<144x512xf32>
    %103 = arith.truncf %102 : vector<144x512xf32> to vector<144x512xbf16>
    %cst_34 = arith.constant dense<0.000000e+00> : vector<16x512xf32>
    %104 = tpu.matmul %76, %103, %cst_34 {dimension_numbers = #tpu.dot_dimension_numbers<[1], [0], [0], [1], [0, 0, 1, 1], [], []>} : vector<16x144xbf16>, vector<144x512xbf16>, vector<16x512xf32> -> vector<16x512xf32>
    %105 = vector.broadcast %77 : vector<16x1xf32> to vector<16x512xf32>
    %106 = arith.addf %104, %105 : vector<16x512xf32>
    %cst_35 = arith.constant 0.000000e+00 : f32
    %107 = vector.broadcast %cst_35 : f32 to vector<16x512xf32>
    %108 = arith.maximumf %106, %107 : vector<16x512xf32>
    %109 = arith.addf %108, %75 : vector<16x512xf32>
    %c0_36 = arith.constant 0 : index
    %c0_37 = arith.constant 0 : index
    %110 = vector.load %arg10[%c0_36, %c0_37] : memref<16x144xbf16, #tpu.memory_space<vmem>>, vector<16x144xbf16>
    %c0_38 = arith.constant 0 : index
    %c0_39 = arith.constant 0 : index
    %111 = vector.load %arg11[%c0_38, %c0_39] : memref<16x1xf32, #tpu.memory_space<vmem>>, vector<16x1xf32>
    %c17_i32_40 = arith.constant 17 : i32
    %112 = tpu.dynamic_rotate %109 by %c17_i32_40 dim 1 : vector<16x512xf32>, i32 -> vector<16x512xf32>
    %113 = vector.broadcast %1 : vector<1x512xf32> to vector<16x512xf32>
    %114 = arith.mulf %113, %112 : vector<16x512xf32>
    %c16_i32_41 = arith.constant 16 : i32
    %115 = tpu.dynamic_rotate %109 by %c16_i32_41 dim 1 : vector<16x512xf32>, i32 -> vector<16x512xf32>
    %116 = vector.broadcast %2 : vector<1x512xf32> to vector<16x512xf32>
    %117 = arith.mulf %116, %115 : vector<16x512xf32>
    %c15_i32_42 = arith.constant 15 : i32
    %118 = tpu.dynamic_rotate %109 by %c15_i32_42 dim 1 : vector<16x512xf32>, i32 -> vector<16x512xf32>
    %119 = vector.broadcast %3 : vector<1x512xf32> to vector<16x512xf32>
    %120 = arith.mulf %119, %118 : vector<16x512xf32>
    %c1_i32_43 = arith.constant 1 : i32
    %121 = tpu.dynamic_rotate %109 by %c1_i32_43 dim 1 : vector<16x512xf32>, i32 -> vector<16x512xf32>
    %122 = vector.broadcast %4 : vector<1x512xf32> to vector<16x512xf32>
    %123 = arith.mulf %122, %121 : vector<16x512xf32>
    %c511_i32_44 = arith.constant 511 : i32
    %124 = tpu.dynamic_rotate %109 by %c511_i32_44 dim 1 : vector<16x512xf32>, i32 -> vector<16x512xf32>
    %125 = vector.broadcast %5 : vector<1x512xf32> to vector<16x512xf32>
    %126 = arith.mulf %125, %124 : vector<16x512xf32>
    %c497_i32_45 = arith.constant 497 : i32
    %127 = tpu.dynamic_rotate %109 by %c497_i32_45 dim 1 : vector<16x512xf32>, i32 -> vector<16x512xf32>
    %128 = vector.broadcast %6 : vector<1x512xf32> to vector<16x512xf32>
    %129 = arith.mulf %128, %127 : vector<16x512xf32>
    %c496_i32_46 = arith.constant 496 : i32
    %130 = tpu.dynamic_rotate %109 by %c496_i32_46 dim 1 : vector<16x512xf32>, i32 -> vector<16x512xf32>
    %131 = vector.broadcast %7 : vector<1x512xf32> to vector<16x512xf32>
    %132 = arith.mulf %131, %130 : vector<16x512xf32>
    %c495_i32_47 = arith.constant 495 : i32
    %133 = tpu.dynamic_rotate %109 by %c495_i32_47 dim 1 : vector<16x512xf32>, i32 -> vector<16x512xf32>
    %134 = vector.broadcast %8 : vector<1x512xf32> to vector<16x512xf32>
    %135 = arith.mulf %134, %133 : vector<16x512xf32>
    %136 = tpu.concatenate %114, %117, %120, %123, %109, %126, %129, %132, %135 in 0 : vector<16x512xf32>, vector<16x512xf32>, vector<16x512xf32>, vector<16x512xf32>, vector<16x512xf32>, vector<16x512xf32>, vector<16x512xf32>, vector<16x512xf32>, vector<16x512xf32> -> vector<144x512xf32>
    %137 = arith.truncf %136 : vector<144x512xf32> to vector<144x512xbf16>
    %cst_48 = arith.constant dense<0.000000e+00> : vector<16x512xf32>
    %138 = tpu.matmul %110, %137, %cst_48 {dimension_numbers = #tpu.dot_dimension_numbers<[1], [0], [0], [1], [0, 0, 1, 1], [], []>} : vector<16x144xbf16>, vector<144x512xbf16>, vector<16x512xf32> -> vector<16x512xf32>
    %139 = vector.broadcast %111 : vector<16x1xf32> to vector<16x512xf32>
    %140 = arith.addf %138, %139 : vector<16x512xf32>
    %cst_49 = arith.constant 0.000000e+00 : f32
    %141 = vector.broadcast %cst_49 : f32 to vector<16x512xf32>
    %142 = arith.maximumf %140, %141 : vector<16x512xf32>
    %143 = arith.addf %142, %109 : vector<16x512xf32>
    %144 = vector.extract_strided_slice %143 {offsets = [0, 0], sizes = [16, 256], strides = [1, 1]} : vector<16x512xf32> to vector<16x256xf32>
    %cst_50 = arith.constant dense<0xFF800000> : vector<16xf32>
    %145 = vector.multi_reduction <maximumf>, %144, %cst_50 [1] : vector<16x256xf32> to vector<16xf32>
    %146 = vector.shape_cast %145 : vector<16xf32> to vector<16x1xf32>
    %147 = vector.extract_strided_slice %143 {offsets = [0, 256], sizes = [16, 256], strides = [1, 1]} : vector<16x512xf32> to vector<16x256xf32>
    %cst_51 = arith.constant dense<0xFF800000> : vector<16xf32>
    %148 = vector.multi_reduction <maximumf>, %147, %cst_51 [1] : vector<16x256xf32> to vector<16xf32>
    %149 = vector.shape_cast %148 : vector<16xf32> to vector<16x1xf32>
    %150 = tpu.concatenate %146, %149 in 1 : vector<16x1xf32>, vector<16x1xf32> -> vector<16x2xf32>
    %151 = tpu.transpose %150, [1, 0] : vector<16x2xf32> -> vector<2x16xf32>
    %c0_52 = arith.constant 0 : index
    %c0_53 = arith.constant 0 : index
    %152 = vector.load %arg12[%c0_52, %c0_53] : memref<16x32xf32, #tpu.memory_space<vmem>>, vector<16x32xf32>
    %c0_54 = arith.constant 0 : index
    %c0_55 = arith.constant 0 : index
    %153 = vector.load %arg13[%c0_54, %c0_55] : memref<1x32xf32, #tpu.memory_space<vmem>>, vector<1x32xf32>
    %cst_56 = arith.constant dense<0.000000e+00> : vector<2x32xf32>
    %154 = tpu.matmul %151, %152, %cst_56 {dimension_numbers = #tpu.dot_dimension_numbers<[1], [0], [0], [1], [0, 0, 1, 1], [], []>} : vector<2x16xf32>, vector<16x32xf32>, vector<2x32xf32> -> vector<2x32xf32>
    %155 = vector.broadcast %153 : vector<1x32xf32> to vector<2x32xf32>
    %156 = arith.addf %154, %155 : vector<2x32xf32>
    %cst_57 = arith.constant 0.000000e+00 : f32
    %157 = vector.broadcast %cst_57 : f32 to vector<2x32xf32>
    %158 = arith.maximumf %156, %157 : vector<2x32xf32>
    %c0_58 = arith.constant 0 : index
    %c0_59 = arith.constant 0 : index
    %159 = vector.load %arg14[%c0_58, %c0_59] : memref<32x32xf32, #tpu.memory_space<vmem>>, vector<32x32xf32>
    %c0_60 = arith.constant 0 : index
    %c0_61 = arith.constant 0 : index
    %160 = vector.load %arg15[%c0_60, %c0_61] : memref<1x32xf32, #tpu.memory_space<vmem>>, vector<1x32xf32>
    %cst_62 = arith.constant dense<0.000000e+00> : vector<2x32xf32>
    %161 = tpu.matmul %158, %159, %cst_62 {dimension_numbers = #tpu.dot_dimension_numbers<[1], [0], [0], [1], [0, 0, 1, 1], [], []>} : vector<2x32xf32>, vector<32x32xf32>, vector<2x32xf32> -> vector<2x32xf32>
    %162 = vector.broadcast %160 : vector<1x32xf32> to vector<2x32xf32>
    %163 = arith.addf %161, %162 : vector<2x32xf32>
    %cst_63 = arith.constant 0.000000e+00 : f32
    %164 = vector.broadcast %cst_63 : f32 to vector<2x32xf32>
    %165 = arith.maximumf %163, %164 : vector<2x32xf32>
    %c0_64 = arith.constant 0 : index
    %c0_65 = arith.constant 0 : index
    %166 = vector.load %arg2[%c0_64, %c0_65] : memref<2x32xf32, #tpu.memory_space<vmem>>, vector<2x32xf32>
    %c0_66 = arith.constant 0 : index
    %c0_67 = arith.constant 0 : index
    %167 = vector.load %arg16[%c0_66, %c0_67] : memref<32x96xf32, #tpu.memory_space<vmem>>, vector<32x96xf32>
    %cst_68 = arith.constant dense<0.000000e+00> : vector<2x96xf32>
    %168 = tpu.matmul %165, %167, %cst_68 {dimension_numbers = #tpu.dot_dimension_numbers<[1], [0], [0], [1], [0, 0, 1, 1], [], []>} : vector<2x32xf32>, vector<32x96xf32>, vector<2x96xf32> -> vector<2x96xf32>
    %c0_69 = arith.constant 0 : index
    %c0_70 = arith.constant 0 : index
    %169 = vector.load %arg18[%c0_69, %c0_70] : memref<1x96xf32, #tpu.memory_space<vmem>>, vector<1x96xf32>
    %170 = vector.broadcast %169 : vector<1x96xf32> to vector<2x96xf32>
    %171 = arith.addf %168, %170 : vector<2x96xf32>
    %c0_71 = arith.constant 0 : index
    %c0_72 = arith.constant 0 : index
    %172 = vector.load %arg17[%c0_71, %c0_72] : memref<32x96xf32, #tpu.memory_space<vmem>>, vector<32x96xf32>
    %cst_73 = arith.constant dense<0.000000e+00> : vector<2x96xf32>
    %173 = tpu.matmul %166, %172, %cst_73 {dimension_numbers = #tpu.dot_dimension_numbers<[1], [0], [0], [1], [0, 0, 1, 1], [], []>} : vector<2x32xf32>, vector<32x96xf32>, vector<2x96xf32> -> vector<2x96xf32>
    %c0_74 = arith.constant 0 : index
    %c0_75 = arith.constant 0 : index
    %174 = vector.load %arg19[%c0_74, %c0_75] : memref<1x96xf32, #tpu.memory_space<vmem>>, vector<1x96xf32>
    %175 = vector.broadcast %174 : vector<1x96xf32> to vector<2x96xf32>
    %176 = arith.addf %173, %175 : vector<2x96xf32>
    %177 = vector.extract_strided_slice %171 {offsets = [0, 0], sizes = [2, 32], strides = [1, 1]} : vector<2x96xf32> to vector<2x32xf32>
    %178 = vector.extract_strided_slice %176 {offsets = [0, 0], sizes = [2, 32], strides = [1, 1]} : vector<2x96xf32> to vector<2x32xf32>
    %179 = arith.addf %177, %178 : vector<2x32xf32>
    %180 = arith.negf %179 : vector<2x32xf32>
    %181 = math.exp %180 : vector<2x32xf32>
    %cst_76 = arith.constant 1.000000e+00 : f32
    %182 = vector.broadcast %cst_76 : f32 to vector<2x32xf32>
    %183 = arith.addf %182, %181 : vector<2x32xf32>
    %184 = arith.divf %182, %183 : vector<2x32xf32>
    %185 = vector.extract_strided_slice %171 {offsets = [0, 32], sizes = [2, 32], strides = [1, 1]} : vector<2x96xf32> to vector<2x32xf32>
    %186 = vector.extract_strided_slice %176 {offsets = [0, 32], sizes = [2, 32], strides = [1, 1]} : vector<2x96xf32> to vector<2x32xf32>
    %187 = arith.addf %185, %186 : vector<2x32xf32>
    %188 = arith.negf %187 : vector<2x32xf32>
    %189 = math.exp %188 : vector<2x32xf32>
    %cst_77 = arith.constant 1.000000e+00 : f32
    %190 = vector.broadcast %cst_77 : f32 to vector<2x32xf32>
    %191 = arith.addf %190, %189 : vector<2x32xf32>
    %192 = arith.divf %190, %191 : vector<2x32xf32>
    %193 = vector.extract_strided_slice %171 {offsets = [0, 64], sizes = [2, 32], strides = [1, 1]} : vector<2x96xf32> to vector<2x32xf32>
    %194 = vector.extract_strided_slice %176 {offsets = [0, 64], sizes = [2, 32], strides = [1, 1]} : vector<2x96xf32> to vector<2x32xf32>
    %195 = arith.mulf %184, %194 : vector<2x32xf32>
    %196 = arith.addf %193, %195 : vector<2x32xf32>
    %197 = math.tanh %196 : vector<2x32xf32>
    %cst_78 = arith.constant 1.000000e+00 : f32
    %198 = vector.broadcast %cst_78 : f32 to vector<2x32xf32>
    %199 = arith.subf %198, %192 : vector<2x32xf32>
    %200 = arith.mulf %199, %197 : vector<2x32xf32>
    %201 = arith.mulf %192, %166 : vector<2x32xf32>
    %202 = arith.addf %200, %201 : vector<2x32xf32>
    %c0_79 = arith.constant 0 : index
    %c0_80 = arith.constant 0 : index
    %203 = vector.load %arg20[%c0_79, %c0_80] : memref<32x5xf32, #tpu.memory_space<vmem>>, vector<32x5xf32>
    %cst_81 = arith.constant dense<0.000000e+00> : vector<2x5xf32>
    %204 = tpu.matmul %202, %203, %cst_81 {dimension_numbers = #tpu.dot_dimension_numbers<[1], [0], [0], [1], [0, 0, 1, 1], [], []>} : vector<2x32xf32>, vector<32x5xf32>, vector<2x5xf32> -> vector<2x5xf32>
    %c0_82 = arith.constant 0 : index
    %c0_83 = arith.constant 0 : index
    %205 = vector.load %arg21[%c0_82, %c0_83] : memref<1x5xf32, #tpu.memory_space<vmem>>, vector<1x5xf32>
    %206 = vector.broadcast %205 : vector<1x5xf32> to vector<2x5xf32>
    %207 = arith.addf %204, %206 : vector<2x5xf32>
    %208 = vector.extract_strided_slice %207 {offsets = [0, 0], sizes = [2, 1], strides = [1, 1]} : vector<2x5xf32> to vector<2x1xf32>
    %209 = vector.extract_strided_slice %207 {offsets = [0, 1], sizes = [2, 4], strides = [1, 1]} : vector<2x5xf32> to vector<2x4xf32>
    %cst_84 = arith.constant dense<0xFF800000> : vector<2xf32>
    %210 = vector.multi_reduction <maximumf>, %209, %cst_84 [1] : vector<2x4xf32> to vector<2xf32>
    %211 = vector.shape_cast %210 : vector<2xf32> to vector<2x1xf32>
    %212 = vector.broadcast %211 : vector<2x1xf32> to vector<2x4xf32>
    %213 = arith.subf %209, %212 : vector<2x4xf32>
    %214 = math.exp %213 : vector<2x4xf32>
    %cst_85 = arith.constant dense<0.000000e+00> : vector<2xf32>
    %215 = vector.multi_reduction <add>, %214, %cst_85 [1] : vector<2x4xf32> to vector<2xf32>
    %216 = vector.shape_cast %215 : vector<2xf32> to vector<2x1xf32>
    %217 = vector.broadcast %216 : vector<2x1xf32> to vector<2x4xf32>
    %218 = arith.divf %214, %217 : vector<2x4xf32>
    %cst_86 = arith.constant 0.000000e+00 : f32
    %219 = vector.broadcast %cst_86 : f32 to vector<2x128xf32>
    %c0_87 = arith.constant 0 : index
    %c0_88 = arith.constant 0 : index
    %220 = vector.load %arg22[%c0_87, %c0_88] : memref<2x128xf32, #tpu.memory_space<vmem>>, vector<2x128xf32>
    tpu.vector_store %arg22[%c0_87, %c0_88], %219 {strides = array<i32>} : memref<2x128xf32, #tpu.memory_space<vmem>>, vector<2x128xf32>,
    %c0_89 = arith.constant 0 : index
    %c0_90 = arith.constant 0 : index
    %221 = vector.load %arg22[%c0_89, %c0_90] : memref<2x128xf32, #tpu.memory_space<vmem>>, vector<2x32xf32>
    tpu.vector_store %arg22[%c0_89, %c0_90], %202 {strides = array<i32>} : memref<2x128xf32, #tpu.memory_space<vmem>>, vector<2x32xf32>,
    %c0_91 = arith.constant 0 : index
    %c32 = arith.constant 32 : index
    %222 = vector.load %arg22[%c0_91, %c32] : memref<2x128xf32, #tpu.memory_space<vmem>>, vector<2x1xf32>
    tpu.vector_store %arg22[%c0_91, %c32], %208 {strides = array<i32>} : memref<2x128xf32, #tpu.memory_space<vmem>>, vector<2x1xf32>,
    %c0_92 = arith.constant 0 : index
    %c33 = arith.constant 33 : index
    %223 = vector.load %arg22[%c0_92, %c33] : memref<2x128xf32, #tpu.memory_space<vmem>>, vector<2x4xf32>
    tpu.vector_store %arg22[%c0_92, %c33], %218 {strides = array<i32>} : memref<2x128xf32, #tpu.memory_space<vmem>>, vector<2x4xf32>,
    return
  }
  func.func @transform_0(%arg0: i32) -> (i32, i32) {
    %c0_i32 = arith.constant 0 : i32
    %c0_i32_0 = arith.constant 0 : i32
    return %c0_i32, %arg0 : i32, i32
  }
  func.func @transform_1(%arg0: i32) -> (i32, i32) {
    %c0_i32 = arith.constant 0 : i32
    %c0_i32_0 = arith.constant 0 : i32
    return %arg0, %c0_i32 : i32, i32
  }
  func.func @transform_2(%arg0: i32) -> (i32, i32) {
    %c0_i32 = arith.constant 0 : i32
    %c0_i32_0 = arith.constant 0 : i32
    %c0_i32_1 = arith.constant 0 : i32
    return %c0_i32, %c0_i32_0 : i32, i32
  }
  func.func @transform_3(%arg0: i32) -> (i32, i32) {
    %c0_i32 = arith.constant 0 : i32
    %c0_i32_0 = arith.constant 0 : i32
    %c0_i32_1 = arith.constant 0 : i32
    return %c0_i32, %c0_i32_0 : i32, i32
  }
  func.func @transform_4(%arg0: i32) -> (i32, i32) {
    %c0_i32 = arith.constant 0 : i32
    %c0_i32_0 = arith.constant 0 : i32
    %c0_i32_1 = arith.constant 0 : i32
    return %c0_i32, %c0_i32_0 : i32, i32
  }
  func.func @transform_5(%arg0: i32) -> (i32, i32) {
    %c0_i32 = arith.constant 0 : i32
    %c0_i32_0 = arith.constant 0 : i32
    %c0_i32_1 = arith.constant 0 : i32
    return %c0_i32, %c0_i32_0 : i32, i32
  }
  func.func @transform_6(%arg0: i32) -> (i32, i32) {
    %c0_i32 = arith.constant 0 : i32
    %c0_i32_0 = arith.constant 0 : i32
    %c0_i32_1 = arith.constant 0 : i32
    return %c0_i32, %c0_i32_0 : i32, i32
  }
  func.func @transform_7(%arg0: i32) -> (i32, i32) {
    %c0_i32 = arith.constant 0 : i32
    %c0_i32_0 = arith.constant 0 : i32
    %c0_i32_1 = arith.constant 0 : i32
    return %c0_i32, %c0_i32_0 : i32, i32
  }
  func.func @transform_8(%arg0: i32) -> (i32, i32) {
    %c0_i32 = arith.constant 0 : i32
    %c0_i32_0 = arith.constant 0 : i32
    %c0_i32_1 = arith.constant 0 : i32
    return %c0_i32, %c0_i32_0 : i32, i32
  }
  func.func @transform_9(%arg0: i32) -> (i32, i32) {
    %c0_i32 = arith.constant 0 : i32
    %c0_i32_0 = arith.constant 0 : i32
    %c0_i32_1 = arith.constant 0 : i32
    return %c0_i32, %c0_i32_0 : i32, i32
  }
  func.func @transform_10(%arg0: i32) -> (i32, i32) {
    %c0_i32 = arith.constant 0 : i32
    %c0_i32_0 = arith.constant 0 : i32
    %c0_i32_1 = arith.constant 0 : i32
    return %c0_i32, %c0_i32_0 : i32, i32
  }
  func.func @transform_11(%arg0: i32) -> (i32, i32) {
    %c0_i32 = arith.constant 0 : i32
    %c0_i32_0 = arith.constant 0 : i32
    %c0_i32_1 = arith.constant 0 : i32
    return %c0_i32, %c0_i32_0 : i32, i32
  }
  func.func @transform_12(%arg0: i32) -> (i32, i32) {
    %c0_i32 = arith.constant 0 : i32
    %c0_i32_0 = arith.constant 0 : i32
    %c0_i32_1 = arith.constant 0 : i32
    return %c0_i32, %c0_i32_0 : i32, i32
  }
  func.func @transform_13(%arg0: i32) -> (i32, i32) {
    %c0_i32 = arith.constant 0 : i32
    %c0_i32_0 = arith.constant 0 : i32
    %c0_i32_1 = arith.constant 0 : i32
    return %c0_i32, %c0_i32_0 : i32, i32
  }
  func.func @transform_14(%arg0: i32) -> (i32, i32) {
    %c0_i32 = arith.constant 0 : i32
    %c0_i32_0 = arith.constant 0 : i32
    %c0_i32_1 = arith.constant 0 : i32
    return %c0_i32, %c0_i32_0 : i32, i32
  }
  func.func @transform_15(%arg0: i32) -> (i32, i32) {
    %c0_i32 = arith.constant 0 : i32
    %c0_i32_0 = arith.constant 0 : i32
    %c0_i32_1 = arith.constant 0 : i32
    return %c0_i32, %c0_i32_0 : i32, i32
  }
  func.func @transform_16(%arg0: i32) -> (i32, i32) {
    %c0_i32 = arith.constant 0 : i32
    %c0_i32_0 = arith.constant 0 : i32
    %c0_i32_1 = arith.constant 0 : i32
    return %c0_i32, %c0_i32_0 : i32, i32
  }
  func.func @transform_17(%arg0: i32) -> (i32, i32) {
    %c0_i32 = arith.constant 0 : i32
    %c0_i32_0 = arith.constant 0 : i32
    %c0_i32_1 = arith.constant 0 : i32
    return %c0_i32, %c0_i32_0 : i32, i32
  }
  func.func @transform_18(%arg0: i32) -> (i32, i32) {
    %c0_i32 = arith.constant 0 : i32
    %c0_i32_0 = arith.constant 0 : i32
    %c0_i32_1 = arith.constant 0 : i32
    return %c0_i32, %c0_i32_0 : i32, i32
  }
  func.func @transform_19(%arg0: i32) -> (i32, i32) {
    %c0_i32 = arith.constant 0 : i32
    %c0_i32_0 = arith.constant 0 : i32
    %c0_i32_1 = arith.constant 0 : i32
    return %c0_i32, %c0_i32_0 : i32, i32
  }
  func.func @transform_20(%arg0: i32) -> (i32, i32) {
    %c0_i32 = arith.constant 0 : i32
    %c0_i32_0 = arith.constant 0 : i32
    %c0_i32_1 = arith.constant 0 : i32
    return %c0_i32, %c0_i32_0 : i32, i32
  }
  func.func @transform_21(%arg0: i32) -> (i32, i32) {
    %c0_i32 = arith.constant 0 : i32
    %c0_i32_0 = arith.constant 0 : i32
    return %arg0, %c0_i32 : i32, i32
  }
}

</mosaic_0001>

<llo_original>
// kernel: tpu_custom_call.1
$region0: #{tpu_custom_call.1}
  #allocation0 [shape = 'u32[]', space=smem, size = 0x4, offset = 0x4, fixed_abs, tag = 'smem constant byte address 0x4 - core index']
  #allocation1 [shape = 'u32[144,128]{1,0:T(1,128)}', space=vmem, size = 0x12000, scoped, tag = 'internal scratch']
  %s0 = inlined_call_operand.vmem [shape: f32[8,512], index: 0, kind: input, shape index: {}]
  %s1 = inlined_call_operand.hbm [shape: f32[2,32], index: 1, kind: input, shape index: {}]
  %s2 = inlined_call_operand.vmem [shape: f32[9,512], index: 2, kind: input, shape index: {}]
  %s3 = inlined_call_operand.hbm [shape: bf16[16,72], index: 3, kind: input, shape index: {}]
  %s4 = inlined_call_operand.vmem [shape: f32[16,1], index: 4, kind: input, shape index: {}]
  %s5 = inlined_call_operand.hbm [shape: bf16[16,144], index: 5, kind: input, shape index: {}]
  %s6 = inlined_call_operand.vmem [shape: f32[16,1], index: 6, kind: input, shape index: {}]
  %s7 = inlined_call_operand.hbm [shape: bf16[16,144], index: 7, kind: input, shape index: {}]
  %s8 = inlined_call_operand.vmem [shape: f32[16,1], index: 8, kind: input, shape index: {}]
  %s9 = inlined_call_operand.hbm [shape: bf16[16,144], index: 9, kind: input, shape index: {}]
  %s10 = inlined_call_operand.vmem [shape: f32[16,1], index: 10, kind: input, shape index: {}]
  %s11 = inlined_call_operand.hbm [shape: f32[16,32], index: 11, kind: input, shape index: {}]
  %s12 = inlined_call_operand.hbm [shape: f32[1,32], index: 12, kind: input, shape index: {}]
  %s13 = inlined_call_operand.vmem [shape: f32[32,32], index: 13, kind: input, shape index: {}]
  %s14 = inlined_call_operand.hbm [shape: f32[1,32], index: 14, kind: input, shape index: {}]
  %s15 = inlined_call_operand.vmem [shape: f32[32,96], index: 15, kind: input, shape index: {}]
  %s16 = inlined_call_operand.hbm [shape: f32[32,96], index: 16, kind: input, shape index: {}]
  %s17 = inlined_call_operand.vmem [shape: f32[1,96], index: 17, kind: input, shape index: {}]
  %s18 = inlined_call_operand.vmem [shape: f32[1,96], index: 18, kind: input, shape index: {}]
  %s19 = inlined_call_operand.vmem [shape: f32[32,5], index: 19, kind: input, shape index: {}]
  %s20 = inlined_call_operand.vmem [shape: f32[1,5], index: 20, kind: input, shape index: {}]
  %s21 = inlined_call_operand.hbm [shape: f32[2,128], index: 21, kind: output, shape index: {}]
  %s22 = sld [smem:[#allocation0]]
  $region130: #{tpu_custom_call.1} parent=0
    _
  %s24 = ssub.s32 1, %s22
  %s25 = scalar_select 0, %s24, %s22
  $region1: #{tpu_custom_call.1} parent=0
    #allocation2 [shape = 'u8[1024]{0}', space=vmem, size = 0x400, scoped, tag = 'input window, operand 1, single buffered']
    #allocation3 [shape = 's32[1]{0}', space=sflag, size = 0x4, scoped, tag = 'scoped memory for tpu_custom_call.1']
    #allocation4 [shape = 's32[1]{0}', space=sflag, size = 0x4, scoped, tag = 'scoped memory for tpu_custom_call.1']
    #allocation5 [shape = 'u8[4096]{0}', space=vmem, size = 0x1000, scoped, tag = 'input window, operand 3, single buffered']
    #allocation6 [shape = 's32[1]{0}', space=sflag, size = 0x4, scoped, tag = 'scoped memory for tpu_custom_call.1']
    #allocation7 [shape = 'u8[8192]{0}', space=vmem, size = 0x2000, scoped, tag = 'input window, operand 5, single buffered']
    #allocation8 [shape = 'u8[8192]{0}', space=vmem, size = 0x2000, scoped, tag = 'input window, operand 7, single buffered']
    #allocation9 [shape = 's32[1]{0}', space=sflag, size = 0x4, scoped, tag = 'scoped memory for tpu_custom_call.1']
    #allocation10 [shape = 'u8[8192]{0}', space=vmem, size = 0x2000, scoped, tag = 'input window, operand 9, single buffered']
    #allocation11 [shape = 'u8[8192]{0}', space=vmem, size = 0x2000, scoped, tag = 'input window, operand 11, single buffered']
    #allocation12 [shape = 's32[1]{0}', space=sflag, size = 0x4, scoped, tag = 'scoped memory for tpu_custom_call.1']
    #allocation13 [shape = 'u8[512]{0}', space=vmem, size = 0x400, scoped, tag = 'input window, operand 12, single buffered']
    #allocation14 [shape = 'u8[512]{0}', space=vmem, size = 0x400, scoped, tag = 'input window, operand 14, single buffered']
    #allocation15 [shape = 's32[1]{0}', space=sflag, size = 0x4, scoped, tag = 'scoped memory for tpu_custom_call.1']
    #allocation16 [shape = 'u8[16384]{0}', space=vmem, size = 0x4000, scoped, tag = 'input window, operand 16, single buffered']
    #allocation17 [shape = 'u8[1024]{0}', space=vmem, size = 0x400, scoped, tag = 'output window, operand 0, single buffered']
    %26 = vsyncpa [#allocation3], 0
    %27 = vsyncpa [#allocation6], 0
    %28 = vsyncpa [#allocation9], 0
    %29 = vsyncpa [#allocation12], 0
    %30 = vsyncpa [#allocation15], 0
    %31 = vsyncpa [#allocation4], 0
    // Predicated region
    $region2: #{tpu_custom_call.1} parent=1 // pred_check
      _
    $region3: #{tpu_custom_call.1} parent=1 // pred_check_branch
      %33 = sbr.rel (0) target = $region5
    $region4: #{tpu_custom_call.1} parent=1 // pred_region
      _
    $region5: #{tpu_custom_call.1} parent=1 // pred_fallthru
      _
    // Predicated region
    $region6: #{tpu_custom_call.1} parent=1 // pred_check
      _
    $region7: #{tpu_custom_call.1} parent=1 // pred_check_branch
      %35 = sbr.rel (0) target = $region9
    $region8: #{tpu_custom_call.1} parent=1 // pred_region
      %s37 = ssub.s32 32, 32
      %38 = vsyncadd [#allocation3], %s37
      %s40 = sshll.u32 [#allocation2], 4
      %s41 = int_to_ptr.vmem [resolvable:$true] %s40
      %43 = dma.hbm_to_vmem [thread:$0]  %s1, 32, %s41, [#allocation3]
    $region9: #{tpu_custom_call.1} parent=1 // pred_fallthru
      _
    // Predicated region
    $region10: #{tpu_custom_call.1} parent=1 // pred_check
      _
    $region11: #{tpu_custom_call.1} parent=1 // pred_check_branch
      %45 = sbr.rel (0) target = $region13
    $region12: #{tpu_custom_call.1} parent=1 // pred_region
      _
    $region13: #{tpu_custom_call.1} parent=1 // pred_fallthru
      _
    // Predicated region
    $region14: #{tpu_custom_call.1} parent=1 // pred_check
      _
    $region15: #{tpu_custom_call.1} parent=1 // pred_check_branch
      %47 = sbr.rel (0) target = $region17
    $region16: #{tpu_custom_call.1} parent=1 // pred_region
      %s49 = ssub.s32 128, 128
      %50 = vsyncadd [#allocation6], %s49
      %s51 = sshll.u32 [#allocation5], 4
      %s52 = int_to_ptr.vmem [resolvable:$true] %s51
      %57 = dma.hbm_to_vmem [thread:$0]  %s3, 128, %s52, [#allocation6], 64, 64, 4
    $region17: #{tpu_custom_call.1} parent=1 // pred_fallthru
      _
    // Predicated region
    $region18: #{tpu_custom_call.1} parent=1 // pred_check
      _
    $region19: #{tpu_custom_call.1} parent=1 // pred_check_branch
      %59 = sbr.rel (0) target = $region21
    $region20: #{tpu_custom_call.1} parent=1 // pred_region
      _
    $region21: #{tpu_custom_call.1} parent=1 // pred_fallthru
      _
    // Predicated region
    $region22: #{tpu_custom_call.1} parent=1 // pred_check
      _
    $region23: #{tpu_custom_call.1} parent=1 // pred_check_branch
      %61 = sbr.rel (0) target = $region25
    $region24: #{tpu_custom_call.1} parent=1 // pred_region
      %s63 = ssub.s32 256, 256
      %64 = vsyncadd [#allocation6], %s63
      %s65 = sshll.u32 [#allocation7], 4
      %s66 = int_to_ptr.vmem [resolvable:$true] %s65
      %71 = dma.hbm_to_vmem [thread:$0]  %s5, 256, %s66, [#allocation6], 128, 128, 8
    $region25: #{tpu_custom_call.1} parent=1 // pred_fallthru
      _
    // Predicated region
    $region26: #{tpu_custom_call.1} parent=1 // pred_check
      _
    $region27: #{tpu_custom_call.1} parent=1 // pred_check_branch
      %73 = sbr.rel (0) target = $region29
    $region28: #{tpu_custom_call.1} parent=1 // pred_region
      _
    $region29: #{tpu_custom_call.1} parent=1 // pred_fallthru
      _
    // Predicated region
    $region30: #{tpu_custom_call.1} parent=1 // pred_check
      _
    $region31: #{tpu_custom_call.1} parent=1 // pred_check_branch
      %75 = sbr.rel (0) target = $region33
    $region32: #{tpu_custom_call.1} parent=1 // pred_region
      %s77 = ssub.s32 256, 256
      %78 = vsyncadd [#allocation9], %s77
      %s79 = sshll.u32 [#allocation8], 4
      %s80 = int_to_ptr.vmem [resolvable:$true] %s79
      %85 = dma.hbm_to_vmem [thread:$0]  %s7, 256, %s80, [#allocation9], 128, 128, 8
    $region33: #{tpu_custom_call.1} parent=1 // pred_fallthru
      _
    // Predicated region
    $region34: #{tpu_custom_call.1} parent=1 // pred_check
      _
    $region35: #{tpu_custom_call.1} parent=1 // pred_check_branch
      %87 = sbr.rel (0) target = $region37
    $region36: #{tpu_custom_call.1} parent=1 // pred_region
      _
    $region37: #{tpu_custom_call.1} parent=1 // pred_fallthru
      _
    // Predicated region
    $region38: #{tpu_custom_call.1} parent=1 // pred_check
      _
    $region39: #{tpu_custom_call.1} parent=1 // pred_check_branch
      %89 = sbr.rel (0) target = $region41
    $region40: #{tpu_custom_call.1} parent=1 // pred_region
      %s91 = ssub.s32 256, 256
      %92 = vsyncadd [#allocation9], %s91
      %s93 = sshll.u32 [#allocation10], 4
      %s94 = int_to_ptr.vmem [resolvable:$true] %s93
      %99 = dma.hbm_to_vmem [thread:$0]  %s9, 256, %s94, [#allocation9], 128, 128, 8
    $region41: #{tpu_custom_call.1} parent=1 // pred_fallthru
      _
    // Predicated region
    $region42: #{tpu_custom_call.1} parent=1 // pred_check
      _
    $region43: #{tpu_custom_call.1} parent=1 // pred_check_branch
      %101 = sbr.rel (0) target = $region45
    $region44: #{tpu_custom_call.1} parent=1 // pred_region
      _
    $region45: #{tpu_custom_call.1} parent=1 // pred_fallthru
      _
    // Predicated region
    $region46: #{tpu_custom_call.1} parent=1 // pred_check
      _
    $region47: #{tpu_custom_call.1} parent=1 // pred_check_branch
      %103 = sbr.rel (0) target = $region49
    $region48: #{tpu_custom_call.1} parent=1 // pred_region
      %s105 = ssub.s32 256, 256
      %106 = vsyncadd [#allocation12], %s105
      %s107 = sshll.u32 [#allocation11], 4
      %s108 = int_to_ptr.vmem [resolvable:$true] %s107
      %113 = dma.hbm_to_vmem [thread:$0]  %s11, 256, %s108, [#allocation12], 128, 128, 8
    $region49: #{tpu_custom_call.1} parent=1 // pred_fallthru
      _
    // Predicated region
    $region50: #{tpu_custom_call.1} parent=1 // pred_check
      _
    $region51: #{tpu_custom_call.1} parent=1 // pred_check_branch
      %115 = sbr.rel (0) target = $region53
    $region52: #{tpu_custom_call.1} parent=1 // pred_region
      %s117 = ssub.s32 16, 16
      %118 = vsyncadd [#allocation12], %s117
      %s120 = sshll.u32 [#allocation13], 4
      %s121 = int_to_ptr.vmem [resolvable:$true] %s120
      %123 = dma.hbm_to_vmem [thread:$0]  %s12, 16, %s121, [#allocation12]
    $region53: #{tpu_custom_call.1} parent=1 // pred_fallthru
      _
    // Predicated region
    $region54: #{tpu_custom_call.1} parent=1 // pred_check
      _
    $region55: #{tpu_custom_call.1} parent=1 // pred_check_branch
      %125 = sbr.rel (0) target = $region57
    $region56: #{tpu_custom_call.1} parent=1 // pred_region
      _
    $region57: #{tpu_custom_call.1} parent=1 // pred_fallthru
      _
    // Predicated region
    $region58: #{tpu_custom_call.1} parent=1 // pred_check
      _
    $region59: #{tpu_custom_call.1} parent=1 // pred_check_branch
      %127 = sbr.rel (0) target = $region61
    $region60: #{tpu_custom_call.1} parent=1 // pred_region
      %s129 = ssub.s32 16, 16
      %130 = vsyncadd [#allocation15], %s129
      %s132 = sshll.u32 [#allocation14], 4
      %s133 = int_to_ptr.vmem [resolvable:$true] %s132
      %135 = dma.hbm_to_vmem [thread:$0]  %s14, 16, %s133, [#allocation15]
    $region61: #{tpu_custom_call.1} parent=1 // pred_fallthru
      _
    // Predicated region
    $region62: #{tpu_custom_call.1} parent=1 // pred_check
      _
    $region63: #{tpu_custom_call.1} parent=1 // pred_check_branch
      %137 = sbr.rel (0) target = $region65
    $region64: #{tpu_custom_call.1} parent=1 // pred_region
      _
    $region65: #{tpu_custom_call.1} parent=1 // pred_fallthru
      _
    // Predicated region
    $region66: #{tpu_custom_call.1} parent=1 // pred_check
      _
    $region67: #{tpu_custom_call.1} parent=1 // pred_check_branch
      %139 = sbr.rel (0) target = $region69
    $region68: #{tpu_custom_call.1} parent=1 // pred_region
      %s141 = ssub.s32 512, 512
      %142 = vsyncadd [#allocation15], %s141
      %s143 = sshll.u32 [#allocation16], 4
      %s144 = int_to_ptr.vmem [resolvable:$true] %s143
      %149 = dma.hbm_to_vmem [thread:$0]  %s16, 512, %s144, [#allocation15], 128, 128, 8
    $region69: #{tpu_custom_call.1} parent=1 // pred_fallthru
      _
    // Predicated region
    $region70: #{tpu_custom_call.1} parent=1 // pred_check
      _
    $region71: #{tpu_custom_call.1} parent=1 // pred_check_branch
      %151 = sbr.rel (0) target = $region73
    $region72: #{tpu_custom_call.1} parent=1 // pred_region
      _
    $region73: #{tpu_custom_call.1} parent=1 // pred_fallthru
      _
    // Predicated region
    $region74: #{tpu_custom_call.1} parent=1 // pred_check
      _
    $region75: #{tpu_custom_call.1} parent=1 // pred_check_branch
      %153 = sbr.rel (0) target = $region77
    $region76: #{tpu_custom_call.1} parent=1 // pred_region
      _
    $region77: #{tpu_custom_call.1} parent=1 // pred_fallthru
      _
    // Predicated region
    $region78: #{tpu_custom_call.1} parent=1 // pred_check
      _
    $region79: #{tpu_custom_call.1} parent=1 // pred_check_branch
      %155 = sbr.rel (0) target = $region81
    $region80: #{tpu_custom_call.1} parent=1 // pred_region
      _
    $region81: #{tpu_custom_call.1} parent=1 // pred_fallthru
      _
    // Predicated region
    $region82: #{tpu_custom_call.1} parent=1 // pred_check
      _
    $region83: #{tpu_custom_call.1} parent=1 // pred_check_branch
      %157 = sbr.rel (0) target = $region85
    $region84: #{tpu_custom_call.1} parent=1 // pred_region
      _
    $region85: #{tpu_custom_call.1} parent=1 // pred_fallthru
      _
    // Predicated region
    $region86: #{tpu_custom_call.1} parent=1 // pred_check
      _
    $region87: #{tpu_custom_call.1} parent=1 // pred_check_branch
      %159 = sbr.rel (0) target = $region89
    $region88: #{tpu_custom_call.1} parent=1 // pred_region
      %160 = dma.done [#allocation3], 32
    $region89: #{tpu_custom_call.1} parent=1 // pred_fallthru
      _
    // Predicated region
    $region90: #{tpu_custom_call.1} parent=1 // pred_check
      _
    $region91: #{tpu_custom_call.1} parent=1 // pred_check_branch
      %162 = sbr.rel (0) target = $region93
    $region92: #{tpu_custom_call.1} parent=1 // pred_region
      %163 = dma.done [#allocation6], 128
    $region93: #{tpu_custom_call.1} parent=1 // pred_fallthru
      _
    // Predicated region
    $region94: #{tpu_custom_call.1} parent=1 // pred_check
      _
    $region95: #{tpu_custom_call.1} parent=1 // pred_check_branch
      %165 = sbr.rel (0) target = $region97
    $region96: #{tpu_custom_call.1} parent=1 // pred_region
      %166 = dma.done [#allocation6], 256
    $region97: #{tpu_custom_call.1} parent=1 // pred_fallthru
      _
    // Predicated region
    $region98: #{tpu_custom_call.1} parent=1 // pred_check
      _
    $region99: #{tpu_custom_call.1} parent=1 // pred_check_branch
      %168 = sbr.rel (0) target = $region101
    $region100: #{tpu_custom_call.1} parent=1 // pred_region
      %169 = dma.done [#allocation9], 256
    $region101: #{tpu_custom_call.1} parent=1 // pred_fallthru
      _
    // Predicated region
    $region102: #{tpu_custom_call.1} parent=1 // pred_check
      _
    $region103: #{tpu_custom_call.1} parent=1 // pred_check_branch
      %171 = sbr.rel (0) target = $region105
    $region104: #{tpu_custom_call.1} parent=1 // pred_region
      %172 = dma.done [#allocation9], 256
    $region105: #{tpu_custom_call.1} parent=1 // pred_fallthru
      _
    // Predicated region
    $region106: #{tpu_custom_call.1} parent=1 // pred_check
      _
    $region107: #{tpu_custom_call.1} parent=1 // pred_check_branch
      %174 = sbr.rel (0) target = $region109
    $region108: #{tpu_custom_call.1} parent=1 // pred_region
      %175 = dma.done [#allocation12], 256
    $region109: #{tpu_custom_call.1} parent=1 // pred_fallthru
      _
    // Predicated region
    $region110: #{tpu_custom_call.1} parent=1 // pred_check
      _
    $region111: #{tpu_custom_call.1} parent=1 // pred_check_branch
      %177 = sbr.rel (0) target = $region113
    $region112: #{tpu_custom_call.1} parent=1 // pred_region
      %178 = dma.done [#allocation12], 16
    $region113: #{tpu_custom_call.1} parent=1 // pred_fallthru
      _
    // Predicated region
    $region114: #{tpu_custom_call.1} parent=1 // pred_check
      _
    $region115: #{tpu_custom_call.1} parent=1 // pred_check_branch
      %180 = sbr.rel (0) target = $region117
    $region116: #{tpu_custom_call.1} parent=1 // pred_region
      %181 = dma.done [#allocation15], 16
    $region117: #{tpu_custom_call.1} parent=1 // pred_fallthru
      _
    // Predicated region
    $region118: #{tpu_custom_call.1} parent=1 // pred_check
      _
    $region119: #{tpu_custom_call.1} parent=1 // pred_check_branch
      %183 = sbr.rel (0) target = $region121
    $region120: #{tpu_custom_call.1} parent=1 // pred_region
      %184 = dma.done [#allocation15], 512
    $region121: #{tpu_custom_call.1} parent=1 // pred_fallthru
      _
    %v186 = vld [vmem:[%s2] sm:$0xff]
    %v187 = vld [vmem:[%s2 + $0x8] sm:$0xff]
    %v188 = vld [vmem:[%s2 + $0x10] sm:$0xff]
    %v189 = vld [vmem:[%s2 + $0x18] sm:$0xff]
    %v190 = vld [vmem:[%s2 + $0x20] sm:$0x1]
    %v191 = vld [vmem:[%s2 + $0x28] sm:$0x1]
    %v192 = vld [vmem:[%s2 + $0x30] sm:$0x1]
    %v193 = vld [vmem:[%s2 + $0x38] sm:$0x1]
    %v194 = vld [vmem:[%s0] sm:$0xff]
    %v195 = vld [vmem:[%s0 + $0x8] sm:$0xff]
    %v196 = vld [vmem:[%s0 + $0x10] sm:$0xff]
    %v197 = vld [vmem:[%s0 + $0x18] sm:$0xff]
    %v198 = vld [vmem:[#allocation5] sm:$0xf]
    %v199 = vld [vmem:[#allocation5 + $0x4] sm:$0xf]
    %v200 = vld [vmem:[%s4] sm:$0xff]
    %v201 = vld [vmem:[%s4 + $0x8] sm:$0xff]
    %202 = vrot.lane.b32.xlu0 %v194, 17
    %v203 = vpop.permute.xlu0 %202
    %204 = vrot.lane.b32.xlu0 %v195, 17
    %v205 = vpop.permute.xlu0 %204
    %206 = vrot.lane.b32.xlu0 %v196, 17
    %v207 = vpop.permute.xlu0 %206
    %208 = vrot.lane.b32.xlu0 %v197, 17
    %v209 = vpop.permute.xlu0 %208
    %v210 = vlaneseq
    %v211 = vand.u32 %v210, 127
    %vm212 = vcmp.lt.s32.totalorder %v211, 17
    %v213 = vsel %vm212, %v207, %v209
    %v214 = vsel %vm212, %v205, %v207
    %v215 = vsel %vm212, %v203, %v205
    %v216 = vsel %vm212, %v209, %v203
    %v217 = vlaneseq
    %v218 = vshrl.u32 %v217, 7
    %v219 = vsub.s32 0, %v218
    %v220 = vrot.slane %v186, %v219
    %v221 = vlaneseq
    %v222 = vshrl.u32 %v221, 7
    %v223 = vsub.s32 0, %v222
    %v224 = vrot.slane %v187, %v223
    %v225 = vlaneseq
    %v226 = vshrl.u32 %v225, 7
    %v227 = vsub.s32 0, %v226
    %v228 = vrot.slane %v188, %v227
    %v229 = vlaneseq
    %v230 = vshrl.u32 %v229, 7
    %v231 = vsub.s32 0, %v230
    %v232 = vrot.slane %v189, %v231
    %v233 = vmul.f32 %v220, %v216
    %v234 = vmul.f32 %v224, %v215
    %v235 = vmul.f32 %v228, %v214
    %v236 = vmul.f32 %v232, %v213
    %237 = vrot.lane.b32.xlu0 %v194, 16
    %v238 = vpop.permute.xlu0 %237
    %239 = vrot.lane.b32.xlu0 %v195, 16
    %v240 = vpop.permute.xlu0 %239
    %241 = vrot.lane.b32.xlu0 %v196, 16
    %v242 = vpop.permute.xlu0 %241
    %243 = vrot.lane.b32.xlu0 %v197, 16
    %v244 = vpop.permute.xlu0 %243
    %vm245 = vcmp.lt.s32.totalorder %v211, 16
    %v246 = vsel %vm245, %v242, %v244
    %v247 = vsel %vm245, %v240, %v242
    %v248 = vsel %vm245, %v238, %v240
    %v249 = vsel %vm245, %v244, %v238
    %v250 = vlaneseq
    %v251 = vshrl.u32 %v250, 7
    %v252 = vsub.s32 1, %v251
    %v253 = vrot.slane %v186, %v252
    %v254 = vlaneseq
    %v255 = vshrl.u32 %v254, 7
    %v256 = vsub.s32 1, %v255
    %v257 = vrot.slane %v187, %v256
    %v258 = vlaneseq
    %v259 = vshrl.u32 %v258, 7
    %v260 = vsub.s32 1, %v259
    %v261 = vrot.slane %v188, %v260
    %v262 = vlaneseq
    %v263 = vshrl.u32 %v262, 7
    %v264 = vsub.s32 1, %v263
    %v265 = vrot.slane %v189, %v264
    %v266 = vmul.f32 %v253, %v249
    %v267 = vmul.f32 %v257, %v248
    %v268 = vmul.f32 %v261, %v247
    %v269 = vmul.f32 %v265, %v246
    %270 = vrot.lane.b32.xlu0 %v194, 15
    %v271 = vpop.permute.xlu0 %270
    %272 = vrot.lane.b32.xlu0 %v195, 15
    %v273 = vpop.permute.xlu0 %272
    %274 = vrot.lane.b32.xlu0 %v196, 15
    %v275 = vpop.permute.xlu0 %274
    %276 = vrot.lane.b32.xlu0 %v197, 15
    %v277 = vpop.permute.xlu0 %276
    %vm278 = vcmp.lt.s32.totalorder %v211, 15
    %v279 = vsel %vm278, %v275, %v277
    %v280 = vsel %vm278, %v273, %v275
    %v281 = vsel %vm278, %v271, %v273
    %v282 = vsel %vm278, %v277, %v271
    %v283 = vlaneseq
    %v284 = vshrl.u32 %v283, 7
    %v285 = vsub.s32 2, %v284
    %v286 = vrot.slane %v186, %v285
    %v287 = vlaneseq
    %v288 = vshrl.u32 %v287, 7
    %v289 = vsub.s32 2, %v288
    %v290 = vrot.slane %v187, %v289
    %v291 = vlaneseq
    %v292 = vshrl.u32 %v291, 7
    %v293 = vsub.s32 2, %v292
    %v294 = vrot.slane %v188, %v293
    %v295 = vlaneseq
    %v296 = vshrl.u32 %v295, 7
    %v297 = vsub.s32 2, %v296
    %v298 = vrot.slane %v189, %v297
    %v299 = vmul.f32 %v286, %v282
    %v300 = vmul.f32 %v290, %v281
    %v301 = vmul.f32 %v294, %v280
    %v302 = vmul.f32 %v298, %v279
    %303 = vrot.lane.b32.xlu0 %v194, 1
    %v304 = vpop.permute.xlu0 %303
    %305 = vrot.lane.b32.xlu0 %v195, 1
    %v306 = vpop.permute.xlu0 %305
    %307 = vrot.lane.b32.xlu0 %v196, 1
    %v308 = vpop.permute.xlu0 %307
    %309 = vrot.lane.b32.xlu0 %v197, 1
    %v310 = vpop.permute.xlu0 %309
    %vm311 = vcmp.lt.s32.totalorder %v211, 1
    %v312 = vsel %vm311, %v308, %v310
    %v313 = vsel %vm311, %v306, %v308
    %v314 = vsel %vm311, %v304, %v306
    %v315 = vsel %vm311, %v310, %v304
    %v316 = vlaneseq
    %v317 = vshrl.u32 %v316, 7
    %v318 = vsub.s32 3, %v317
    %v319 = vrot.slane %v186, %v318
    %v320 = vlaneseq
    %v321 = vshrl.u32 %v320, 7
    %v322 = vsub.s32 3, %v321
    %v323 = vrot.slane %v187, %v322
    %v324 = vlaneseq
    %v325 = vshrl.u32 %v324, 7
    %v326 = vsub.s32 3, %v325
    %v327 = vrot.slane %v188, %v326
    %v328 = vlaneseq
    %v329 = vshrl.u32 %v328, 7
    %v330 = vsub.s32 3, %v329
    %v331 = vrot.slane %v189, %v330
    %v332 = vmul.f32 %v319, %v315
    %v333 = vmul.f32 %v323, %v314
    %v334 = vmul.f32 %v327, %v313
    %v335 = vmul.f32 %v331, %v312
    %336 = vrot.lane.b32.xlu0 %v194, 127
    %v337 = vpop.permute.xlu0 %336
    %338 = vrot.lane.b32.xlu0 %v195, 127
    %v339 = vpop.permute.xlu0 %338
    %340 = vrot.lane.b32.xlu0 %v196, 127
    %v341 = vpop.permute.xlu0 %340
    %342 = vrot.lane.b32.xlu0 %v197, 127
    %v343 = vpop.permute.xlu0 %342
    %vm344 = vcmp.lt.s32.totalorder %v211, 127
    %v345 = vsel %vm344, %v341, %v343
    %v346 = vsel %vm344, %v339, %v341
    %v347 = vsel %vm344, %v337, %v339
    %v348 = vsel %vm344, %v343, %v337
    %v349 = vlaneseq
    %v350 = vshrl.u32 %v349, 7
    %v351 = vsub.s32 5, %v350
    %v352 = vrot.slane %v186, %v351
    %v353 = vlaneseq
    %v354 = vshrl.u32 %v353, 7
    %v355 = vsub.s32 5, %v354
    %v356 = vrot.slane %v187, %v355
    %v357 = vlaneseq
    %v358 = vshrl.u32 %v357, 7
    %v359 = vsub.s32 5, %v358
    %v360 = vrot.slane %v188, %v359
    %v361 = vlaneseq
    %v362 = vshrl.u32 %v361, 7
    %v363 = vsub.s32 5, %v362
    %v364 = vrot.slane %v189, %v363
    %v365 = vmul.f32 %v352, %v347
    %v366 = vmul.f32 %v356, %v346
    %v367 = vmul.f32 %v360, %v345
    %v368 = vmul.f32 %v364, %v348
    %369 = vrot.lane.b32.xlu0 %v194, 113
    %v370 = vpop.permute.xlu0 %369
    %371 = vrot.lane.b32.xlu0 %v195, 113
    %v372 = vpop.permute.xlu0 %371
    %373 = vrot.lane.b32.xlu0 %v196, 113
    %v374 = vpop.permute.xlu0 %373
    %375 = vrot.lane.b32.xlu0 %v197, 113
    %v376 = vpop.permute.xlu0 %375
    %vm377 = vcmp.lt.s32.totalorder %v211, 113
    %v378 = vsel %vm377, %v374, %v376
    %v379 = vsel %vm377, %v372, %v374
    %v380 = vsel %vm377, %v370, %v372
    %v381 = vsel %vm377, %v376, %v370
    %v382 = vlaneseq
    %v383 = vshrl.u32 %v382, 7
    %v384 = vsub.s32 6, %v383
    %v385 = vrot.slane %v186, %v384
    %v386 = vlaneseq
    %v387 = vshrl.u32 %v386, 7
    %v388 = vsub.s32 6, %v387
    %v389 = vrot.slane %v187, %v388
    %v390 = vlaneseq
    %v391 = vshrl.u32 %v390, 7
    %v392 = vsub.s32 6, %v391
    %v393 = vrot.slane %v188, %v392
    %v394 = vlaneseq
    %v395 = vshrl.u32 %v394, 7
    %v396 = vsub.s32 6, %v395
    %v397 = vrot.slane %v189, %v396
    %v398 = vmul.f32 %v385, %v380
    %v399 = vmul.f32 %v389, %v379
    %v400 = vmul.f32 %v393, %v378
    %v401 = vmul.f32 %v397, %v381
    %402 = vrot.lane.b32.xlu0 %v194, 112
    %v403 = vpop.permute.xlu0 %402
    %404 = vrot.lane.b32.xlu0 %v195, 112
    %v405 = vpop.permute.xlu0 %404
    %406 = vrot.lane.b32.xlu0 %v196, 112
    %v407 = vpop.permute.xlu0 %406
    %408 = vrot.lane.b32.xlu0 %v197, 112
    %v409 = vpop.permute.xlu0 %408
    %vm410 = vcmp.lt.s32.totalorder %v211, 112
    %v411 = vsel %vm410, %v407, %v409
    %v412 = vsel %vm410, %v405, %v407
    %v413 = vsel %vm410, %v403, %v405
    %v414 = vsel %vm410, %v409, %v403
    %v415 = vlaneseq
    %v416 = vshrl.u32 %v415, 7
    %v417 = vsub.s32 7, %v416
    %v418 = vrot.slane %v186, %v417
    %v419 = vlaneseq
    %v420 = vshrl.u32 %v419, 7
    %v421 = vsub.s32 7, %v420
    %v422 = vrot.slane %v187, %v421
    %v423 = vlaneseq
    %v424 = vshrl.u32 %v423, 7
    %v425 = vsub.s32 7, %v424
    %v426 = vrot.slane %v188, %v425
    %v427 = vlaneseq
    %v428 = vshrl.u32 %v427, 7
    %v429 = vsub.s32 7, %v428
    %v430 = vrot.slane %v189, %v429
    %v431 = vmul.f32 %v418, %v413
    %v432 = vmul.f32 %v422, %v412
    %v433 = vmul.f32 %v426, %v411
    %v434 = vmul.f32 %v430, %v414
    %435 = vrot.lane.b32.xlu0 %v194, 111
    %v436 = vpop.permute.xlu0 %435
    %437 = vrot.lane.b32.xlu0 %v195, 111
    %v438 = vpop.permute.xlu0 %437
    %439 = vrot.lane.b32.xlu0 %v196, 111
    %v440 = vpop.permute.xlu0 %439
    %441 = vrot.lane.b32.xlu0 %v197, 111
    %v442 = vpop.permute.xlu0 %441
    %vm443 = vcmp.lt.s32.totalorder %v211, 111
    %v444 = vsel %vm443, %v440, %v442
    %v445 = vsel %vm443, %v438, %v440
    %v446 = vsel %vm443, %v436, %v438
    %v447 = vsel %vm443, %v442, %v436
    %v448 = vlaneseq
    %v449 = vshrl.u32 %v448, 7
    %v450 = vsub.s32 0, %v449
    %v451 = vrot.slane %v190, %v450
    %v452 = vlaneseq
    %v453 = vshrl.u32 %v452, 7
    %v454 = vsub.s32 0, %v453
    %v455 = vrot.slane %v191, %v454
    %v456 = vlaneseq
    %v457 = vshrl.u32 %v456, 7
    %v458 = vsub.s32 0, %v457
    %v459 = vrot.slane %v192, %v458
    %v460 = vlaneseq
    %v461 = vshrl.u32 %v460, 7
    %v462 = vsub.s32 0, %v461
    %v463 = vrot.slane %v193, %v462
    %v464 = vmul.f32 %v451, %v446
    %v465 = vmul.f32 %v455, %v445
    %v466 = vmul.f32 %v459, %v444
    %v467 = vmul.f32 %v463, %v447
    %v468 = vpack.c.bf16 %v266, %v233
    %v469 = vpack.c.bf16 %v267, %v234
    %v470 = vpack.c.bf16 %v268, %v235
    %v471 = vpack.c.bf16 %v269, %v236
    %v472 = vpack.c.bf16 %v332, %v299
    %v473 = vpack.c.bf16 %v333, %v300
    %v474 = vpack.c.bf16 %v334, %v301
    %v475 = vpack.c.bf16 %v335, %v302
    %v476 = vpack.c.bf16 %v365, %v194
    %v477 = vpack.c.bf16 %v366, %v195
    %v478 = vpack.c.bf16 %v367, %v196
    %v479 = vpack.c.bf16 %v368, %v197
    %v480 = vpack.c.bf16 %v431, %v398
    %v481 = vpack.c.bf16 %v432, %v399
    %v482 = vpack.c.bf16 %v433, %v400
    %v483 = vpack.c.bf16 %v434, %v401
    %v484 = vpack.c.bf16 %v464, %v464
    %v485 = vpack.c.bf16 %v465, %v465
    %v486 = vpack.c.bf16 %v466, %v466
    %v487 = vpack.c.bf16 %v467, %v467
    %489 = vset.pattern.permute.xlu0 0
    %490 = vperm.xlu0 %489, %v200
    %v491 = vpop.permute.xlu0 %490
    %494 = vset.pattern.permute.xlu0 0
    %495 = vperm.xlu0 %494, %v201
    %v496 = vpop.permute.xlu0 %495
    %v500 = vunpack.c.l.b16 %v198
    %v501 = vunpack.c.l.b16 %v199
    %v502 = vpack.c.b16 %v501, %v500
    %vm503 = vcmask 588800
    %v505 = vsel %vm503, %v502, 0
    %vm507 = vcmask 1043456
    %v509 = vsel %vm507, %v484, 0
    %v512 = vsel %vm507, %v485, 0
    %v515 = vsel %vm507, %v486, 0
    %v518 = vsel %vm507, %v487, 0
    %520 = vmatprep.subr.bf16.mxu0 %v469
    %521 = vmatpush1.bf16.msra.mxu0 %v468
    %522 = vmatprep.subr.bf16.mxu0 %v473
    %523 = vmatpush1.bf16.msra.mxu0 %v472
    %524 = vmatprep.subr.bf16.mxu0 %v477
    %525 = vmatpush1.bf16.msra.mxu0 %v476
    %526 = vmatprep.subr.bf16.mxu0 %v481
    %527 = vmatpush1.bf16.msra.mxu0 %v480
    %528 = vmatprep.subr.bf16.mxu0 %v512
    %529 = vmatpush1.bf16.msra.mxu0 %v509
    %530 = vmatprep.subr.bf16.mxu0 0
    %531 = vmatpush1.bf16.msra.mxu0 0
    %532 = vmatprep.subr.bf16.mxu0 0
    %533 = vmatpush1.bf16.msra.mxu0 0
    %534 = vmatprep.subr.bf16.mxu0 0
    %535 = vmatpush1.bf16.msra.mxu0 0
    %536 = vmatprep.subr.bf16.mxu0 0
    %537 = vmatpush1.bf16.msra.mxu0 0
    %538 = vmatprep.subr.bf16.mxu0 0
    %539 = vmatpush1.bf16.msra.mxu0 0
    %540 = vmatprep.subr.bf16.mxu0 0
    %541 = vmatpush1.bf16.msra.mxu0 0
    %542 = vmatprep.subr.bf16.mxu0 0
    %543 = vmatpush1.bf16.msra.mxu0 0
    %544 = vmatprep.subr.bf16.mxu0 0
    %545 = vmatpush1.bf16.msra.mxu0 0
    %546 = vmatprep.subr.bf16.mxu0 0
    %547 = vmatpush1.bf16.msra.mxu0 0
    %548 = vmatprep.subr.bf16.mxu0 0
    %549 = vmatpush1.bf16.msra.mxu0 0
    %550 = vmatprep.subr.bf16.mxu0 0
    %551 = vmatpush1.bf16.msra.mxu0 0
    %552 = vmatprep.mubr.bf16.mxu0 0
    %553 = vmatmul.mubr.bf16.gmra.mrb[0].mxu0 %v505
    %v554 = vpop.f32.mrb[0].mxu0
    %v555 = vadd.f32 %v491, %v554
    %v556 = vpop.f32.mrb[0].mxu0
    %v557 = vadd.f32 %v491, %v556
    %v558 = vpop.f32.mrb[0].mxu0
    %v559 = vadd.f32 %v496, %v558
    %v560 = vpop.f32.mrb[0].mxu0
    %v561 = vadd.f32 %v496, %v560
    %562 = vdwg.mxu0
    %563 = vmatprep.subr.bf16.mxu0 %v471
    %564 = vmatpush1.bf16.msra.mxu0 %v470
    %565 = vmatprep.subr.bf16.mxu0 %v475
    %566 = vmatpush1.bf16.msra.mxu0 %v474
    %567 = vmatprep.subr.bf16.mxu0 %v479
    %568 = vmatpush1.bf16.msra.mxu0 %v478
    %569 = vmatprep.subr.bf16.mxu0 %v483
    %570 = vmatpush1.bf16.msra.mxu0 %v482
    %571 = vmatprep.subr.bf16.mxu0 %v518
    %572 = vmatpush1.bf16.msra.mxu0 %v515
    %573 = vmatprep.subr.bf16.mxu0 0
    %574 = vmatpush1.bf16.msra.mxu0 0
    %575 = vmatprep.subr.bf16.mxu0 0
    %576 = vmatpush1.bf16.msra.mxu0 0
    %577 = vmatprep.subr.bf16.mxu0 0
    %578 = vmatpush1.bf16.msra.mxu0 0
    %579 = vmatprep.subr.bf16.mxu0 0
    %580 = vmatpush1.bf16.msra.mxu0 0
    %581 = vmatprep.subr.bf16.mxu0 0
    %582 = vmatpush1.bf16.msra.mxu0 0
    %583 = vmatprep.subr.bf16.mxu0 0
    %584 = vmatpush1.bf16.msra.mxu0 0
    %585 = vmatprep.subr.bf16.mxu0 0
    %586 = vmatpush1.bf16.msra.mxu0 0
    %587 = vmatprep.subr.bf16.mxu0 0
    %588 = vmatpush1.bf16.msra.mxu0 0
    %589 = vmatprep.subr.bf16.mxu0 0
    %590 = vmatpush1.bf16.msra.mxu0 0
    %591 = vmatprep.subr.bf16.mxu0 0
    %592 = vmatpush1.bf16.msra.mxu0 0
    %593 = vmatprep.subr.bf16.mxu0 0
    %594 = vmatpush1.bf16.msra.mxu0 0
    %595 = vmatprep.mubr.bf16.mxu0 0
    %596 = vmatmul.mubr.bf16.gmra.mrb[0].mxu0 %v505
    %v597 = vpop.f32.mrb[0].mxu0
    %v598 = vadd.f32 %v491, %v597
    %v599 = vpop.f32.mrb[0].mxu0
    %v600 = vadd.f32 %v491, %v599
    %v601 = vpop.f32.mrb[0].mxu0
    %v602 = vadd.f32 %v496, %v601
    %v603 = vpop.f32.mrb[0].mxu0
    %v604 = vadd.f32 %v496, %v603
    %605 = vdwg.mxu0
    %v606 = vmax.f32 %v555, 0.0
    %v607 = vmax.f32 %v557, 0.0
    %v608 = vmax.f32 %v598, 0.0
    %v609 = vmax.f32 %v600, 0.0
    %v610 = vmax.f32 %v559, 0.0
    %v611 = vmax.f32 %v561, 0.0
    %v612 = vmax.f32 %v602, 0.0
    %v613 = vmax.f32 %v604, 0.0
    %v614 = vld [vmem:[#allocation7] sm:$0xff]
    %v615 = vld [vmem:[#allocation7 + $0x8] sm:$0xff]
    %v616 = vld [vmem:[%s6] sm:$0xff]
    %v617 = vld [vmem:[%s6 + $0x8] sm:$0xff]
    %618 = vrot.lane.b32.xlu0 %v606, 17
    %v619 = vpop.permute.xlu0 %618
    %620 = vrot.lane.b32.xlu0 %v610, 17
    %v621 = vpop.permute.xlu0 %620
    %622 = vrot.lane.b32.xlu0 %v607, 17
    %v623 = vpop.permute.xlu0 %622
    %624 = vrot.lane.b32.xlu0 %v611, 17
    %v625 = vpop.permute.xlu0 %624
    %626 = vrot.lane.b32.xlu0 %v608, 17
    %v627 = vpop.permute.xlu0 %626
    %628 = vrot.lane.b32.xlu0 %v612, 17
    %v629 = vpop.permute.xlu0 %628
    %630 = vrot.lane.b32.xlu0 %v609, 17
    %v631 = vpop.permute.xlu0 %630
    %632 = vrot.lane.b32.xlu0 %v613, 17
    %v633 = vpop.permute.xlu0 %632
    %v634 = vsel %vm212, %v627, %v631
    %v635 = vsel %vm212, %v629, %v633
    %v636 = vsel %vm212, %v623, %v627
    %v637 = vsel %vm212, %v625, %v629
    %v638 = vsel %vm212, %v619, %v623
    %v639 = vsel %vm212, %v621, %v625
    %v640 = vsel %vm212, %v631, %v619
    %v641 = vsel %vm212, %v633, %v621
    %v642 = vmul.f32 %v220, %v640
    %v643 = vmul.f32 %v224, %v638
    %v644 = vmul.f32 %v228, %v636
    %v645 = vmul.f32 %v232, %v634
    %v646 = vmul.f32 %v220, %v641
    %v647 = vmul.f32 %v224, %v639
    %v648 = vmul.f32 %v228, %v637
    %v649 = vmul.f32 %v232, %v635
    %650 = vrot.lane.b32.xlu0 %v606, 16
    %v651 = vpop.permute.xlu0 %650
    %652 = vrot.lane.b32.xlu0 %v610, 16
    %v653 = vpop.permute.xlu0 %652
    %654 = vrot.lane.b32.xlu0 %v607, 16
    %v655 = vpop.permute.xlu0 %654
    %656 = vrot.lane.b32.xlu0 %v611, 16
    %v657 = vpop.permute.xlu0 %656
    %658 = vrot.lane.b32.xlu0 %v608, 16
    %v659 = vpop.permute.xlu0 %658
    %660 = vrot.lane.b32.xlu0 %v612, 16
    %v661 = vpop.permute.xlu0 %660
    %662 = vrot.lane.b32.xlu0 %v609, 16
    %v663 = vpop.permute.xlu0 %662
    %664 = vrot.lane.b32.xlu0 %v613, 16
    %v665 = vpop.permute.xlu0 %664
    %v666 = vsel %vm245, %v659, %v663
    %v667 = vsel %vm245, %v661, %v665
    %v668 = vsel %vm245, %v655, %v659
    %v669 = vsel %vm245, %v657, %v661
    %v670 = vsel %vm245, %v651, %v655
    %v671 = vsel %vm245, %v653, %v657
    %v672 = vsel %vm245, %v663, %v651
    %v673 = vsel %vm245, %v665, %v653
    %v674 = vmul.f32 %v253, %v672
    %v675 = vmul.f32 %v257, %v670
    %v676 = vmul.f32 %v261, %v668
    %v677 = vmul.f32 %v265, %v666
    %v678 = vmul.f32 %v253, %v673
    %v679 = vmul.f32 %v257, %v671
    %v680 = vmul.f32 %v261, %v669
    %v681 = vmul.f32 %v265, %v667
    %682 = vrot.lane.b32.xlu0 %v606, 15
    %v683 = vpop.permute.xlu0 %682
    %684 = vrot.lane.b32.xlu0 %v610, 15
    %v685 = vpop.permute.xlu0 %684
    %686 = vrot.lane.b32.xlu0 %v607, 15
    %v687 = vpop.permute.xlu0 %686
    %688 = vrot.lane.b32.xlu0 %v611, 15
    %v689 = vpop.permute.xlu0 %688
    %690 = vrot.lane.b32.xlu0 %v608, 15
    %v691 = vpop.permute.xlu0 %690
    %692 = vrot.lane.b32.xlu0 %v612, 15
    %v693 = vpop.permute.xlu0 %692
    %694 = vrot.lane.b32.xlu0 %v609, 15
    %v695 = vpop.permute.xlu0 %694
    %696 = vrot.lane.b32.xlu0 %v613, 15
    %v697 = vpop.permute.xlu0 %696
    %v698 = vsel %vm278, %v691, %v695
    %v699 = vsel %vm278, %v693, %v697
    %v700 = vsel %vm278, %v687, %v691
    %v701 = vsel %vm278, %v689, %v693
    %v702 = vsel %vm278, %v683, %v687
    %v703 = vsel %vm278, %v685, %v689
    %v704 = vsel %vm278, %v695, %v683
    %v705 = vsel %vm278, %v697, %v685
    %v706 = vmul.f32 %v286, %v704
    %v707 = vmul.f32 %v290, %v702
    %v708 = vmul.f32 %v294, %v700
    %v709 = vmul.f32 %v298, %v698
    %v710 = vmul.f32 %v286, %v705
    %v711 = vmul.f32 %v290, %v703
    %v712 = vmul.f32 %v294, %v701
    %v713 = vmul.f32 %v298, %v699
    %714 = vrot.lane.b32.xlu0 %v606, 1
    %v715 = vpop.permute.xlu0 %714
    %716 = vrot.lane.b32.xlu0 %v610, 1
    %v717 = vpop.permute.xlu0 %716
    %718 = vrot.lane.b32.xlu0 %v607, 1
    %v719 = vpop.permute.xlu0 %718
    %720 = vrot.lane.b32.xlu0 %v611, 1
    %v721 = vpop.permute.xlu0 %720
    %722 = vrot.lane.b32.xlu0 %v608, 1
    %v723 = vpop.permute.xlu0 %722
    %724 = vrot.lane.b32.xlu0 %v612, 1
    %v725 = vpop.permute.xlu0 %724
    %726 = vrot.lane.b32.xlu0 %v609, 1
    %v727 = vpop.permute.xlu0 %726
    %728 = vrot.lane.b32.xlu0 %v613, 1
    %v729 = vpop.permute.xlu0 %728
    %v730 = vsel %vm311, %v723, %v727
    %v731 = vsel %vm311, %v725, %v729
    %v732 = vsel %vm311, %v719, %v723
    %v733 = vsel %vm311, %v721, %v725
    %v734 = vsel %vm311, %v715, %v719
    %v735 = vsel %vm311, %v717, %v721
    %v736 = vsel %vm311, %v727, %v715
    %v737 = vsel %vm311, %v729, %v717
    %v738 = vmul.f32 %v319, %v736
    %v739 = vmul.f32 %v323, %v734
    %v740 = vmul.f32 %v327, %v732
    %v741 = vmul.f32 %v331, %v730
    %v742 = vmul.f32 %v319, %v737
    %v743 = vmul.f32 %v323, %v735
    %v744 = vmul.f32 %v327, %v733
    %v745 = vmul.f32 %v331, %v731
    %746 = vrot.lane.b32.xlu0 %v606, 127
    %v747 = vpop.permute.xlu0 %746
    %748 = vrot.lane.b32.xlu0 %v610, 127
    %v749 = vpop.permute.xlu0 %748
    %750 = vrot.lane.b32.xlu0 %v607, 127
    %v751 = vpop.permute.xlu0 %750
    %752 = vrot.lane.b32.xlu0 %v611, 127
    %v753 = vpop.permute.xlu0 %752
    %754 = vrot.lane.b32.xlu0 %v608, 127
    %v755 = vpop.permute.xlu0 %754
    %756 = vrot.lane.b32.xlu0 %v612, 127
    %v757 = vpop.permute.xlu0 %756
    %758 = vrot.lane.b32.xlu0 %v609, 127
    %v759 = vpop.permute.xlu0 %758
    %760 = vrot.lane.b32.xlu0 %v613, 127
    %v761 = vpop.permute.xlu0 %760
    %v762 = vsel %vm344, %v755, %v759
    %v763 = vsel %vm344, %v757, %v761
    %v764 = vsel %vm344, %v751, %v755
    %v765 = vsel %vm344, %v753, %v757
    %v766 = vsel %vm344, %v747, %v751
    %v767 = vsel %vm344, %v749, %v753
    %v768 = vsel %vm344, %v759, %v747
    %v769 = vsel %vm344, %v761, %v749
    %v770 = vmul.f32 %v352, %v766
    %v771 = vmul.f32 %v356, %v764
    %v772 = vmul.f32 %v360, %v762
    %v773 = vmul.f32 %v364, %v768
    %v774 = vmul.f32 %v352, %v767
    %v775 = vmul.f32 %v356, %v765
    %v776 = vmul.f32 %v360, %v763
    %v777 = vmul.f32 %v364, %v769
    %778 = vrot.lane.b32.xlu0 %v606, 113
    %v779 = vpop.permute.xlu0 %778
    %780 = vrot.lane.b32.xlu0 %v610, 113
    %v781 = vpop.permute.xlu0 %780
    %782 = vrot.lane.b32.xlu0 %v607, 113
    %v783 = vpop.permute.xlu0 %782
    %784 = vrot.lane.b32.xlu0 %v611, 113
    %v785 = vpop.permute.xlu0 %784
    %786 = vrot.lane.b32.xlu0 %v608, 113
    %v787 = vpop.permute.xlu0 %786
    %788 = vrot.lane.b32.xlu0 %v612, 113
    %v789 = vpop.permute.xlu0 %788
    %790 = vrot.lane.b32.xlu0 %v609, 113
    %v791 = vpop.permute.xlu0 %790
    %792 = vrot.lane.b32.xlu0 %v613, 113
    %v793 = vpop.permute.xlu0 %792
    %v794 = vsel %vm377, %v787, %v791
    %v795 = vsel %vm377, %v789, %v793
    %v796 = vsel %vm377, %v783, %v787
    %v797 = vsel %vm377, %v785, %v789
    %v798 = vsel %vm377, %v779, %v783
    %v799 = vsel %vm377, %v781, %v785
    %v800 = vsel %vm377, %v791, %v779
    %v801 = vsel %vm377, %v793, %v781
    %v802 = vmul.f32 %v385, %v798
    %v803 = vmul.f32 %v389, %v796
    %v804 = vmul.f32 %v393, %v794
    %v805 = vmul.f32 %v397, %v800
    %v806 = vmul.f32 %v385, %v799
    %v807 = vmul.f32 %v389, %v797
    %v808 = vmul.f32 %v393, %v795
    %v809 = vmul.f32 %v397, %v801
    %810 = vrot.lane.b32.xlu0 %v606, 112
    %v811 = vpop.permute.xlu0 %810
    %812 = vrot.lane.b32.xlu0 %v610, 112
    %v813 = vpop.permute.xlu0 %812
    %814 = vrot.lane.b32.xlu0 %v607, 112
    %v815 = vpop.permute.xlu0 %814
    %816 = vrot.lane.b32.xlu0 %v611, 112
    %v817 = vpop.permute.xlu0 %816
    %818 = vrot.lane.b32.xlu0 %v608, 112
    %v819 = vpop.permute.xlu0 %818
    %820 = vrot.lane.b32.xlu0 %v612, 112
    %v821 = vpop.permute.xlu0 %820
    %822 = vrot.lane.b32.xlu0 %v609, 112
    %v823 = vpop.permute.xlu0 %822
    %824 = vrot.lane.b32.xlu0 %v613, 112
    %v825 = vpop.permute.xlu0 %824
    %v826 = vsel %vm410, %v819, %v823
    %v827 = vsel %vm410, %v821, %v825
    %v828 = vsel %vm410, %v815, %v819
    %v829 = vsel %vm410, %v817, %v821
    %v830 = vsel %vm410, %v811, %v815
    %v831 = vsel %vm410, %v813, %v817
    %v832 = vsel %vm410, %v823, %v811
    %v833 = vsel %vm410, %v825, %v813
    %v834 = vmul.f32 %v418, %v830
    %v835 = vmul.f32 %v422, %v828
    %v836 = vmul.f32 %v426, %v826
    %v837 = vmul.f32 %v430, %v832
    %v838 = vmul.f32 %v418, %v831
    %v839 = vmul.f32 %v422, %v829
    %v840 = vmul.f32 %v426, %v827
    %v841 = vmul.f32 %v430, %v833
    %842 = vrot.lane.b32.xlu0 %v606, 111
    %v843 = vpop.permute.xlu0 %842
    %844 = vrot.lane.b32.xlu0 %v610, 111
    %v845 = vpop.permute.xlu0 %844
    %846 = vrot.lane.b32.xlu0 %v607, 111
    %v847 = vpop.permute.xlu0 %846
    %848 = vrot.lane.b32.xlu0 %v611, 111
    %v849 = vpop.permute.xlu0 %848
    %850 = vrot.lane.b32.xlu0 %v608, 111
    %v851 = vpop.permute.xlu0 %850
    %852 = vrot.lane.b32.xlu0 %v612, 111
    %v853 = vpop.permute.xlu0 %852
    %854 = vrot.lane.b32.xlu0 %v609, 111
    %v855 = vpop.permute.xlu0 %854
    %856 = vrot.lane.b32.xlu0 %v613, 111
    %v857 = vpop.permute.xlu0 %856
    %v858 = vsel %vm443, %v851, %v855
    %v859 = vsel %vm443, %v853, %v857
    %v860 = vsel %vm443, %v847, %v851
    %v861 = vsel %vm443, %v849, %v853
    %v862 = vsel %vm443, %v843, %v847
    %v863 = vsel %vm443, %v845, %v849
    %v864 = vsel %vm443, %v855, %v843
    %v865 = vsel %vm443, %v857, %v845
    %v866 = vmul.f32 %v451, %v862
    %v867 = vmul.f32 %v455, %v860
    %v868 = vmul.f32 %v459, %v858
    %v869 = vmul.f32 %v463, %v864
    %v870 = vmul.f32 %v451, %v863
    %v871 = vmul.f32 %v455, %v861
    %v872 = vmul.f32 %v459, %v859
    %v873 = vmul.f32 %v463, %v865
    %v874 = vpack.c.bf16 %v646, %v642
    %v875 = vpack.c.bf16 %v647, %v643
    %v876 = vpack.c.bf16 %v648, %v644
    %v877 = vpack.c.bf16 %v649, %v645
    %v878 = vpack.c.bf16 %v678, %v674
    %v879 = vpack.c.bf16 %v679, %v675
    %v880 = vpack.c.bf16 %v680, %v676
    %v881 = vpack.c.bf16 %v681, %v677
    %v882 = vpack.c.bf16 %v710, %v706
    %v883 = vpack.c.bf16 %v711, %v707
    %v884 = vpack.c.bf16 %v712, %v708
    %v885 = vpack.c.bf16 %v713, %v709
    %v886 = vpack.c.bf16 %v742, %v738
    %v887 = vpack.c.bf16 %v743, %v739
    %v888 = vpack.c.bf16 %v744, %v740
    %v889 = vpack.c.bf16 %v745, %v741
    %v890 = vpack.c.bf16 %v610, %v606
    %v891 = vpack.c.bf16 %v611, %v607
    %v892 = vpack.c.bf16 %v612, %v608
    %v893 = vpack.c.bf16 %v613, %v609
    %v894 = vpack.c.bf16 %v774, %v770
    %v895 = vpack.c.bf16 %v775, %v771
    %v896 = vpack.c.bf16 %v776, %v772
    %v897 = vpack.c.bf16 %v777, %v773
    %v898 = vpack.c.bf16 %v806, %v802
    %v899 = vpack.c.bf16 %v807, %v803
    %v900 = vpack.c.bf16 %v808, %v804
    %v901 = vpack.c.bf16 %v809, %v805
    %v902 = vpack.c.bf16 %v838, %v834
    %v903 = vpack.c.bf16 %v839, %v835
    %v904 = vpack.c.bf16 %v840, %v836
    %v905 = vpack.c.bf16 %v841, %v837
    %v906 = vpack.c.bf16 %v870, %v866
    %v907 = vpack.c.bf16 %v871, %v867
    %v908 = vpack.c.bf16 %v872, %v868
    %v909 = vpack.c.bf16 %v873, %v869
    %911 = vset.pattern.permute.xlu0 0
    %912 = vperm.xlu0 %911, %v616
    %v913 = vpop.permute.xlu0 %912
    %916 = vset.pattern.permute.xlu0 0
    %917 = vperm.xlu0 %916, %v617
    %v918 = vpop.permute.xlu0 %917
    %v922 = vunpack.c.l.b16 %v614
    %v923 = vunpack.c.h.b16 %v614
    %v924 = vunpack.c.l.b16 %v615
    %v925 = vunpack.c.h.b16 %v615
    %v926 = vpack.c.b16 %v924, %v922
    %v927 = vpack.c.b16 %v925, %v923
    %vm929 = vcmask 130048
    %v931 = vsel %vm929, %v927, 0
    %933 = vmatprep.subr.bf16.mxu0 %v875
    %934 = vmatpush1.bf16.msra.mxu0 %v874
    %935 = vmatprep.subr.bf16.mxu0 %v879
    %936 = vmatpush1.bf16.msra.mxu0 %v878
    %937 = vmatprep.subr.bf16.mxu0 %v883
    %938 = vmatpush1.bf16.msra.mxu0 %v882
    %939 = vmatprep.subr.bf16.mxu0 %v887
    %940 = vmatpush1.bf16.msra.mxu0 %v886
    %941 = vmatprep.subr.bf16.mxu0 %v891
    %942 = vmatpush1.bf16.msra.mxu0 %v890
    %943 = vmatprep.subr.bf16.mxu0 %v895
    %944 = vmatpush1.bf16.msra.mxu0 %v894
    %945 = vmatprep.subr.bf16.mxu0 %v899
    %946 = vmatpush1.bf16.msra.mxu0 %v898
    %947 = vmatprep.subr.bf16.mxu0 %v903
    %948 = vmatpush1.bf16.msra.mxu0 %v902
    %949 = vmatprep.subr.bf16.mxu0 %v907
    %950 = vmatpush1.bf16.msra.mxu0 %v906
    %951 = vmatprep.subr.bf16.mxu0 0
    %952 = vmatpush1.bf16.msra.mxu0 0
    %953 = vmatprep.subr.bf16.mxu0 0
    %954 = vmatpush1.bf16.msra.mxu0 0
    %955 = vmatprep.subr.bf16.mxu0 0
    %956 = vmatpush1.bf16.msra.mxu0 0
    %957 = vmatprep.subr.bf16.mxu0 0
    %958 = vmatpush1.bf16.msra.mxu0 0
    %959 = vmatprep.subr.bf16.mxu0 0
    %960 = vmatpush1.bf16.msra.mxu0 0
    %961 = vmatprep.subr.bf16.mxu0 0
    %962 = vmatpush1.bf16.msra.mxu0 0
    %963 = vmatprep.subr.bf16.mxu0 0
    %964 = vmatpush1.bf16.msra.mxu0 0
    %965 = vmatprep.mubr.bf16.mxu0 %v931
    %966 = vmatmul.mubr.bf16.gmra.mrb[0].mxu0 %v926
    %v967 = vpop.f32.mrb[0].mxu0
    %v968 = vadd.f32 %v913, %v967
    %v969 = vpop.f32.mrb[0].mxu0
    %v970 = vadd.f32 %v913, %v969
    %v971 = vpop.f32.mrb[0].mxu0
    %v972 = vadd.f32 %v918, %v971
    %v973 = vpop.f32.mrb[0].mxu0
    %v974 = vadd.f32 %v918, %v973
    %975 = vdwg.mxu0
    %976 = vmatprep.subr.bf16.mxu0 %v877
    %977 = vmatpush1.bf16.msra.mxu0 %v876
    %978 = vmatprep.subr.bf16.mxu0 %v881
    %979 = vmatpush1.bf16.msra.mxu0 %v880
    %980 = vmatprep.subr.bf16.mxu0 %v885
    %981 = vmatpush1.bf16.msra.mxu0 %v884
    %982 = vmatprep.subr.bf16.mxu0 %v889
    %983 = vmatpush1.bf16.msra.mxu0 %v888
    %984 = vmatprep.subr.bf16.mxu0 %v893
    %985 = vmatpush1.bf16.msra.mxu0 %v892
    %986 = vmatprep.subr.bf16.mxu0 %v897
    %987 = vmatpush1.bf16.msra.mxu0 %v896
    %988 = vmatprep.subr.bf16.mxu0 %v901
    %989 = vmatpush1.bf16.msra.mxu0 %v900
    %990 = vmatprep.subr.bf16.mxu0 %v905
    %991 = vmatpush1.bf16.msra.mxu0 %v904
    %992 = vmatprep.subr.bf16.mxu0 %v909
    %993 = vmatpush1.bf16.msra.mxu0 %v908
    %994 = vmatprep.subr.bf16.mxu0 0
    %995 = vmatpush1.bf16.msra.mxu0 0
    %996 = vmatprep.subr.bf16.mxu0 0
    %997 = vmatpush1.bf16.msra.mxu0 0
    %998 = vmatprep.subr.bf16.mxu0 0
    %999 = vmatpush1.bf16.msra.mxu0 0
    %1000 = vmatprep.subr.bf16.mxu0 0
    %1001 = vmatpush1.bf16.msra.mxu0 0
    %1002 = vmatprep.subr.bf16.mxu0 0
    %1003 = vmatpush1.bf16.msra.mxu0 0
    %1004 = vmatprep.subr.bf16.mxu0 0
    %1005 = vmatpush1.bf16.msra.mxu0 0
    %1006 = vmatprep.subr.bf16.mxu0 0
    %1007 = vmatpush1.bf16.msra.mxu0 0
    %1008 = vmatprep.mubr.bf16.mxu0 %v931
    %1009 = vmatmul.mubr.bf16.gmra.mrb[0].mxu0 %v926
    %v1010 = vpop.f32.mrb[0].mxu0
    %v1011 = vadd.f32 %v913, %v1010
    %v1012 = vpop.f32.mrb[0].mxu0
    %v1013 = vadd.f32 %v913, %v1012
    %v1014 = vpop.f32.mrb[0].mxu0
    %v1015 = vadd.f32 %v918, %v1014
    %v1016 = vpop.f32.mrb[0].mxu0
    %v1017 = vadd.f32 %v918, %v1016
    %1018 = vdwg.mxu0
    %v1019 = vmax.f32 %v968, 0.0
    %v1020 = vmax.f32 %v970, 0.0
    %v1021 = vmax.f32 %v1011, 0.0
    %v1022 = vmax.f32 %v1013, 0.0
    %v1023 = vmax.f32 %v972, 0.0
    %v1024 = vmax.f32 %v974, 0.0
    %v1025 = vmax.f32 %v1015, 0.0
    %v1026 = vmax.f32 %v1017, 0.0
    %v1027 = vld [vmem:[#allocation8] sm:$0xff]
    %v1028 = vld [vmem:[#allocation8 + $0x8] sm:$0xff]
    %v1029 = vld [vmem:[%s8] sm:$0xff]
    %v1030 = vld [vmem:[%s8 + $0x8] sm:$0xff]
    %1031 = vrot.lane.b32.xlu0 %v1019, 17
    %v1032 = vpop.permute.xlu0 %1031
    %1033 = vrot.lane.b32.xlu0 %v1023, 17
    %v1034 = vpop.permute.xlu0 %1033
    %1035 = vrot.lane.b32.xlu0 %v1020, 17
    %v1036 = vpop.permute.xlu0 %1035
    %1037 = vrot.lane.b32.xlu0 %v1024, 17
    %v1038 = vpop.permute.xlu0 %1037
    %1039 = vrot.lane.b32.xlu0 %v1021, 17
    %v1040 = vpop.permute.xlu0 %1039
    %1041 = vrot.lane.b32.xlu0 %v1025, 17
    %v1042 = vpop.permute.xlu0 %1041
    %1043 = vrot.lane.b32.xlu0 %v1022, 17
    %v1044 = vpop.permute.xlu0 %1043
    %1045 = vrot.lane.b32.xlu0 %v1026, 17
    %v1046 = vpop.permute.xlu0 %1045
    %v1047 = vsel %vm212, %v1040, %v1044
    %v1048 = vsel %vm212, %v1042, %v1046
    %v1049 = vsel %vm212, %v1036, %v1040
    %v1050 = vsel %vm212, %v1038, %v1042
    %v1051 = vsel %vm212, %v1032, %v1036
    %v1052 = vsel %vm212, %v1034, %v1038
    %v1053 = vsel %vm212, %v1044, %v1032
    %v1054 = vsel %vm212, %v1046, %v1034
    %v1055 = vmul.f32 %v220, %v1053
    %v1056 = vmul.f32 %v224, %v1051
    %v1057 = vmul.f32 %v228, %v1049
    %v1058 = vmul.f32 %v232, %v1047
    %v1059 = vmul.f32 %v220, %v1054
    %v1060 = vmul.f32 %v224, %v1052
    %v1061 = vmul.f32 %v228, %v1050
    %v1062 = vmul.f32 %v232, %v1048
    %1063 = vrot.lane.b32.xlu0 %v1019, 16
    %v1064 = vpop.permute.xlu0 %1063
    %1065 = vrot.lane.b32.xlu0 %v1023, 16
    %v1066 = vpop.permute.xlu0 %1065
    %1067 = vrot.lane.b32.xlu0 %v1020, 16
    %v1068 = vpop.permute.xlu0 %1067
    %1069 = vrot.lane.b32.xlu0 %v1024, 16
    %v1070 = vpop.permute.xlu0 %1069
    %1071 = vrot.lane.b32.xlu0 %v1021, 16
    %v1072 = vpop.permute.xlu0 %1071
    %1073 = vrot.lane.b32.xlu0 %v1025, 16
    %v1074 = vpop.permute.xlu0 %1073
    %1075 = vrot.lane.b32.xlu0 %v1022, 16
    %v1076 = vpop.permute.xlu0 %1075
    %1077 = vrot.lane.b32.xlu0 %v1026, 16
    %v1078 = vpop.permute.xlu0 %1077
    %v1079 = vsel %vm245, %v1072, %v1076
    %v1080 = vsel %vm245, %v1074, %v1078
    %v1081 = vsel %vm245, %v1068, %v1072
    %v1082 = vsel %vm245, %v1070, %v1074
    %v1083 = vsel %vm245, %v1064, %v1068
    %v1084 = vsel %vm245, %v1066, %v1070
    %v1085 = vsel %vm245, %v1076, %v1064
    %v1086 = vsel %vm245, %v1078, %v1066
    %v1087 = vmul.f32 %v253, %v1085
    %v1088 = vmul.f32 %v257, %v1083
    %v1089 = vmul.f32 %v261, %v1081
    %v1090 = vmul.f32 %v265, %v1079
    %v1091 = vmul.f32 %v253, %v1086
    %v1092 = vmul.f32 %v257, %v1084
    %v1093 = vmul.f32 %v261, %v1082
    %v1094 = vmul.f32 %v265, %v1080
    %1095 = vrot.lane.b32.xlu0 %v1019, 15
    %v1096 = vpop.permute.xlu0 %1095
    %1097 = vrot.lane.b32.xlu0 %v1023, 15
    %v1098 = vpop.permute.xlu0 %1097
    %1099 = vrot.lane.b32.xlu0 %v1020, 15
    %v1100 = vpop.permute.xlu0 %1099
    %1101 = vrot.lane.b32.xlu0 %v1024, 15
    %v1102 = vpop.permute.xlu0 %1101
    %1103 = vrot.lane.b32.xlu0 %v1021, 15
    %v1104 = vpop.permute.xlu0 %1103
    %1105 = vrot.lane.b32.xlu0 %v1025, 15
    %v1106 = vpop.permute.xlu0 %1105
    %1107 = vrot.lane.b32.xlu0 %v1022, 15
    %v1108 = vpop.permute.xlu0 %1107
    %1109 = vrot.lane.b32.xlu0 %v1026, 15
    %v1110 = vpop.permute.xlu0 %1109
    %v1111 = vsel %vm278, %v1104, %v1108
    %v1112 = vsel %vm278, %v1106, %v1110
    %v1113 = vsel %vm278, %v1100, %v1104
    %v1114 = vsel %vm278, %v1102, %v1106
    %v1115 = vsel %vm278, %v1096, %v1100
    %v1116 = vsel %vm278, %v1098, %v1102
    %v1117 = vsel %vm278, %v1108, %v1096
    %v1118 = vsel %vm278, %v1110, %v1098
    %v1119 = vmul.f32 %v286, %v1117
    %v1120 = vmul.f32 %v290, %v1115
    %v1121 = vmul.f32 %v294, %v1113
    %v1122 = vmul.f32 %v298, %v1111
    %v1123 = vmul.f32 %v286, %v1118
    %v1124 = vmul.f32 %v290, %v1116
    %v1125 = vmul.f32 %v294, %v1114
    %v1126 = vmul.f32 %v298, %v1112
    %1127 = vrot.lane.b32.xlu0 %v1019, 1
    %v1128 = vpop.permute.xlu0 %1127
    %1129 = vrot.lane.b32.xlu0 %v1023, 1
    %v1130 = vpop.permute.xlu0 %1129
    %1131 = vrot.lane.b32.xlu0 %v1020, 1
    %v1132 = vpop.permute.xlu0 %1131
    %1133 = vrot.lane.b32.xlu0 %v1024, 1
    %v1134 = vpop.permute.xlu0 %1133
    %1135 = vrot.lane.b32.xlu0 %v1021, 1
    %v1136 = vpop.permute.xlu0 %1135
    %1137 = vrot.lane.b32.xlu0 %v1025, 1
    %v1138 = vpop.permute.xlu0 %1137
    %1139 = vrot.lane.b32.xlu0 %v1022, 1
    %v1140 = vpop.permute.xlu0 %1139
    %1141 = vrot.lane.b32.xlu0 %v1026, 1
    %v1142 = vpop.permute.xlu0 %1141
    %v1143 = vsel %vm311, %v1136, %v1140
    %v1144 = vsel %vm311, %v1138, %v1142
    %v1145 = vsel %vm311, %v1132, %v1136
    %v1146 = vsel %vm311, %v1134, %v1138
    %v1147 = vsel %vm311, %v1128, %v1132
    %v1148 = vsel %vm311, %v1130, %v1134
    %v1149 = vsel %vm311, %v1140, %v1128
    %v1150 = vsel %vm311, %v1142, %v1130
    %v1151 = vmul.f32 %v319, %v1149
    %v1152 = vmul.f32 %v323, %v1147
    %v1153 = vmul.f32 %v327, %v1145
    %v1154 = vmul.f32 %v331, %v1143
    %v1155 = vmul.f32 %v319, %v1150
    %v1156 = vmul.f32 %v323, %v1148
    %v1157 = vmul.f32 %v327, %v1146
    %v1158 = vmul.f32 %v331, %v1144
    %1159 = vrot.lane.b32.xlu0 %v1019, 127
    %v1160 = vpop.permute.xlu0 %1159
    %1161 = vrot.lane.b32.xlu0 %v1023, 127
    %v1162 = vpop.permute.xlu0 %1161
    %1163 = vrot.lane.b32.xlu0 %v1020, 127
    %v1164 = vpop.permute.xlu0 %1163
    %1165 = vrot.lane.b32.xlu0 %v1024, 127
    %v1166 = vpop.permute.xlu0 %1165
    %1167 = vrot.lane.b32.xlu0 %v1021, 127
    %v1168 = vpop.permute.xlu0 %1167
    %1169 = vrot.lane.b32.xlu0 %v1025, 127
    %v1170 = vpop.permute.xlu0 %1169
    %1171 = vrot.lane.b32.xlu0 %v1022, 127
    %v1172 = vpop.permute.xlu0 %1171
    %1173 = vrot.lane.b32.xlu0 %v1026, 127
    %v1174 = vpop.permute.xlu0 %1173
    %v1175 = vsel %vm344, %v1168, %v1172
    %v1176 = vsel %vm344, %v1170, %v1174
    %v1177 = vsel %vm344, %v1164, %v1168
    %v1178 = vsel %vm344, %v1166, %v1170
    %v1179 = vsel %vm344, %v1160, %v1164
    %v1180 = vsel %vm344, %v1162, %v1166
    %v1181 = vsel %vm344, %v1172, %v1160
    %v1182 = vsel %vm344, %v1174, %v1162
    %v1183 = vmul.f32 %v352, %v1179
    %v1184 = vmul.f32 %v356, %v1177
    %v1185 = vmul.f32 %v360, %v1175
    %v1186 = vmul.f32 %v364, %v1181
    %v1187 = vmul.f32 %v352, %v1180
    %v1188 = vmul.f32 %v356, %v1178
    %v1189 = vmul.f32 %v360, %v1176
    %v1190 = vmul.f32 %v364, %v1182
    %1191 = vrot.lane.b32.xlu0 %v1019, 113
    %v1192 = vpop.permute.xlu0 %1191
    %1193 = vrot.lane.b32.xlu0 %v1023, 113
    %v1194 = vpop.permute.xlu0 %1193
    %1195 = vrot.lane.b32.xlu0 %v1020, 113
    %v1196 = vpop.permute.xlu0 %1195
    %1197 = vrot.lane.b32.xlu0 %v1024, 113
    %v1198 = vpop.permute.xlu0 %1197
    %1199 = vrot.lane.b32.xlu0 %v1021, 113
    %v1200 = vpop.permute.xlu0 %1199
    %1201 = vrot.lane.b32.xlu0 %v1025, 113
    %v1202 = vpop.permute.xlu0 %1201
    %1203 = vrot.lane.b32.xlu0 %v1022, 113
    %v1204 = vpop.permute.xlu0 %1203
    %1205 = vrot.lane.b32.xlu0 %v1026, 113
    %v1206 = vpop.permute.xlu0 %1205
    %v1207 = vsel %vm377, %v1200, %v1204
    %v1208 = vsel %vm377, %v1202, %v1206
    %v1209 = vsel %vm377, %v1196, %v1200
    %v1210 = vsel %vm377, %v1198, %v1202
    %v1211 = vsel %vm377, %v1192, %v1196
    %v1212 = vsel %vm377, %v1194, %v1198
    %v1213 = vsel %vm377, %v1204, %v1192
    %v1214 = vsel %vm377, %v1206, %v1194
    %v1215 = vmul.f32 %v385, %v1211
    %v1216 = vmul.f32 %v389, %v1209
    %v1217 = vmul.f32 %v393, %v1207
    %v1218 = vmul.f32 %v397, %v1213
    %v1219 = vmul.f32 %v385, %v1212
    %v1220 = vmul.f32 %v389, %v1210
    %v1221 = vmul.f32 %v393, %v1208
    %v1222 = vmul.f32 %v397, %v1214
    %1223 = vrot.lane.b32.xlu0 %v1019, 112
    %v1224 = vpop.permute.xlu0 %1223
    %1225 = vrot.lane.b32.xlu0 %v1023, 112
    %v1226 = vpop.permute.xlu0 %1225
    %1227 = vrot.lane.b32.xlu0 %v1020, 112
    %v1228 = vpop.permute.xlu0 %1227
    %1229 = vrot.lane.b32.xlu0 %v1024, 112
    %v1230 = vpop.permute.xlu0 %1229
    %1231 = vrot.lane.b32.xlu0 %v1021, 112
    %v1232 = vpop.permute.xlu0 %1231
    %1233 = vrot.lane.b32.xlu0 %v1025, 112
    %v1234 = vpop.permute.xlu0 %1233
    %1235 = vrot.lane.b32.xlu0 %v1022, 112
    %v1236 = vpop.permute.xlu0 %1235
    %1237 = vrot.lane.b32.xlu0 %v1026, 112
    %v1238 = vpop.permute.xlu0 %1237
    %v1239 = vsel %vm410, %v1232, %v1236
    %v1240 = vsel %vm410, %v1234, %v1238
    %v1241 = vsel %vm410, %v1228, %v1232
    %v1242 = vsel %vm410, %v1230, %v1234
    %v1243 = vsel %vm410, %v1224, %v1228
    %v1244 = vsel %vm410, %v1226, %v1230
    %v1245 = vsel %vm410, %v1236, %v1224
    %v1246 = vsel %vm410, %v1238, %v1226
    %v1247 = vmul.f32 %v418, %v1243
    %v1248 = vmul.f32 %v422, %v1241
    %v1249 = vmul.f32 %v426, %v1239
    %v1250 = vmul.f32 %v430, %v1245
    %v1251 = vmul.f32 %v418, %v1244
    %v1252 = vmul.f32 %v422, %v1242
    %v1253 = vmul.f32 %v426, %v1240
    %v1254 = vmul.f32 %v430, %v1246
    %1255 = vrot.lane.b32.xlu0 %v1019, 111
    %v1256 = vpop.permute.xlu0 %1255
    %1257 = vrot.lane.b32.xlu0 %v1023, 111
    %v1258 = vpop.permute.xlu0 %1257
    %1259 = vrot.lane.b32.xlu0 %v1020, 111
    %v1260 = vpop.permute.xlu0 %1259
    %1261 = vrot.lane.b32.xlu0 %v1024, 111
    %v1262 = vpop.permute.xlu0 %1261
    %1263 = vrot.lane.b32.xlu0 %v1021, 111
    %v1264 = vpop.permute.xlu0 %1263
    %1265 = vrot.lane.b32.xlu0 %v1025, 111
    %v1266 = vpop.permute.xlu0 %1265
    %1267 = vrot.lane.b32.xlu0 %v1022, 111
    %v1268 = vpop.permute.xlu0 %1267
    %1269 = vrot.lane.b32.xlu0 %v1026, 111
    %v1270 = vpop.permute.xlu0 %1269
    %v1271 = vsel %vm443, %v1264, %v1268
    %v1272 = vsel %vm443, %v1266, %v1270
    %v1273 = vsel %vm443, %v1260, %v1264
    %v1274 = vsel %vm443, %v1262, %v1266
    %v1275 = vsel %vm443, %v1256, %v1260
    %v1276 = vsel %vm443, %v1258, %v1262
    %v1277 = vsel %vm443, %v1268, %v1256
    %v1278 = vsel %vm443, %v1270, %v1258
    %v1279 = vmul.f32 %v451, %v1275
    %v1280 = vmul.f32 %v455, %v1273
    %v1281 = vmul.f32 %v459, %v1271
    %v1282 = vmul.f32 %v463, %v1277
    %v1283 = vmul.f32 %v451, %v1276
    %v1284 = vmul.f32 %v455, %v1274
    %v1285 = vmul.f32 %v459, %v1272
    %v1286 = vmul.f32 %v463, %v1278
    %v1287 = vpack.c.bf16 %v1059, %v1055
    %v1288 = vpack.c.bf16 %v1060, %v1056
    %v1289 = vpack.c.bf16 %v1061, %v1057
    %v1290 = vpack.c.bf16 %v1062, %v1058
    %v1291 = vpack.c.bf16 %v1091, %v1087
    %v1292 = vpack.c.bf16 %v1092, %v1088
    %v1293 = vpack.c.bf16 %v1093, %v1089
    %v1294 = vpack.c.bf16 %v1094, %v1090
    %v1295 = vpack.c.bf16 %v1123, %v1119
    %v1296 = vpack.c.bf16 %v1124, %v1120
    %v1297 = vpack.c.bf16 %v1125, %v1121
    %v1298 = vpack.c.bf16 %v1126, %v1122
    %v1299 = vpack.c.bf16 %v1155, %v1151
    %v1300 = vpack.c.bf16 %v1156, %v1152
    %v1301 = vpack.c.bf16 %v1157, %v1153
    %v1302 = vpack.c.bf16 %v1158, %v1154
    %v1303 = vpack.c.bf16 %v1023, %v1019
    %v1304 = vpack.c.bf16 %v1024, %v1020
    %v1305 = vpack.c.bf16 %v1025, %v1021
    %v1306 = vpack.c.bf16 %v1026, %v1022
    %v1307 = vpack.c.bf16 %v1187, %v1183
    %v1308 = vpack.c.bf16 %v1188, %v1184
    %v1309 = vpack.c.bf16 %v1189, %v1185
    %v1310 = vpack.c.bf16 %v1190, %v1186
    %v1311 = vpack.c.bf16 %v1219, %v1215
    %v1312 = vpack.c.bf16 %v1220, %v1216
    %v1313 = vpack.c.bf16 %v1221, %v1217
    %v1314 = vpack.c.bf16 %v1222, %v1218
    %v1315 = vpack.c.bf16 %v1251, %v1247
    %v1316 = vpack.c.bf16 %v1252, %v1248
    %v1317 = vpack.c.bf16 %v1253, %v1249
    %v1318 = vpack.c.bf16 %v1254, %v1250
    %v1319 = vpack.c.bf16 %v1283, %v1279
    %v1320 = vpack.c.bf16 %v1284, %v1280
    %v1321 = vpack.c.bf16 %v1285, %v1281
    %v1322 = vpack.c.bf16 %v1286, %v1282
    %1324 = vset.pattern.permute.xlu0 0
    %1325 = vperm.xlu0 %1324, %v1029
    %v1326 = vpop.permute.xlu0 %1325
    %1329 = vset.pattern.permute.xlu0 0
    %1330 = vperm.xlu0 %1329, %v1030
    %v1331 = vpop.permute.xlu0 %1330
    %v1335 = vunpack.c.l.b16 %v1027
    %v1336 = vunpack.c.h.b16 %v1027
    %v1337 = vunpack.c.l.b16 %v1028
    %v1338 = vunpack.c.h.b16 %v1028
    %v1339 = vpack.c.b16 %v1337, %v1335
    %v1340 = vpack.c.b16 %v1338, %v1336
    %v1343 = vsel %vm929, %v1340, 0
    %1345 = vmatprep.subr.bf16.mxu0 %v1288
    %1346 = vmatpush1.bf16.msra.mxu0 %v1287
    %1347 = vmatprep.subr.bf16.mxu0 %v1292
    %1348 = vmatpush1.bf16.msra.mxu0 %v1291
    %1349 = vmatprep.subr.bf16.mxu0 %v1296
    %1350 = vmatpush1.bf16.msra.mxu0 %v1295
    %1351 = vmatprep.subr.bf16.mxu0 %v1300
    %1352 = vmatpush1.bf16.msra.mxu0 %v1299
    %1353 = vmatprep.subr.bf16.mxu0 %v1304
    %1354 = vmatpush1.bf16.msra.mxu0 %v1303
    %1355 = vmatprep.subr.bf16.mxu0 %v1308
    %1356 = vmatpush1.bf16.msra.mxu0 %v1307
    %1357 = vmatprep.subr.bf16.mxu0 %v1312
    %1358 = vmatpush1.bf16.msra.mxu0 %v1311
    %1359 = vmatprep.subr.bf16.mxu0 %v1316
    %1360 = vmatpush1.bf16.msra.mxu0 %v1315
    %1361 = vmatprep.subr.bf16.mxu0 %v1320
    %1362 = vmatpush1.bf16.msra.mxu0 %v1319
    %1363 = vmatprep.subr.bf16.mxu0 0
    %1364 = vmatpush1.bf16.msra.mxu0 0
    %1365 = vmatprep.subr.bf16.mxu0 0
    %1366 = vmatpush1.bf16.msra.mxu0 0
    %1367 = vmatprep.subr.bf16.mxu0 0
    %1368 = vmatpush1.bf16.msra.mxu0 0
    %1369 = vmatprep.subr.bf16.mxu0 0
    %1370 = vmatpush1.bf16.msra.mxu0 0
    %1371 = vmatprep.subr.bf16.mxu0 0
    %1372 = vmatpush1.bf16.msra.mxu0 0
    %1373 = vmatprep.subr.bf16.mxu0 0
    %1374 = vmatpush1.bf16.msra.mxu0 0
    %1375 = vmatprep.subr.bf16.mxu0 0
    %1376 = vmatpush1.bf16.msra.mxu0 0
    %1377 = vmatprep.mubr.bf16.mxu0 %v1343
    %1378 = vmatmul.mubr.bf16.gmra.mrb[0].mxu0 %v1339
    %v1379 = vpop.f32.mrb[0].mxu0
    %v1380 = vadd.f32 %v1326, %v1379
    %v1381 = vpop.f32.mrb[0].mxu0
    %v1382 = vadd.f32 %v1326, %v1381
    %v1383 = vpop.f32.mrb[0].mxu0
    %v1384 = vadd.f32 %v1331, %v1383
    %v1385 = vpop.f32.mrb[0].mxu0
    %v1386 = vadd.f32 %v1331, %v1385
    %1387 = vdwg.mxu0
    %1388 = vmatprep.subr.bf16.mxu0 %v1290
    %1389 = vmatpush1.bf16.msra.mxu0 %v1289
    %1390 = vmatprep.subr.bf16.mxu0 %v1294
    %1391 = vmatpush1.bf16.msra.mxu0 %v1293
    %1392 = vmatprep.subr.bf16.mxu0 %v1298
    %1393 = vmatpush1.bf16.msra.mxu0 %v1297
    %1394 = vmatprep.subr.bf16.mxu0 %v1302
    %1395 = vmatpush1.bf16.msra.mxu0 %v1301
    %1396 = vmatprep.subr.bf16.mxu0 %v1306
    %1397 = vmatpush1.bf16.msra.mxu0 %v1305
    %1398 = vmatprep.subr.bf16.mxu0 %v1310
    %1399 = vmatpush1.bf16.msra.mxu0 %v1309
    %1400 = vmatprep.subr.bf16.mxu0 %v1314
    %1401 = vmatpush1.bf16.msra.mxu0 %v1313
    %1402 = vmatprep.subr.bf16.mxu0 %v1318
    %1403 = vmatpush1.bf16.msra.mxu0 %v1317
    %1404 = vmatprep.subr.bf16.mxu0 %v1322
    %1405 = vmatpush1.bf16.msra.mxu0 %v1321
    %1406 = vmatprep.subr.bf16.mxu0 0
    %1407 = vmatpush1.bf16.msra.mxu0 0
    %1408 = vmatprep.subr.bf16.mxu0 0
    %1409 = vmatpush1.bf16.msra.mxu0 0
    %1410 = vmatprep.subr.bf16.mxu0 0
    %1411 = vmatpush1.bf16.msra.mxu0 0
    %1412 = vmatprep.subr.bf16.mxu0 0
    %1413 = vmatpush1.bf16.msra.mxu0 0
    %1414 = vmatprep.subr.bf16.mxu0 0
    %1415 = vmatpush1.bf16.msra.mxu0 0
    %1416 = vmatprep.subr.bf16.mxu0 0
    %1417 = vmatpush1.bf16.msra.mxu0 0
    %1418 = vmatprep.subr.bf16.mxu0 0
    %1419 = vmatpush1.bf16.msra.mxu0 0
    %1420 = vmatprep.mubr.bf16.mxu0 %v1343
    %1421 = vmatmul.mubr.bf16.gmra.mrb[0].mxu0 %v1339
    %v1422 = vpop.f32.mrb[0].mxu0
    %v1423 = vadd.f32 %v1326, %v1422
    %v1424 = vpop.f32.mrb[0].mxu0
    %v1425 = vadd.f32 %v1326, %v1424
    %v1426 = vpop.f32.mrb[0].mxu0
    %v1427 = vadd.f32 %v1331, %v1426
    %v1428 = vpop.f32.mrb[0].mxu0
    %v1429 = vadd.f32 %v1331, %v1428
    %1430 = vdwg.mxu0
    %v1431 = vmax.f32 %v1380, 0.0
    %v1432 = vmax.f32 %v1382, 0.0
    %v1433 = vmax.f32 %v1423, 0.0
    %v1434 = vmax.f32 %v1425, 0.0
    %v1435 = vmax.f32 %v1384, 0.0
    %v1436 = vmax.f32 %v1386, 0.0
    %v1437 = vmax.f32 %v1427, 0.0
    %v1438 = vmax.f32 %v1429, 0.0
    %v1439 = vadd.f32 %v1431, %v1019
    %v1440 = vadd.f32 %v1432, %v1020
    %v1441 = vadd.f32 %v1433, %v1021
    %v1442 = vadd.f32 %v1434, %v1022
    %v1443 = vadd.f32 %v1435, %v1023
    %v1444 = vadd.f32 %v1436, %v1024
    %v1445 = vadd.f32 %v1437, %v1025
    %v1446 = vadd.f32 %v1438, %v1026
    %v1447 = vld [vmem:[#allocation10] sm:$0xff]
    %v1448 = vld [vmem:[#allocation10 + $0x8] sm:$0xff]
    %v1449 = vld [vmem:[%s10] sm:$0xff]
    %v1450 = vld [vmem:[%s10 + $0x8] sm:$0xff]
    %1451 = vrot.lane.b32.xlu0 %v1439, 17
    %v1452 = vpop.permute.xlu0 %1451
    %1453 = vrot.lane.b32.xlu0 %v1443, 17
    %v1454 = vpop.permute.xlu0 %1453
    %1455 = vrot.lane.b32.xlu0 %v1440, 17
    %v1456 = vpop.permute.xlu0 %1455
    %1457 = vrot.lane.b32.xlu0 %v1444, 17
    %v1458 = vpop.permute.xlu0 %1457
    %1459 = vrot.lane.b32.xlu0 %v1441, 17
    %v1460 = vpop.permute.xlu0 %1459
    %1461 = vrot.lane.b32.xlu0 %v1445, 17
    %v1462 = vpop.permute.xlu0 %1461
    %1463 = vrot.lane.b32.xlu0 %v1442, 17
    %v1464 = vpop.permute.xlu0 %1463
    %1465 = vrot.lane.b32.xlu0 %v1446, 17
    %v1466 = vpop.permute.xlu0 %1465
    %v1467 = vsel %vm212, %v1460, %v1464
    %v1468 = vsel %vm212, %v1462, %v1466
    %v1469 = vsel %vm212, %v1456, %v1460
    %v1470 = vsel %vm212, %v1458, %v1462
    %v1471 = vsel %vm212, %v1452, %v1456
    %v1472 = vsel %vm212, %v1454, %v1458
    %v1473 = vsel %vm212, %v1464, %v1452
    %v1474 = vsel %vm212, %v1466, %v1454
    %v1475 = vmul.f32 %v220, %v1473
    %v1476 = vmul.f32 %v224, %v1471
    %v1477 = vmul.f32 %v228, %v1469
    %v1478 = vmul.f32 %v232, %v1467
    %v1479 = vmul.f32 %v220, %v1474
    %v1480 = vmul.f32 %v224, %v1472
    %v1481 = vmul.f32 %v228, %v1470
    %v1482 = vmul.f32 %v232, %v1468
    %1483 = vrot.lane.b32.xlu0 %v1439, 16
    %v1484 = vpop.permute.xlu0 %1483
    %1485 = vrot.lane.b32.xlu0 %v1443, 16
    %v1486 = vpop.permute.xlu0 %1485
    %1487 = vrot.lane.b32.xlu0 %v1440, 16
    %v1488 = vpop.permute.xlu0 %1487
    %1489 = vrot.lane.b32.xlu0 %v1444, 16
    %v1490 = vpop.permute.xlu0 %1489
    %1491 = vrot.lane.b32.xlu0 %v1441, 16
    %v1492 = vpop.permute.xlu0 %1491
    %1493 = vrot.lane.b32.xlu0 %v1445, 16
    %v1494 = vpop.permute.xlu0 %1493
    %1495 = vrot.lane.b32.xlu0 %v1442, 16
    %v1496 = vpop.permute.xlu0 %1495
    %1497 = vrot.lane.b32.xlu0 %v1446, 16
    %v1498 = vpop.permute.xlu0 %1497
    %v1499 = vsel %vm245, %v1492, %v1496
    %v1500 = vsel %vm245, %v1494, %v1498
    %v1501 = vsel %vm245, %v1488, %v1492
    %v1502 = vsel %vm245, %v1490, %v1494
    %v1503 = vsel %vm245, %v1484, %v1488
    %v1504 = vsel %vm245, %v1486, %v1490
    %v1505 = vsel %vm245, %v1496, %v1484
    %v1506 = vsel %vm245, %v1498, %v1486
    %v1507 = vmul.f32 %v253, %v1505
    %v1508 = vmul.f32 %v257, %v1503
    %v1509 = vmul.f32 %v261, %v1501
    %v1510 = vmul.f32 %v265, %v1499
    %v1511 = vmul.f32 %v253, %v1506
    %v1512 = vmul.f32 %v257, %v1504
    %v1513 = vmul.f32 %v261, %v1502
    %v1514 = vmul.f32 %v265, %v1500
    %1515 = vrot.lane.b32.xlu0 %v1439, 15
    %v1516 = vpop.permute.xlu0 %1515
    %1517 = vrot.lane.b32.xlu0 %v1443, 15
    %v1518 = vpop.permute.xlu0 %1517
    %1519 = vrot.lane.b32.xlu0 %v1440, 15
    %v1520 = vpop.permute.xlu0 %1519
    %1521 = vrot.lane.b32.xlu0 %v1444, 15
    %v1522 = vpop.permute.xlu0 %1521
    %1523 = vrot.lane.b32.xlu0 %v1441, 15
    %v1524 = vpop.permute.xlu0 %1523
    %1525 = vrot.lane.b32.xlu0 %v1445, 15
    %v1526 = vpop.permute.xlu0 %1525
    %1527 = vrot.lane.b32.xlu0 %v1442, 15
    %v1528 = vpop.permute.xlu0 %1527
    %1529 = vrot.lane.b32.xlu0 %v1446, 15
    %v1530 = vpop.permute.xlu0 %1529
    %v1531 = vsel %vm278, %v1524, %v1528
    %v1532 = vsel %vm278, %v1526, %v1530
    %v1533 = vsel %vm278, %v1520, %v1524
    %v1534 = vsel %vm278, %v1522, %v1526
    %v1535 = vsel %vm278, %v1516, %v1520
    %v1536 = vsel %vm278, %v1518, %v1522
    %v1537 = vsel %vm278, %v1528, %v1516
    %v1538 = vsel %vm278, %v1530, %v1518
    %v1539 = vmul.f32 %v286, %v1537
    %v1540 = vmul.f32 %v290, %v1535
    %v1541 = vmul.f32 %v294, %v1533
    %v1542 = vmul.f32 %v298, %v1531
    %v1543 = vmul.f32 %v286, %v1538
    %v1544 = vmul.f32 %v290, %v1536
    %v1545 = vmul.f32 %v294, %v1534
    %v1546 = vmul.f32 %v298, %v1532
    %1547 = vrot.lane.b32.xlu0 %v1439, 1
    %v1548 = vpop.permute.xlu0 %1547
    %1549 = vrot.lane.b32.xlu0 %v1443, 1
    %v1550 = vpop.permute.xlu0 %1549
    %1551 = vrot.lane.b32.xlu0 %v1440, 1
    %v1552 = vpop.permute.xlu0 %1551
    %1553 = vrot.lane.b32.xlu0 %v1444, 1
    %v1554 = vpop.permute.xlu0 %1553
    %1555 = vrot.lane.b32.xlu0 %v1441, 1
    %v1556 = vpop.permute.xlu0 %1555
    %1557 = vrot.lane.b32.xlu0 %v1445, 1
    %v1558 = vpop.permute.xlu0 %1557
    %1559 = vrot.lane.b32.xlu0 %v1442, 1
    %v1560 = vpop.permute.xlu0 %1559
    %1561 = vrot.lane.b32.xlu0 %v1446, 1
    %v1562 = vpop.permute.xlu0 %1561
    %v1563 = vsel %vm311, %v1556, %v1560
    %v1564 = vsel %vm311, %v1558, %v1562
    %v1565 = vsel %vm311, %v1552, %v1556
    %v1566 = vsel %vm311, %v1554, %v1558
    %v1567 = vsel %vm311, %v1548, %v1552
    %v1568 = vsel %vm311, %v1550, %v1554
    %v1569 = vsel %vm311, %v1560, %v1548
    %v1570 = vsel %vm311, %v1562, %v1550
    %v1571 = vmul.f32 %v319, %v1569
    %v1572 = vmul.f32 %v323, %v1567
    %v1573 = vmul.f32 %v327, %v1565
    %v1574 = vmul.f32 %v331, %v1563
    %v1575 = vmul.f32 %v319, %v1570
    %v1576 = vmul.f32 %v323, %v1568
    %v1577 = vmul.f32 %v327, %v1566
    %v1578 = vmul.f32 %v331, %v1564
    %1579 = vrot.lane.b32.xlu0 %v1439, 127
    %v1580 = vpop.permute.xlu0 %1579
    %1581 = vrot.lane.b32.xlu0 %v1443, 127
    %v1582 = vpop.permute.xlu0 %1581
    %1583 = vrot.lane.b32.xlu0 %v1440, 127
    %v1584 = vpop.permute.xlu0 %1583
    %1585 = vrot.lane.b32.xlu0 %v1444, 127
    %v1586 = vpop.permute.xlu0 %1585
    %1587 = vrot.lane.b32.xlu0 %v1441, 127
    %v1588 = vpop.permute.xlu0 %1587
    %1589 = vrot.lane.b32.xlu0 %v1445, 127
    %v1590 = vpop.permute.xlu0 %1589
    %1591 = vrot.lane.b32.xlu0 %v1442, 127
    %v1592 = vpop.permute.xlu0 %1591
    %1593 = vrot.lane.b32.xlu0 %v1446, 127
    %v1594 = vpop.permute.xlu0 %1593
    %v1595 = vsel %vm344, %v1588, %v1592
    %v1596 = vsel %vm344, %v1590, %v1594
    %v1597 = vsel %vm344, %v1584, %v1588
    %v1598 = vsel %vm344, %v1586, %v1590
    %v1599 = vsel %vm344, %v1580, %v1584
    %v1600 = vsel %vm344, %v1582, %v1586
    %v1601 = vsel %vm344, %v1592, %v1580
    %v1602 = vsel %vm344, %v1594, %v1582
    %v1603 = vmul.f32 %v352, %v1599
    %v1604 = vmul.f32 %v356, %v1597
    %v1605 = vmul.f32 %v360, %v1595
    %v1606 = vmul.f32 %v364, %v1601
    %v1607 = vmul.f32 %v352, %v1600
    %v1608 = vmul.f32 %v356, %v1598
    %v1609 = vmul.f32 %v360, %v1596
    %v1610 = vmul.f32 %v364, %v1602
    %1611 = vrot.lane.b32.xlu0 %v1439, 113
    %v1612 = vpop.permute.xlu0 %1611
    %1613 = vrot.lane.b32.xlu0 %v1443, 113
    %v1614 = vpop.permute.xlu0 %1613
    %1615 = vrot.lane.b32.xlu0 %v1440, 113
    %v1616 = vpop.permute.xlu0 %1615
    %1617 = vrot.lane.b32.xlu0 %v1444, 113
    %v1618 = vpop.permute.xlu0 %1617
    %1619 = vrot.lane.b32.xlu0 %v1441, 113
    %v1620 = vpop.permute.xlu0 %1619
    %1621 = vrot.lane.b32.xlu0 %v1445, 113
    %v1622 = vpop.permute.xlu0 %1621
    %1623 = vrot.lane.b32.xlu0 %v1442, 113
    %v1624 = vpop.permute.xlu0 %1623
    %1625 = vrot.lane.b32.xlu0 %v1446, 113
    %v1626 = vpop.permute.xlu0 %1625
    %v1627 = vsel %vm377, %v1620, %v1624
    %v1628 = vsel %vm377, %v1622, %v1626
    %v1629 = vsel %vm377, %v1616, %v1620
    %v1630 = vsel %vm377, %v1618, %v1622
    %v1631 = vsel %vm377, %v1612, %v1616
    %v1632 = vsel %vm377, %v1614, %v1618
    %v1633 = vsel %vm377, %v1624, %v1612
    %v1634 = vsel %vm377, %v1626, %v1614
    %v1635 = vmul.f32 %v385, %v1631
    %v1636 = vmul.f32 %v389, %v1629
    %v1637 = vmul.f32 %v393, %v1627
    %v1638 = vmul.f32 %v397, %v1633
    %v1639 = vmul.f32 %v385, %v1632
    %v1640 = vmul.f32 %v389, %v1630
    %v1641 = vmul.f32 %v393, %v1628
    %v1642 = vmul.f32 %v397, %v1634
    %1643 = vrot.lane.b32.xlu0 %v1439, 112
    %v1644 = vpop.permute.xlu0 %1643
    %1645 = vrot.lane.b32.xlu0 %v1443, 112
    %v1646 = vpop.permute.xlu0 %1645
    %1647 = vrot.lane.b32.xlu0 %v1440, 112
    %v1648 = vpop.permute.xlu0 %1647
    %1649 = vrot.lane.b32.xlu0 %v1444, 112
    %v1650 = vpop.permute.xlu0 %1649
    %1651 = vrot.lane.b32.xlu0 %v1441, 112
    %v1652 = vpop.permute.xlu0 %1651
    %1653 = vrot.lane.b32.xlu0 %v1445, 112
    %v1654 = vpop.permute.xlu0 %1653
    %1655 = vrot.lane.b32.xlu0 %v1442, 112
    %v1656 = vpop.permute.xlu0 %1655
    %1657 = vrot.lane.b32.xlu0 %v1446, 112
    %v1658 = vpop.permute.xlu0 %1657
    %v1659 = vsel %vm410, %v1652, %v1656
    %v1660 = vsel %vm410, %v1654, %v1658
    %v1661 = vsel %vm410, %v1648, %v1652
    %v1662 = vsel %vm410, %v1650, %v1654
    %v1663 = vsel %vm410, %v1644, %v1648
    %v1664 = vsel %vm410, %v1646, %v1650
    %v1665 = vsel %vm410, %v1656, %v1644
    %v1666 = vsel %vm410, %v1658, %v1646
    %v1667 = vmul.f32 %v418, %v1663
    %v1668 = vmul.f32 %v422, %v1661
    %v1669 = vmul.f32 %v426, %v1659
    %v1670 = vmul.f32 %v430, %v1665
    %v1671 = vmul.f32 %v418, %v1664
    %v1672 = vmul.f32 %v422, %v1662
    %v1673 = vmul.f32 %v426, %v1660
    %v1674 = vmul.f32 %v430, %v1666
    %1675 = vrot.lane.b32.xlu0 %v1439, 111
    %v1676 = vpop.permute.xlu0 %1675
    %1677 = vrot.lane.b32.xlu0 %v1443, 111
    %v1678 = vpop.permute.xlu0 %1677
    %1679 = vrot.lane.b32.xlu0 %v1440, 111
    %v1680 = vpop.permute.xlu0 %1679
    %1681 = vrot.lane.b32.xlu0 %v1444, 111
    %v1682 = vpop.permute.xlu0 %1681
    %1683 = vrot.lane.b32.xlu0 %v1441, 111
    %v1684 = vpop.permute.xlu0 %1683
    %1685 = vrot.lane.b32.xlu0 %v1445, 111
    %v1686 = vpop.permute.xlu0 %1685
    %1687 = vrot.lane.b32.xlu0 %v1442, 111
    %v1688 = vpop.permute.xlu0 %1687
    %1689 = vrot.lane.b32.xlu0 %v1446, 111
    %v1690 = vpop.permute.xlu0 %1689
    %v1691 = vsel %vm443, %v1684, %v1688
    %v1692 = vsel %vm443, %v1686, %v1690
    %v1693 = vsel %vm443, %v1680, %v1684
    %v1694 = vsel %vm443, %v1682, %v1686
    %v1695 = vsel %vm443, %v1676, %v1680
    %v1696 = vsel %vm443, %v1678, %v1682
    %v1697 = vsel %vm443, %v1688, %v1676
    %v1698 = vsel %vm443, %v1690, %v1678
    %v1699 = vmul.f32 %v451, %v1695
    %v1700 = vmul.f32 %v455, %v1693
    %v1701 = vmul.f32 %v459, %v1691
    %v1702 = vmul.f32 %v463, %v1697
    %v1703 = vmul.f32 %v451, %v1696
    %v1704 = vmul.f32 %v455, %v1694
    %v1705 = vmul.f32 %v459, %v1692
    %v1706 = vmul.f32 %v463, %v1698
    %v1707 = vpack.c.bf16 %v1479, %v1475
    %v1708 = vpack.c.bf16 %v1480, %v1476
    %v1709 = vpack.c.bf16 %v1481, %v1477
    %v1710 = vpack.c.bf16 %v1482, %v1478
    %v1711 = vpack.c.bf16 %v1511, %v1507
    %v1712 = vpack.c.bf16 %v1512, %v1508
    %v1713 = vpack.c.bf16 %v1513, %v1509
    %v1714 = vpack.c.bf16 %v1514, %v1510
    %v1715 = vpack.c.bf16 %v1543, %v1539
    %v1716 = vpack.c.bf16 %v1544, %v1540
    %v1717 = vpack.c.bf16 %v1545, %v1541
    %v1718 = vpack.c.bf16 %v1546, %v1542
    %v1719 = vpack.c.bf16 %v1575, %v1571
    %v1720 = vpack.c.bf16 %v1576, %v1572
    %v1721 = vpack.c.bf16 %v1577, %v1573
    %v1722 = vpack.c.bf16 %v1578, %v1574
    %v1723 = vpack.c.bf16 %v1443, %v1439
    %v1724 = vpack.c.bf16 %v1444, %v1440
    %v1725 = vpack.c.bf16 %v1445, %v1441
    %v1726 = vpack.c.bf16 %v1446, %v1442
    %v1727 = vpack.c.bf16 %v1607, %v1603
    %v1728 = vpack.c.bf16 %v1608, %v1604
    %v1729 = vpack.c.bf16 %v1609, %v1605
    %v1730 = vpack.c.bf16 %v1610, %v1606
    %v1731 = vpack.c.bf16 %v1639, %v1635
    %v1732 = vpack.c.bf16 %v1640, %v1636
    %v1733 = vpack.c.bf16 %v1641, %v1637
    %v1734 = vpack.c.bf16 %v1642, %v1638
    %v1735 = vpack.c.bf16 %v1671, %v1667
    %v1736 = vpack.c.bf16 %v1672, %v1668
    %v1737 = vpack.c.bf16 %v1673, %v1669
    %v1738 = vpack.c.bf16 %v1674, %v1670
    %v1739 = vpack.c.bf16 %v1703, %v1699
    %v1740 = vpack.c.bf16 %v1704, %v1700
    %v1741 = vpack.c.bf16 %v1705, %v1701
    %v1742 = vpack.c.bf16 %v1706, %v1702
    %1744 = vset.pattern.permute.xlu0 0
    %1745 = vperm.xlu0 %1744, %v1449
    %v1746 = vpop.permute.xlu0 %1745
    %1749 = vset.pattern.permute.xlu0 0
    %1750 = vperm.xlu0 %1749, %v1450
    %v1751 = vpop.permute.xlu0 %1750
    %v1755 = vunpack.c.l.b16 %v1447
    %v1756 = vunpack.c.h.b16 %v1447
    %v1757 = vunpack.c.l.b16 %v1448
    %v1758 = vunpack.c.h.b16 %v1448
    %v1759 = vpack.c.b16 %v1757, %v1755
    %v1760 = vpack.c.b16 %v1758, %v1756
    %v1763 = vsel %vm929, %v1760, 0
    %1765 = vmatprep.subr.bf16.mxu0 %v1708
    %1766 = vmatpush1.bf16.msra.mxu0 %v1707
    %1767 = vmatprep.subr.bf16.mxu0 %v1712
    %1768 = vmatpush1.bf16.msra.mxu0 %v1711
    %1769 = vmatprep.subr.bf16.mxu0 %v1716
    %1770 = vmatpush1.bf16.msra.mxu0 %v1715
    %1771 = vmatprep.subr.bf16.mxu0 %v1720
    %1772 = vmatpush1.bf16.msra.mxu0 %v1719
    %1773 = vmatprep.subr.bf16.mxu0 %v1724
    %1774 = vmatpush1.bf16.msra.mxu0 %v1723
    %1775 = vmatprep.subr.bf16.mxu0 %v1728
    %1776 = vmatpush1.bf16.msra.mxu0 %v1727
    %1777 = vmatprep.subr.bf16.mxu0 %v1732
    %1778 = vmatpush1.bf16.msra.mxu0 %v1731
    %1779 = vmatprep.subr.bf16.mxu0 %v1736
    %1780 = vmatpush1.bf16.msra.mxu0 %v1735
    %1781 = vmatprep.subr.bf16.mxu0 %v1740
    %1782 = vmatpush1.bf16.msra.mxu0 %v1739
    %1783 = vmatprep.subr.bf16.mxu0 0
    %1784 = vmatpush1.bf16.msra.mxu0 0
    %1785 = vmatprep.subr.bf16.mxu0 0
    %1786 = vmatpush1.bf16.msra.mxu0 0
    %1787 = vmatprep.subr.bf16.mxu0 0
    %1788 = vmatpush1.bf16.msra.mxu0 0
    %1789 = vmatprep.subr.bf16.mxu0 0
    %1790 = vmatpush1.bf16.msra.mxu0 0
    %1791 = vmatprep.subr.bf16.mxu0 0
    %1792 = vmatpush1.bf16.msra.mxu0 0
    %1793 = vmatprep.subr.bf16.mxu0 0
    %1794 = vmatpush1.bf16.msra.mxu0 0
    %1795 = vmatprep.subr.bf16.mxu0 0
    %1796 = vmatpush1.bf16.msra.mxu0 0
    %1797 = vmatprep.mubr.bf16.mxu0 %v1763
    %1798 = vmatmul.mubr.bf16.gmra.mrb[0].mxu0 %v1759
    %v1799 = vpop.f32.mrb[0].mxu0
    %v1800 = vadd.f32 %v1746, %v1799
    %v1801 = vpop.f32.mrb[0].mxu0
    %v1802 = vadd.f32 %v1746, %v1801
    %v1803 = vpop.f32.mrb[0].mxu0
    %v1804 = vadd.f32 %v1751, %v1803
    %v1805 = vpop.f32.mrb[0].mxu0
    %v1806 = vadd.f32 %v1751, %v1805
    %1807 = vdwg.mxu0
    %1808 = vmatprep.subr.bf16.mxu0 %v1710
    %1809 = vmatpush1.bf16.msra.mxu0 %v1709
    %1810 = vmatprep.subr.bf16.mxu0 %v1714
    %1811 = vmatpush1.bf16.msra.mxu0 %v1713
    %1812 = vmatprep.subr.bf16.mxu0 %v1718
    %1813 = vmatpush1.bf16.msra.mxu0 %v1717
    %1814 = vmatprep.subr.bf16.mxu0 %v1722
    %1815 = vmatpush1.bf16.msra.mxu0 %v1721
    %1816 = vmatprep.subr.bf16.mxu0 %v1726
    %1817 = vmatpush1.bf16.msra.mxu0 %v1725
    %1818 = vmatprep.subr.bf16.mxu0 %v1730
    %1819 = vmatpush1.bf16.msra.mxu0 %v1729
    %1820 = vmatprep.subr.bf16.mxu0 %v1734
    %1821 = vmatpush1.bf16.msra.mxu0 %v1733
    %1822 = vmatprep.subr.bf16.mxu0 %v1738
    %1823 = vmatpush1.bf16.msra.mxu0 %v1737
    %1824 = vmatprep.subr.bf16.mxu0 %v1742
    %1825 = vmatpush1.bf16.msra.mxu0 %v1741
    %1826 = vmatprep.subr.bf16.mxu0 0
    %1827 = vmatpush1.bf16.msra.mxu0 0
    %1828 = vmatprep.subr.bf16.mxu0 0
    %1829 = vmatpush1.bf16.msra.mxu0 0
    %1830 = vmatprep.subr.bf16.mxu0 0
    %1831 = vmatpush1.bf16.msra.mxu0 0
    %1832 = vmatprep.subr.bf16.mxu0 0
    %1833 = vmatpush1.bf16.msra.mxu0 0
    %1834 = vmatprep.subr.bf16.mxu0 0
    %1835 = vmatpush1.bf16.msra.mxu0 0
    %1836 = vmatprep.subr.bf16.mxu0 0
    %1837 = vmatpush1.bf16.msra.mxu0 0
    %1838 = vmatprep.subr.bf16.mxu0 0
    %1839 = vmatpush1.bf16.msra.mxu0 0
    %1840 = vmatprep.mubr.bf16.mxu0 %v1763
    %1841 = vmatmul.mubr.bf16.gmra.mrb[0].mxu0 %v1759
    %v1842 = vpop.f32.mrb[0].mxu0
    %v1843 = vadd.f32 %v1746, %v1842
    %v1844 = vpop.f32.mrb[0].mxu0
    %v1845 = vadd.f32 %v1746, %v1844
    %v1846 = vpop.f32.mrb[0].mxu0
    %v1847 = vadd.f32 %v1751, %v1846
    %v1848 = vpop.f32.mrb[0].mxu0
    %v1849 = vadd.f32 %v1751, %v1848
    %1850 = vdwg.mxu0
    %v1851 = vmax.f32 %v1800, 0.0
    %v1852 = vmax.f32 %v1802, 0.0
    %v1853 = vmax.f32 %v1843, 0.0
    %v1854 = vmax.f32 %v1845, 0.0
    %v1855 = vmax.f32 %v1804, 0.0
    %v1856 = vmax.f32 %v1806, 0.0
    %v1857 = vmax.f32 %v1847, 0.0
    %v1858 = vmax.f32 %v1849, 0.0
    %v1859 = vadd.f32 %v1851, %v1439
    %v1860 = vadd.f32 %v1852, %v1440
    %v1861 = vadd.f32 %v1853, %v1441
    %v1862 = vadd.f32 %v1854, %v1442
    %v1863 = vadd.f32 %v1855, %v1443
    %v1864 = vadd.f32 %v1856, %v1444
    %v1865 = vadd.f32 %v1857, %v1445
    %v1866 = vadd.f32 %v1858, %v1446
    %v1867 = vmax.f32 %v1859, %v1860
    %1868 = vmax.xlane.f32.xlu0 %v1867
    %v1869 = vpop.xlane.xlu0 %1868
    %v1870 = vmax.f32 %v1863, %v1864
    %1871 = vmax.xlane.f32.xlu0 %v1870
    %v1872 = vpop.xlane.xlu0 %1871
    %v1873 = vmax.f32 %v1861, %v1862
    %1874 = vmax.xlane.f32.xlu0 %v1873
    %v1875 = vpop.xlane.xlu0 %1874
    %v1876 = vmax.f32 %v1865, %v1866
    %1877 = vmax.xlane.f32.xlu0 %v1876
    %v1878 = vpop.xlane.xlu0 %1877
    %vm1879 = vcmask 7168
    %v1880 = vsel %vm1879, %v1869, %v1875
    %v1881 = vsel %vm1879, %v1872, %v1878
    %1882 = vxpose.xlu0.b32.start [1/16] %v1880, 128
    %1883 = vxpose.xlu0.b32.cont [2/16] %v1881, 128
    %1884 = vxpose.xlu0.b32.cont [3/16] 0.0, 128
    %1885 = vxpose.xlu0.b32.cont [4/16] 0.0, 128
    %1886 = vxpose.xlu0.b32.cont [5/16] 0.0, 128
    %1887 = vxpose.xlu0.b32.cont [6/16] 0.0, 128
    %1888 = vxpose.xlu0.b32.cont [7/16] 0.0, 128
    %1889 = vxpose.xlu0.b32.cont [8/16] 0.0, 128
    %1890 = vxpose.xlu0.b32.cont [9/16] 0.0, 128
    %1891 = vxpose.xlu0.b32.cont [10/16] 0.0, 128
    %1892 = vxpose.xlu0.b32.cont [11/16] 0.0, 128
    %1893 = vxpose.xlu0.b32.cont [12/16] 0.0, 128
    %1894 = vxpose.xlu0.b32.cont [13/16] 0.0, 128
    %1895 = vxpose.xlu0.b32.cont [14/16] 0.0, 128
    %1896 = vxpose.xlu0.b32.cont [15/16] 0.0, 128
    %1897 = vxpose.xlu0.b32.end [16/16] 0.0, 128
    %v1898 = vpop.trf.xlu0
    %v1899 = vpop.trf.xlu0
    %v1900 = vpop.trf.xlu0
    %v1901 = vpop.trf.xlu0
    %v1902 = vpop.trf.xlu0
    %v1903 = vpop.trf.xlu0
    %v1904 = vpop.trf.xlu0
    %v1905 = vpop.trf.xlu0
    %v1906 = vpop.trf.xlu0
    %v1907 = vpop.trf.xlu0
    %v1908 = vpop.trf.xlu0
    %v1909 = vpop.trf.xlu0
    %v1910 = vpop.trf.xlu0
    %v1911 = vpop.trf.xlu0
    %v1912 = vpop.trf.xlu0
    %v1913 = vpop.trf.xlu0
    %v1914 = vld [vmem:[#allocation11] sm:$0xff]
    %v1915 = vld [vmem:[#allocation11 + $0x8] sm:$0xff]
    %v1916 = vld [vmem:[#allocation13] sm:$0x1]
    %v1918 = vlaneseq
    %v1919 = vshrl.u32 %v1918, 7
    %v1920 = vsub.s32 0, %v1919
    %v1921 = vrot.slane %v1916, %v1920
    %v1924 = vsel %vm929, %v1898, 0
    %1926 = vmatprep.subr.mxu0 0.0
    %1927 = vmatpush1.msra.mxu0 %v1914
    %1928 = vmatprep.subr.mxu0 0.0
    %1929 = vmatpush1.msra.mxu0 %v1915
    %1930 = vmatprep.subr.mxu0 0.0
    %1931 = vmatpush1.msra.mxu0 0.0
    %1932 = vmatprep.subr.mxu0 0.0
    %1933 = vmatpush1.msra.mxu0 0.0
    %1934 = vmatprep.subr.mxu0 0.0
    %1935 = vmatpush1.msra.mxu0 0.0
    %1936 = vmatprep.subr.mxu0 0.0
    %1937 = vmatpush1.msra.mxu0 0.0
    %1938 = vmatprep.subr.mxu0 0.0
    %1939 = vmatpush1.msra.mxu0 0.0
    %1940 = vmatprep.subr.mxu0 0.0
    %1941 = vmatpush1.msra.mxu0 0.0
    %1942 = vmatprep.subr.mxu0 0.0
    %1943 = vmatpush1.msra.mxu0 0.0
    %1944 = vmatprep.subr.mxu0 0.0
    %1945 = vmatpush1.msra.mxu0 0.0
    %1946 = vmatprep.subr.mxu0 0.0
    %1947 = vmatpush1.msra.mxu0 0.0
    %1948 = vmatprep.subr.mxu0 0.0
    %1949 = vmatpush1.msra.mxu0 0.0
    %1950 = vmatprep.subr.mxu0 0.0
    %1951 = vmatpush1.msra.mxu0 0.0
    %1952 = vmatprep.subr.mxu0 0.0
    %1953 = vmatpush1.msra.mxu0 0.0
    %1954 = vmatprep.subr.mxu0 0.0
    %1955 = vmatpush1.msra.mxu0 0.0
    %1956 = vmatprep.subr.mxu0 0.0
    %1957 = vmatpush1.msra.mxu0 0.0
    %1958 = vmatprep.subr.mxu0 0.0
    %1959 = vmatpush1.msra.mxu0 0.0
    %1960 = vmatprep.subr.mxu0 0.0
    %1961 = vmatpush1.msra.mxu0 0.0
    %1962 = vmatprep.subr.mxu0 0.0
    %1963 = vmatpush1.msra.mxu0 0.0
    %1964 = vmatprep.subr.mxu0 0.0
    %1965 = vmatpush1.msra.mxu0 0.0
    %1966 = vmatprep.subr.mxu0 0.0
    %1967 = vmatpush1.msra.mxu0 0.0
    %1968 = vmatprep.subr.mxu0 0.0
    %1969 = vmatpush1.msra.mxu0 0.0
    %1970 = vmatprep.subr.mxu0 0.0
    %1971 = vmatpush1.msra.mxu0 0.0
    %1972 = vmatprep.subr.mxu0 0.0
    %1973 = vmatpush1.msra.mxu0 0.0
    %1974 = vmatprep.subr.mxu0 0.0
    %1975 = vmatpush1.msra.mxu0 0.0
    %1976 = vmatprep.subr.mxu0 0.0
    %1977 = vmatpush1.msra.mxu0 0.0
    %1978 = vmatprep.subr.mxu0 0.0
    %1979 = vmatpush1.msra.mxu0 0.0
    %1980 = vmatprep.subr.mxu0 0.0
    %1981 = vmatpush1.msra.mxu0 0.0
    %1982 = vmatprep.subr.mxu0 0.0
    %1983 = vmatpush1.msra.mxu0 0.0
    %1984 = vmatprep.subr.mxu0 0.0
    %1985 = vmatpush1.msra.mxu0 0.0
    %1986 = vmatprep.subr.mxu0 0.0
    %1987 = vmatpush1.msra.mxu0 0.0
    %1988 = vmatprep.subr.mxu0 0.0
    %1989 = vmatpush1.msra.mxu0 0.0
    %1990 = vmatprep.mubr.f32.mxu0 0.0
    %1991 = vmatmul.mubr.f32.gmra.mrb[0].mxu0 %v1924
    %v1992 = vpop.f32.mrb[0].mxu0
    %v1993 = vadd.f32 %v1921, %v1992
    %v1994 = vpop.f32.mrb[0].mxu0
    %1995 = vdwg.mxu0
    %v1996 = vmax.f32 %v1993, 0.0
    %v1997 = vld [vmem:[%s13] sm:$0xff]
    %v1998 = vld [vmem:[%s13 + $0x8] sm:$0xff]
    %v1999 = vld [vmem:[%s13 + $0x10] sm:$0xff]
    %v2000 = vld [vmem:[%s13 + $0x18] sm:$0xff]
    %v2001 = vld [vmem:[#allocation14] sm:$0x1]
    %v2003 = vlaneseq
    %v2004 = vshrl.u32 %v2003, 7
    %v2005 = vsub.s32 0, %v2004
    %v2006 = vrot.slane %v2001, %v2005
    %vm2008 = vcmask 261120
    %v2010 = vsel %vm2008, %v1996, 0
    %2012 = vmatprep.subr.mxu0 0.0
    %2013 = vmatpush1.msra.mxu0 %v1997
    %2014 = vmatprep.subr.mxu0 0.0
    %2015 = vmatpush1.msra.mxu0 %v1998
    %2016 = vmatprep.subr.mxu0 0.0
    %2017 = vmatpush1.msra.mxu0 %v1999
    %2018 = vmatprep.subr.mxu0 0.0
    %2019 = vmatpush1.msra.mxu0 %v2000
    %2020 = vmatprep.subr.mxu0 0.0
    %2021 = vmatpush1.msra.mxu0 0.0
    %2022 = vmatprep.subr.mxu0 0.0
    %2023 = vmatpush1.msra.mxu0 0.0
    %2024 = vmatprep.subr.mxu0 0.0
    %2025 = vmatpush1.msra.mxu0 0.0
    %2026 = vmatprep.subr.mxu0 0.0
    %2027 = vmatpush1.msra.mxu0 0.0
    %2028 = vmatprep.subr.mxu0 0.0
    %2029 = vmatpush1.msra.mxu0 0.0
    %2030 = vmatprep.subr.mxu0 0.0
    %2031 = vmatpush1.msra.mxu0 0.0
    %2032 = vmatprep.subr.mxu0 0.0
    %2033 = vmatpush1.msra.mxu0 0.0
    %2034 = vmatprep.subr.mxu0 0.0
    %2035 = vmatpush1.msra.mxu0 0.0
    %2036 = vmatprep.subr.mxu0 0.0
    %2037 = vmatpush1.msra.mxu0 0.0
    %2038 = vmatprep.subr.mxu0 0.0
    %2039 = vmatpush1.msra.mxu0 0.0
    %2040 = vmatprep.subr.mxu0 0.0
    %2041 = vmatpush1.msra.mxu0 0.0
    %2042 = vmatprep.subr.mxu0 0.0
    %2043 = vmatpush1.msra.mxu0 0.0
    %2044 = vmatprep.subr.mxu0 0.0
    %2045 = vmatpush1.msra.mxu0 0.0
    %2046 = vmatprep.subr.mxu0 0.0
    %2047 = vmatpush1.msra.mxu0 0.0
    %2048 = vmatprep.subr.mxu0 0.0
    %2049 = vmatpush1.msra.mxu0 0.0
    %2050 = vmatprep.subr.mxu0 0.0
    %2051 = vmatpush1.msra.mxu0 0.0
    %2052 = vmatprep.subr.mxu0 0.0
    %2053 = vmatpush1.msra.mxu0 0.0
    %2054 = vmatprep.subr.mxu0 0.0
    %2055 = vmatpush1.msra.mxu0 0.0
    %2056 = vmatprep.subr.mxu0 0.0
    %2057 = vmatpush1.msra.mxu0 0.0
    %2058 = vmatprep.subr.mxu0 0.0
    %2059 = vmatpush1.msra.mxu0 0.0
    %2060 = vmatprep.subr.mxu0 0.0
    %2061 = vmatpush1.msra.mxu0 0.0
    %2062 = vmatprep.subr.mxu0 0.0
    %2063 = vmatpush1.msra.mxu0 0.0
    %2064 = vmatprep.subr.mxu0 0.0
    %2065 = vmatpush1.msra.mxu0 0.0
    %2066 = vmatprep.subr.mxu0 0.0
    %2067 = vmatpush1.msra.mxu0 0.0
    %2068 = vmatprep.subr.mxu0 0.0
    %2069 = vmatpush1.msra.mxu0 0.0
    %2070 = vmatprep.subr.mxu0 0.0
    %2071 = vmatpush1.msra.mxu0 0.0
    %2072 = vmatprep.subr.mxu0 0.0
    %2073 = vmatpush1.msra.mxu0 0.0
    %2074 = vmatprep.subr.mxu0 0.0
    %2075 = vmatpush1.msra.mxu0 0.0
    %2076 = vmatprep.mubr.f32.mxu0 0.0
    %2077 = vmatmul.mubr.f32.gmra.mrb[0].mxu0 %v2010
    %v2078 = vpop.f32.mrb[0].mxu0
    %v2079 = vadd.f32 %v2006, %v2078
    %v2080 = vpop.f32.mrb[0].mxu0
    %2081 = vdwg.mxu0
    %v2082 = vmax.f32 %v2079, 0.0
    %v2083 = vld [vmem:[#allocation2] sm:$0x3]
    %v2084 = vld [vmem:[%s15] sm:$0xff]
    %v2085 = vld [vmem:[%s15 + $0x8] sm:$0xff]
    %v2086 = vld [vmem:[%s15 + $0x10] sm:$0xff]
    %v2087 = vld [vmem:[%s15 + $0x18] sm:$0xff]
    %v2088 = vld [vmem:[%s17] sm:$0x1]
    %v2090 = vlaneseq
    %v2091 = vshrl.u32 %v2090, 7
    %v2092 = vsub.s32 0, %v2091
    %v2093 = vrot.slane %v2088, %v2092
    %v2096 = vsel %vm2008, %v2082, 0
    %2098 = vmatprep.subr.mxu0 0.0
    %2099 = vmatpush1.msra.mxu0 %v2084
    %2100 = vmatprep.subr.mxu0 0.0
    %2101 = vmatpush1.msra.mxu0 %v2085
    %2102 = vmatprep.subr.mxu0 0.0
    %2103 = vmatpush1.msra.mxu0 %v2086
    %2104 = vmatprep.subr.mxu0 0.0
    %2105 = vmatpush1.msra.mxu0 %v2087
    %2106 = vmatprep.subr.mxu0 0.0
    %2107 = vmatpush1.msra.mxu0 0.0
    %2108 = vmatprep.subr.mxu0 0.0
    %2109 = vmatpush1.msra.mxu0 0.0
    %2110 = vmatprep.subr.mxu0 0.0
    %2111 = vmatpush1.msra.mxu0 0.0
    %2112 = vmatprep.subr.mxu0 0.0
    %2113 = vmatpush1.msra.mxu0 0.0
    %2114 = vmatprep.subr.mxu0 0.0
    %2115 = vmatpush1.msra.mxu0 0.0
    %2116 = vmatprep.subr.mxu0 0.0
    %2117 = vmatpush1.msra.mxu0 0.0
    %2118 = vmatprep.subr.mxu0 0.0
    %2119 = vmatpush1.msra.mxu0 0.0
    %2120 = vmatprep.subr.mxu0 0.0
    %2121 = vmatpush1.msra.mxu0 0.0
    %2122 = vmatprep.subr.mxu0 0.0
    %2123 = vmatpush1.msra.mxu0 0.0
    %2124 = vmatprep.subr.mxu0 0.0
    %2125 = vmatpush1.msra.mxu0 0.0
    %2126 = vmatprep.subr.mxu0 0.0
    %2127 = vmatpush1.msra.mxu0 0.0
    %2128 = vmatprep.subr.mxu0 0.0
    %2129 = vmatpush1.msra.mxu0 0.0
    %2130 = vmatprep.subr.mxu0 0.0
    %2131 = vmatpush1.msra.mxu0 0.0
    %2132 = vmatprep.subr.mxu0 0.0
    %2133 = vmatpush1.msra.mxu0 0.0
    %2134 = vmatprep.subr.mxu0 0.0
    %2135 = vmatpush1.msra.mxu0 0.0
    %2136 = vmatprep.subr.mxu0 0.0
    %2137 = vmatpush1.msra.mxu0 0.0
    %2138 = vmatprep.subr.mxu0 0.0
    %2139 = vmatpush1.msra.mxu0 0.0
    %2140 = vmatprep.subr.mxu0 0.0
    %2141 = vmatpush1.msra.mxu0 0.0
    %2142 = vmatprep.subr.mxu0 0.0
    %2143 = vmatpush1.msra.mxu0 0.0
    %2144 = vmatprep.subr.mxu0 0.0
    %2145 = vmatpush1.msra.mxu0 0.0
    %2146 = vmatprep.subr.mxu0 0.0
    %2147 = vmatpush1.msra.mxu0 0.0
    %2148 = vmatprep.subr.mxu0 0.0
    %2149 = vmatpush1.msra.mxu0 0.0
    %2150 = vmatprep.subr.mxu0 0.0
    %2151 = vmatpush1.msra.mxu0 0.0
    %2152 = vmatprep.subr.mxu0 0.0
    %2153 = vmatpush1.msra.mxu0 0.0
    %2154 = vmatprep.subr.mxu0 0.0
    %2155 = vmatpush1.msra.mxu0 0.0
    %2156 = vmatprep.subr.mxu0 0.0
    %2157 = vmatpush1.msra.mxu0 0.0
    %2158 = vmatprep.subr.mxu0 0.0
    %2159 = vmatpush1.msra.mxu0 0.0
    %2160 = vmatprep.subr.mxu0 0.0
    %2161 = vmatpush1.msra.mxu0 0.0
    %2162 = vmatprep.mubr.f32.mxu0 0.0
    %2163 = vmatmul.mubr.f32.gmra.mrb[0].mxu0 %v2096
    %v2164 = vpop.f32.mrb[0].mxu0
    %v2165 = vadd.f32 %v2093, %v2164
    %v2166 = vpop.f32.mrb[0].mxu0
    %2167 = vdwg.mxu0
    %v2168 = vld [vmem:[#allocation16] sm:$0xff]
    %v2169 = vld [vmem:[#allocation16 + $0x8] sm:$0xff]
    %v2170 = vld [vmem:[#allocation16 + $0x10] sm:$0xff]
    %v2171 = vld [vmem:[#allocation16 + $0x18] sm:$0xff]
    %v2172 = vld [vmem:[%s18] sm:$0x1]
    %v2174 = vlaneseq
    %v2175 = vshrl.u32 %v2174, 7
    %v2176 = vsub.s32 0, %v2175
    %v2177 = vrot.slane %v2172, %v2176
    %v2180 = vsel %vm2008, %v2083, 0
    %2182 = vmatprep.subr.mxu0 0.0
    %2183 = vmatpush1.msra.mxu0 %v2168
    %2184 = vmatprep.subr.mxu0 0.0
    %2185 = vmatpush1.msra.mxu0 %v2169
    %2186 = vmatprep.subr.mxu0 0.0
    %2187 = vmatpush1.msra.mxu0 %v2170
    %2188 = vmatprep.subr.mxu0 0.0
    %2189 = vmatpush1.msra.mxu0 %v2171
    %2190 = vmatprep.subr.mxu0 0.0
    %2191 = vmatpush1.msra.mxu0 0.0
    %2192 = vmatprep.subr.mxu0 0.0
    %2193 = vmatpush1.msra.mxu0 0.0
    %2194 = vmatprep.subr.mxu0 0.0
    %2195 = vmatpush1.msra.mxu0 0.0
    %2196 = vmatprep.subr.mxu0 0.0
    %2197 = vmatpush1.msra.mxu0 0.0
    %2198 = vmatprep.subr.mxu0 0.0
    %2199 = vmatpush1.msra.mxu0 0.0
    %2200 = vmatprep.subr.mxu0 0.0
    %2201 = vmatpush1.msra.mxu0 0.0
    %2202 = vmatprep.subr.mxu0 0.0
    %2203 = vmatpush1.msra.mxu0 0.0
    %2204 = vmatprep.subr.mxu0 0.0
    %2205 = vmatpush1.msra.mxu0 0.0
    %2206 = vmatprep.subr.mxu0 0.0
    %2207 = vmatpush1.msra.mxu0 0.0
    %2208 = vmatprep.subr.mxu0 0.0
    %2209 = vmatpush1.msra.mxu0 0.0
    %2210 = vmatprep.subr.mxu0 0.0
    %2211 = vmatpush1.msra.mxu0 0.0
    %2212 = vmatprep.subr.mxu0 0.0
    %2213 = vmatpush1.msra.mxu0 0.0
    %2214 = vmatprep.subr.mxu0 0.0
    %2215 = vmatpush1.msra.mxu0 0.0
    %2216 = vmatprep.subr.mxu0 0.0
    %2217 = vmatpush1.msra.mxu0 0.0
    %2218 = vmatprep.subr.mxu0 0.0
    %2219 = vmatpush1.msra.mxu0 0.0
    %2220 = vmatprep.subr.mxu0 0.0
    %2221 = vmatpush1.msra.mxu0 0.0
    %2222 = vmatprep.subr.mxu0 0.0
    %2223 = vmatpush1.msra.mxu0 0.0
    %2224 = vmatprep.subr.mxu0 0.0
    %2225 = vmatpush1.msra.mxu0 0.0
    %2226 = vmatprep.subr.mxu0 0.0
    %2227 = vmatpush1.msra.mxu0 0.0
    %2228 = vmatprep.subr.mxu0 0.0
    %2229 = vmatpush1.msra.mxu0 0.0
    %2230 = vmatprep.subr.mxu0 0.0
    %2231 = vmatpush1.msra.mxu0 0.0
    %2232 = vmatprep.subr.mxu0 0.0
    %2233 = vmatpush1.msra.mxu0 0.0
    %2234 = vmatprep.subr.mxu0 0.0
    %2235 = vmatpush1.msra.mxu0 0.0
    %2236 = vmatprep.subr.mxu0 0.0
    %2237 = vmatpush1.msra.mxu0 0.0
    %2238 = vmatprep.subr.mxu0 0.0
    %2239 = vmatpush1.msra.mxu0 0.0
    %2240 = vmatprep.subr.mxu0 0.0
    %2241 = vmatpush1.msra.mxu0 0.0
    %2242 = vmatprep.subr.mxu0 0.0
    %2243 = vmatpush1.msra.mxu0 0.0
    %2244 = vmatprep.subr.mxu0 0.0
    %2245 = vmatpush1.msra.mxu0 0.0
    %2246 = vmatprep.mubr.f32.mxu0 0.0
    %2247 = vmatmul.mubr.f32.gmra.mrb[0].mxu0 %v2180
    %v2248 = vpop.f32.mrb[0].mxu0
    %v2249 = vadd.f32 %v2177, %v2248
    %v2250 = vpop.f32.mrb[0].mxu0
    %2251 = vdwg.mxu0
    %v2252 = vadd.f32 %v2165, %v2249
    %v2253 = vxor.u32 %v2252, 2147483648
    %v2254 = vmul.f32 %v2253, 1.442695
    %v2255 = vpow.pop %v2254
    %v2256 = vadd.f32 %v2255, 1.0
    %v2257 = vrcp.pop %v2256
    %v2258 = vmul.f32 1.0, %v2257
    %2260 = vrot.lane.b32.xlu0 %v2249, 64
    %v2261 = vpop.permute.xlu0 %2260
    %v2263 = vmul.f32 %v2258, %v2261
    %2265 = vrot.lane.b32.xlu0 %v2263, 64
    %v2266 = vpop.permute.xlu0 %2265
    %v2268 = vadd.f32 %v2165, %v2266
    %v2269 = vtanh.pop %v2268
    %v2270 = vsub.f32 1.0, %v2258
    %2272 = vrot.lane.b32.xlu0 %v2269, 96
    %v2273 = vpop.permute.xlu0 %2272
    %v2275 = vmul.f32 %v2270, %v2273
    %2276 = vrot.lane.b32.xlu0 %v2083, 32
    %v2277 = vpop.permute.xlu0 %2276
    %v2279 = vmul.f32 %v2258, %v2277
    %v2280 = vadd.f32 %v2275, %v2279
    %v2281 = vld [vmem:[%s19] sm:$0xff]
    %v2282 = vld [vmem:[%s19 + $0x8] sm:$0xff]
    %v2283 = vld [vmem:[%s19 + $0x10] sm:$0xff]
    %v2284 = vld [vmem:[%s19 + $0x18] sm:$0xff]
    %v2285 = vld [vmem:[%s20] sm:$0x1]
    %v2287 = vlaneseq
    %v2288 = vshrl.u32 %v2287, 7
    %v2289 = vsub.s32 0, %v2288
    %v2290 = vrot.slane %v2285, %v2289
    %2293 = vrot.lane.b32.xlu0 %v2280, 96
    %v2294 = vpop.permute.xlu0 %2293
    %v2295 = vsel %vm2008, %v2294, 0
    %2297 = vmatprep.subr.mxu0 0.0
    %2298 = vmatpush1.msra.mxu0 %v2281
    %2299 = vmatprep.subr.mxu0 0.0
    %2300 = vmatpush1.msra.mxu0 %v2282
    %2301 = vmatprep.subr.mxu0 0.0
    %2302 = vmatpush1.msra.mxu0 %v2283
    %2303 = vmatprep.subr.mxu0 0.0
    %2304 = vmatpush1.msra.mxu0 %v2284
    %2305 = vmatprep.subr.mxu0 0.0
    %2306 = vmatpush1.msra.mxu0 0.0
    %2307 = vmatprep.subr.mxu0 0.0
    %2308 = vmatpush1.msra.mxu0 0.0
    %2309 = vmatprep.subr.mxu0 0.0
    %2310 = vmatpush1.msra.mxu0 0.0
    %2311 = vmatprep.subr.mxu0 0.0
    %2312 = vmatpush1.msra.mxu0 0.0
    %2313 = vmatprep.subr.mxu0 0.0
    %2314 = vmatpush1.msra.mxu0 0.0
    %2315 = vmatprep.subr.mxu0 0.0
    %2316 = vmatpush1.msra.mxu0 0.0
    %2317 = vmatprep.subr.mxu0 0.0
    %2318 = vmatpush1.msra.mxu0 0.0
    %2319 = vmatprep.subr.mxu0 0.0
    %2320 = vmatpush1.msra.mxu0 0.0
    %2321 = vmatprep.subr.mxu0 0.0
    %2322 = vmatpush1.msra.mxu0 0.0
    %2323 = vmatprep.subr.mxu0 0.0
    %2324 = vmatpush1.msra.mxu0 0.0
    %2325 = vmatprep.subr.mxu0 0.0
    %2326 = vmatpush1.msra.mxu0 0.0
    %2327 = vmatprep.subr.mxu0 0.0
    %2328 = vmatpush1.msra.mxu0 0.0
    %2329 = vmatprep.subr.mxu0 0.0
    %2330 = vmatpush1.msra.mxu0 0.0
    %2331 = vmatprep.subr.mxu0 0.0
    %2332 = vmatpush1.msra.mxu0 0.0
    %2333 = vmatprep.subr.mxu0 0.0
    %2334 = vmatpush1.msra.mxu0 0.0
    %2335 = vmatprep.subr.mxu0 0.0
    %2336 = vmatpush1.msra.mxu0 0.0
    %2337 = vmatprep.subr.mxu0 0.0
    %2338 = vmatpush1.msra.mxu0 0.0
    %2339 = vmatprep.subr.mxu0 0.0
    %2340 = vmatpush1.msra.mxu0 0.0
    %2341 = vmatprep.subr.mxu0 0.0
    %2342 = vmatpush1.msra.mxu0 0.0
    %2343 = vmatprep.subr.mxu0 0.0
    %2344 = vmatpush1.msra.mxu0 0.0
    %2345 = vmatprep.subr.mxu0 0.0
    %2346 = vmatpush1.msra.mxu0 0.0
    %2347 = vmatprep.subr.mxu0 0.0
    %2348 = vmatpush1.msra.mxu0 0.0
    %2349 = vmatprep.subr.mxu0 0.0
    %2350 = vmatpush1.msra.mxu0 0.0
    %2351 = vmatprep.subr.mxu0 0.0
    %2352 = vmatpush1.msra.mxu0 0.0
    %2353 = vmatprep.subr.mxu0 0.0
    %2354 = vmatpush1.msra.mxu0 0.0
    %2355 = vmatprep.subr.mxu0 0.0
    %2356 = vmatpush1.msra.mxu0 0.0
    %2357 = vmatprep.subr.mxu0 0.0
    %2358 = vmatpush1.msra.mxu0 0.0
    %2359 = vmatprep.subr.mxu0 0.0
    %2360 = vmatpush1.msra.mxu0 0.0
    %2361 = vmatprep.mubr.f32.mxu0 0.0
    %2362 = vmatmul.mubr.f32.gmra.mrb[0].mxu0 %v2295
    %v2363 = vpop.f32.mrb[0].mxu0
    %v2364 = vadd.f32 %v2290, %v2363
    %v2365 = vpop.f32.mrb[0].mxu0
    %2366 = vdwg.mxu0
    %vm2367 = vcmask 33800
    %v2368 = vsel %vm2367, %v2364, -inf
    %2369 = vmax.xlane.f32.xlu0 %v2368
    %v2370 = vpop.xlane.xlu0 %2369
    %v2371 = vsub.f32 %v2364, %v2370
    %v2372 = vmul.f32 %v2371, 1.442695
    %v2373 = vpow.pop %v2372
    %2375 = vrot.lane.b32.xlu0 %v2373, 127
    %v2376 = vpop.permute.xlu0 %2375
    %vm2378 = vcmask 25600
    %v2379 = vsel %vm2378, %v2376, 0.0
    %2380 = vadd.xlane.f32.xlu0 %v2379
    %v2381 = vpop.xlane.xlu0 %2380
    %v2382 = vrcp.pop %v2381
    %v2383 = vmul.f32 %v2373, %v2382
    %2384 = vst [vmem:[#allocation17] sm:$0x3] 0.0
    %vm2386 = vcmask 254976
    %2387 = vst.msk [vmem:[#allocation17] sm:$0x3] %vm2386, %v2294
    %2389 = vrot.lane.b32.xlu0 %v2364, 32
    %v2390 = vpop.permute.xlu0 %2389
    %vm2392 = vcmask 263424
    %2393 = vst.msk [vmem:[#allocation17] sm:$0x3] %vm2392, %v2390
    %2395 = vrot.lane.b32.xlu0 %v2383, 32
    %v2396 = vpop.permute.xlu0 %2395
    %vm2398 = vcmask 296200
    %2399 = vst.msk [vmem:[#allocation17] sm:$0x3] %vm2398, %v2396
    // Predicated region
    $region122: #{tpu_custom_call.1} parent=1 // pred_check
      _
    $region123: #{tpu_custom_call.1} parent=1 // pred_check_branch
      %2401 = sbr.rel (0) target = $region125
    $region124: #{tpu_custom_call.1} parent=1 // pred_region
      %s2403 = ssub.s32 32, 32
      %2404 = vsyncadd [#allocation4], %s2403
      %s2406 = sshll.u32 [#allocation17], 4
      %s2407 = int_to_ptr.vmem [resolvable:$true] %s2406
      %2409 = dma.vmem_to_hbm [thread:$0]  %s2407, 32, %s21, [#allocation4]
    $region125: #{tpu_custom_call.1} parent=1 // pred_fallthru
      _
    // Predicated region
    $region126: #{tpu_custom_call.1} parent=1 // pred_check
      _
    $region127: #{tpu_custom_call.1} parent=1 // pred_check_branch
      %2411 = sbr.rel (0) target = $region129
    $region128: #{tpu_custom_call.1} parent=1 // pred_region
      %2412 = dma.done [#allocation4], 32
    $region129: #{tpu_custom_call.1} parent=1 // pred_fallthru
      _
    %2413 = vsyncpa [#allocation3], 1
    %2414 = vsyncpa [#allocation6], 1
    %2415 = vsyncpa [#allocation9], 1
    %2416 = vsyncpa [#allocation12], 1
    %2417 = vsyncpa [#allocation15], 1
    %2418 = vsyncpa [#allocation4], 1

</llo_original>
